<compile_context>
chip_gen: v5e
topology: v5e:2x2
jax: 0.10.0
libtpu: 0.0.40
codegen_flags: <defaults>
</compile_context>

<pallas_src>
import numpy as np
import jax
import jax.numpy as jnp
from jax.experimental import pallas as pl
from jax.experimental.pallas import tpu as pltpu

BN_EPS = 1e-5


# --------------------------------------------------------------------------
# Host-side preparation: fold params into 4 packed slabs + a static "plan"
# (python ints only) that the kernel closure walks.
# --------------------------------------------------------------------------

def _prepare(params, L0, P, use_bn):
    w_entries, b_entries, bn_entries, s_entries = [], [], [], []
    s_cache = {}

    def add_w2d(w2d):
        w_entries.append(np.asarray(w2d, np.float32))
        return len(w_entries) - 1

    def add_b(b):
        b_entries.append(np.asarray(b, np.float32).reshape(-1, 1))
        return len(b_entries) - 1

    def add_bn(bn_p):
        if not use_bn or bn_p is None:
            return None
        g = np.asarray(bn_p['gamma'], np.float32)
        v = np.asarray(bn_p['var'], np.float32)
        m = np.asarray(bn_p['mean'], np.float32)
        bt = np.asarray(bn_p['beta'], np.float32)
        sc = g / np.sqrt(v + BN_EPS)
        sh = bt - m * sc
        bn_entries.append(np.stack([sc, sh], axis=1))          # (C, 2)
        return len(bn_entries) - 1

    def add_s(L_in, stride):
        """Block-diagonal (per packed batch element) subsample matrix:
        selects positions t*stride within each length-L_in element."""
        key = (L_in, stride)
        if key not in s_cache:
            L_out = -(-L_in // stride)
            S = np.zeros((P * L_in, P * L_out), np.float32)
            for p in range(P):
                for t in range(L_out):
                    S[p * L_in + t * stride, p * L_out + t] = 1.0
            s_entries.append(S)
            s_cache[key] = len(s_entries) - 1
        return s_cache[key]

    def conv_node(cp, L_in, stride):
        """MyConv1dPadSame: SAME zero padding, optional stride."""
        w = np.asarray(cp['w'], np.float32)                    # (Cout, Cin, K) torch
        Cout, Cin_, K = w.shape
        L_out = -(-L_in // stride)                             # ceil
        pad = max(0, (L_out - 1) * stride + K - L_in)
        left = pad // 2
        wp = w.transpose(0, 2, 1).reshape(Cout, K * Cin_)      # (Cout, K*Cin)
        node = dict(w=add_w2d(wp), b=add_b(cp['b']), Cout=Cout, Cin=Cin_, K=K,
                    left=left, L_in=L_in, L_out=L_out, stride=stride,
                    s=(add_s(L_in, stride) if stride > 1 else None))
        return node, L_out

    plan = {'P': P, 'use_bn': use_bn}
    plan['first_conv'], L = conv_node(params['first_conv'], L0, 1)
    plan['first_bn'] = add_bn(params['first_bn'])

    blocks = []
    for bp in params['blocks']:
        nd = {'is_first_block': bp['is_first_block'],
              'in_channels': bp['in_channels'],
              'out_channels': bp['out_channels']}
        L_in = L
        nd['bn1'] = None if bp['is_first_block'] else add_bn(bp['bn1'])
        nd['conv1'], L = conv_node(bp['conv1'], L_in, bp['stride'])
        nd['bn2'] = add_bn(bp['bn2'])
        nd['conv2'], L = conv_node(bp['conv2'], L, 1)
        if bp['downsample']:
            k = bp['stride']
            # MyMaxPool1dPadSame(kernel=k): pad (k-1) zeros (left=(k-1)//2),
            # MaxPool1d(kernel=k, stride=k).  Output positions are t*k, i.e.
            # the SAME subsample grid as the strided conv -> share S.
            nd['pool'] = {'k': k, 'left': (k - 1) // 2, 'L_in': L_in,
                          'L_out': -(-L_in // k), 's': add_s(L_in, k)}
        else:
            nd['pool'] = None
        if bp['out_channels'] != bp['in_channels']:
            ch1 = (bp['out_channels'] - bp['in_channels']) // 2
            ch2 = bp['out_channels'] - bp['in_channels'] - ch1
            nd['expand'] = {'ch1': ch1, 'ch2': ch2}
        else:
            nd['expand'] = None
        blocks.append(nd)
    plan['blocks'] = blocks

    plan['final_bn'] = add_bn(params['final_bn'])
    plan['final_C'] = int(params['blocks'][-1]['out_channels'])
    plan['L_final'] = L

    dw = np.asarray(params['dense']['w'], np.float32)          # (n_classes, C)
    plan['dense'] = {'w': add_w2d(dw), 'b': add_b(params['dense']['b']),
                     'ncls': int(dw.shape[0]), 'C': int(dw.shape[1])}

    if not bn_entries:
        bn_entries.append(np.zeros((8, 2), np.float32))        # dummy (use_bn=False)
    if not s_entries:
        s_entries.append(np.zeros((8, 8), np.float32))         # dummy (no downsample)

    def pack(entries, dtype):
        R = max(e.shape[0] for e in entries)
        C = max(e.shape[1] for e in entries)
        slab = np.zeros((len(entries), R, C), np.float32)
        for i, e in enumerate(entries):
            slab[i, :e.shape[0], :e.shape[1]] = e
        return jnp.asarray(slab, dtype)

    slabs = (pack(w_entries, jnp.bfloat16),    # matmul weights -> bf16
             pack(bn_entries, jnp.float32),
             pack(b_entries, jnp.float32),
             pack(s_entries, jnp.float32))
    return plan, slabs


# --------------------------------------------------------------------------
# The single fused kernel (whole network; P batch elements packed into lanes
# per grid step).
# --------------------------------------------------------------------------

def _make_kernel(plan):
    P = plan['P']
    use_bn = plan['use_bn']

    def kernel(x_ref, w_ref, bn_ref, b_ref, s_ref, o_ref):
        pos_cache = {}

        def lane_pos(L):
            if L not in pos_cache:
                lanes = P * L
                pos = jax.lax.broadcasted_iota(jnp.int32, (1, lanes), 1)
                pos_cache[L] = pos % L                         # position within element
            return pos_cache[L]

        def shifted(x, d, L):
            """out[:, t] = x[:, t+d] within each length-L packed element,
            0 where t+d is out of range (SAME zero padding; no cross-element leak)."""
            if d == 0:
                return x
            lanes = P * L
            rolled = pltpu.roll(x, (-d) % lanes, axis=1)       # XLU lane rotate
            pos = lane_pos(L)
            valid = jnp.logical_and(pos + d >= 0, pos + d < L)
            return jnp.where(valid, rolled, 0.0)

        def conv(nd, x):
            # x: (Cin, P*L_in) f32 -> (Cout, P*L_out) f32; ONE weight matmul.
            K, Cin, Cout = nd['K'], nd['Cin'], nd['Cout']
            left, L_in = nd['left'], nd['L_in']
            taps = [shifted(x, k - left, L_in) for k in range(K)]
            xk = jnp.concatenate(taps, axis=0) if K > 1 else taps[0]
            w = w_ref[nd['w']][:Cout, :K * Cin]                # bf16 weights
            z = jnp.dot(w, xk.astype(jnp.bfloat16),
                        preferred_element_type=jnp.float32)    # (Cout, P*L_in)
            if nd['s'] is not None:                            # strided conv: one subsample
                S = s_ref[nd['s']][:P * L_in, :P * nd['L_out']]
                z = jnp.dot(z, S, preferred_element_type=jnp.float32)
            return z + b_ref[nd['b']][:Cout, :]                # bias in f32

        def bn_relu(idx, x, C):
            if use_bn and idx is not None:                     # folded eval BN (f32)
                x = x * bn_ref[idx][:C, 0:1] + bn_ref[idx][:C, 1:2]
            return jnp.maximum(x, 0.0)

        def maxpool(nd, x):
            # zero-padded SAME max-pool (kernel = stride = k) on the shortcut.
            zp = shifted(x, 0 - nd['left'], nd['L_in'])
            for j in range(1, nd['k']):
                zp = jnp.maximum(zp, shifted(x, j - nd['left'], nd['L_in']))
            S = s_ref[nd['s']][:P * nd['L_in'], :P * nd['L_out']]
            return jnp.dot(zp, S, preferred_element_type=jnp.float32)

        # ---------------- forward ----------------
        x = (jnp.concatenate([x_ref[p] for p in range(P)], axis=-1)
             if P > 1 else x_ref[0])                           # (Cin, P*L0)

        out = conv(plan['first_conv'], x)
        out = bn_relu(plan['first_bn'], out, plan['first_conv']['Cout'])

        for nd in plan['blocks']:
            identity = out
            h = out
            if not nd['is_first_block']:
                h = bn_relu(nd['bn1'], h, nd['in_channels'])
                # Dropout(p=0.5): eval-mode forward -> identity
            h = conv(nd['conv1'], h)
            h = bn_relu(nd['bn2'], h, nd['out_channels'])
            # Dropout(p=0.5): eval-mode forward -> identity
            h = conv(nd['conv2'], h)

            if nd['pool'] is not None:                         # zero-padded max-pool shortcut
                identity = maxpool(nd['pool'], identity)
            if nd['expand'] is not None:                       # channel zero-pad = sublane concat
                lanes = P * nd['conv2']['L_out']
                identity = jnp.concatenate(
                    [jnp.zeros((nd['expand']['ch1'], lanes), identity.dtype),
                     identity,
                     jnp.zeros((nd['expand']['ch2'], lanes), identity.dtype)],
                    axis=0)
            out = h + identity                                 # residual add (f32)

        out = bn_relu(plan['final_bn'], out, plan['final_C'])

        # Classifier: temporal mean + Linear (Dropout eval -> identity).
        # mean_L and the dense layer commute: apply W first, then per-element mean.
        dn = plan['dense']
        wd = w_ref[dn['w']][:dn['ncls'], :dn['C']]             # bf16
        proj = jnp.dot(wd, out.astype(jnp.bfloat16),
                       preferred_element_type=jnp.float32)     # (ncls, P*Lf)
        Lf = plan['L_final']
        means = [jnp.mean(proj[:, p * Lf:(p + 1) * Lf], axis=1, keepdims=True)
                 for p in range(P)]
        m = jnp.concatenate(means, axis=1) if P > 1 else means[0]   # (ncls, P)
        o_ref[0] = m + b_ref[dn['b']][:dn['ncls'], :]

    return kernel


def _auto_pack(N, L0):
    """Batch elements packed into the 128-lane axis per grid step.
    Single-TC chips (v5e/v6e): pack as many as fit (halves the serial chain).
    Multi-TC chips (v7x, v4 megacore): keep 1/step so grid=(N,) maps to cores."""
    try:
        kind = jax.devices()[0].device_kind.lower()
    except Exception:
        kind = ""
    if 'v7' in kind or 'v4' in kind:
        return 1
    p = max(1, min(N, 128 // max(1, L0)))
    while N % p:
        p -= 1
    return p


def resnet1d_forward(params, x_ncl, use_bn=True):
    """x_ncl: (N, C_in, L) like the PyTorch module; returns (N, n_classes)."""
    x_ncl = jnp.asarray(x_ncl, jnp.float32)
    N, Cin, L0 = x_ncl.shape
    P = _auto_pack(N, L0)
    plan, (wslab, bnslab, bslab, sslab) = _prepare(params, L0, P, use_bn)
    ncls = plan['dense']['ncls']
    nsteps = N // P

    in_specs = [
        pl.BlockSpec((P, Cin, L0), lambda g: (g, 0, 0)),        # P batch elems / step
        pl.BlockSpec(wslab.shape, lambda g: (0, 0, 0)),         # packed weight slab
        pl.BlockSpec(bnslab.shape, lambda g: (0, 0, 0)),        # packed BN scale/shift
        pl.BlockSpec(bslab.shape, lambda g: (0, 0, 0)),         # packed biases
        pl.BlockSpec(sslab.shape, lambda g: (0, 0, 0)),         # packed subsample mats
    ]

    out = pl.pallas_call(
        _make_kernel(plan),
        out_shape=jax.ShapeDtypeStruct((nsteps, ncls, P), jnp.float32),
        grid=(nsteps,),
        in_specs=in_specs,
        out_specs=pl.BlockSpec((1, ncls, P), lambda g: (g, 0, 0)),
        compiler_params=pltpu.CompilerParams(
            dimension_semantics=("parallel",)),                 # batch across TCs
    )(x_ncl, wslab, bnslab, bslab, sslab)

    # (nsteps, ncls, P) -> (N, ncls); element g*P+p lives at out[g, :, p].
    return jnp.transpose(out, (0, 2, 1)).reshape(N, ncls)


# --------------------------- deterministic params ---------------------------

def init_conv(key, cin, cout, k):
    k1, k2 = jax.random.split(key)
    scale = 1.0 / np.sqrt(cin * k)
    return {'w': jax.random.normal(k1, (cout, cin, k), jnp.float32) * scale,
            'b': jax.random.normal(k2, (cout,), jnp.float32) * 0.1}


def init_bn(key, c):
    k1, k2, k3, k4 = jax.random.split(key, 4)
    return {'gamma': 1.0 + 0.1 * jax.random.normal(k1, (c,), jnp.float32),
            'beta': 0.1 * jax.random.normal(k2, (c,), jnp.float32),
            'mean': 0.1 * jax.random.normal(k3, (c,), jnp.float32),
            'var': 0.5 + jax.random.uniform(k4, (c,), jnp.float32)}


def init_params(key, in_channels, base_filters, kernel_size, stride, groups,
                n_block, n_classes, downsample_gap=2, increasefilter_gap=4):
    assert groups == 1  # TODO(synk): grouped (ResNeXt) conv not implemented
    keys = iter(jax.random.split(key, 4 * n_block + 8))
    params = {'first_conv': init_conv(next(keys), in_channels, base_filters, kernel_size),
              'first_bn': init_bn(next(keys), base_filters)}
    blocks = []
    out_channels = base_filters
    for i_block in range(n_block):
        is_first_block = (i_block == 0)
        downsample = (i_block % downsample_gap == 1)
        if is_first_block:
            in_ch = base_filters
            out_channels = in_ch
        else:
            in_ch = int(base_filters * 2 ** ((i_block - 1) // increasefilter_gap))
            if i_block % increasefilter_gap == 0 and i_block != 0:
                out_channels = in_ch * 2
            else:
                out_channels = in_ch
        blk_stride = stride if downsample else 1
        blocks.append({
            'is_first_block': is_first_block,
            'downsample': downsample,
            'stride': blk_stride,
            'in_channels': in_ch,
            'out_channels': out_channels,
            'bn1': init_bn(next(keys), in_ch),
            'conv1': init_conv(next(keys), in_ch, out_channels, kernel_size),
            'bn2': init_bn(next(keys), out_channels),
            'conv2': init_conv(next(keys), out_channels, out_channels, kernel_size),
        })
    params['blocks'] = blocks
    params['final_bn'] = init_bn(next(keys), out_channels)
    clf_in = base_filters * 2 ** (n_block // increasefilter_gap - 1)
    assert clf_in == out_channels
    kd1, kd2 = jax.random.split(next(keys))
    params['dense'] = {'w': jax.random.normal(kd1, (n_classes, clf_in), jnp.float32)
                            / np.sqrt(clf_in),
                       'b': jax.random.normal(kd2, (n_classes,), jnp.float32) * 0.1}
    return params


# ---------------------------------- main ------------------------------------

if __name__ == "__main__":
    key = jax.random.PRNGKey(0)
    kp, kx = jax.random.split(key)

    in_channels, base_filters, kernel_size, stride = 4, 8, 3, 2
    groups, n_block, n_classes = 1, 8, 5
    N, L = 2, 64

    params = init_params(kp, in_channels, base_filters, kernel_size, stride,
                         groups, n_block, n_classes)
    x = jax.random.normal(kx, (N, in_channels, L), jnp.float32)

    out = resnet1d_forward(params, x, use_bn=True)
    out = jax.block_until_ready(out)
    assert out.shape == (N, n_classes), out.shape
    assert bool(jnp.all(jnp.isfinite(out)))
    print("KERNEL_OK")
</pallas_src>

<mosaic_0001>
module attributes {stable_mosaic.version = 11 : i64} {
  func.func @kernel(%arg0: i32, %arg1: memref<2x4x64xf32, #tpu.memory_space<vmem>>, %arg2: memref<18x16x48xbf16, #tpu.memory_space<vmem>>, %arg3: memref<17x16x2xf32, #tpu.memory_space<vmem>>, %arg4: memref<18x16x1xf32, #tpu.memory_space<vmem>>, %arg5: memref<4x128x64xf32, #tpu.memory_space<vmem>>, %arg6: memref<1x5x2xf32, #tpu.memory_space<vmem>>) attributes {dimension_semantics = [#tpu.dimension_semantics<parallel>], iteration_bounds = array<i64: 1>, scalar_prefetch = 0 : i64, scratch_operands = 0 : i64, tpu.core_type = #tpu.core_type<tc>, window_params = [{transform_indices = @transform_0, window_bounds = array<i64: 2, 4, 64>}, {pipeline_mode = #tpu.pipeline_mode<synchronous>, transform_indices = @transform_1, window_bounds = array<i64: 18, 16, 48>}, {pipeline_mode = #tpu.pipeline_mode<synchronous>, transform_indices = @transform_2, window_bounds = array<i64: 17, 16, 2>}, {pipeline_mode = #tpu.pipeline_mode<synchronous>, transform_indices = @transform_3, window_bounds = array<i64: 18, 16, 1>}, {pipeline_mode = #tpu.pipeline_mode<synchronous>, transform_indices = @transform_4, window_bounds = array<i64: 4, 128, 64>}, {transform_indices = @transform_5, window_bounds = array<i64: 1, 5, 2>}]} {
    %c0 = arith.constant 0 : index
    %c0_0 = arith.constant 0 : index
    %c0_1 = arith.constant 0 : index
    %0 = vector.load %arg1[%c0, %c0_0, %c0_1] : memref<2x4x64xf32, #tpu.memory_space<vmem>>, vector<1x4x64xf32>
    %1 = vector.shape_cast %0 : vector<1x4x64xf32> to vector<4x64xf32>
    %c1 = arith.constant 1 : index
    %c0_2 = arith.constant 0 : index
    %c0_3 = arith.constant 0 : index
    %2 = vector.load %arg1[%c1, %c0_2, %c0_3] : memref<2x4x64xf32, #tpu.memory_space<vmem>>, vector<1x4x64xf32>
    %3 = vector.shape_cast %2 : vector<1x4x64xf32> to vector<4x64xf32>
    %4 = tpu.concatenate %1, %3 in 1 : vector<4x64xf32>, vector<4x64xf32> -> vector<4x128xf32>
    %c1_i32 = arith.constant 1 : i32
    %5 = tpu.dynamic_rotate %4 by %c1_i32 dim 1 : vector<4x128xf32>, i32 -> vector<4x128xf32>
    %6 = tpu.iota {dimensions = array<i32: 1>} : vector<1x128xi32>
    %c64_i32 = arith.constant 64 : i32
    %c0_i32 = arith.constant 0 : i32
    %7 = arith.cmpi eq, %c64_i32, %c0_i32 : i32
    %c1_i32_4 = arith.constant 1 : i32
    %8 = arith.select %7, %c1_i32_4, %c64_i32 : i32
    %9 = vector.broadcast %8 : i32 to vector<1x128xi32>
    %10 = arith.remsi %6, %9 : vector<1x128xi32>
    %c0_i32_5 = arith.constant 0 : i32
    %11 = vector.broadcast %c0_i32_5 : i32 to vector<1x128xi32>
    %12 = arith.cmpi ne, %10, %11 : vector<1x128xi32>
    %c0_i32_6 = arith.constant 0 : i32
    %13 = vector.broadcast %c0_i32_6 : i32 to vector<1x128xi32>
    %14 = arith.cmpi slt, %10, %13 : vector<1x128xi32>
    %c0_i32_7 = arith.constant 0 : i32
    %15 = arith.cmpi slt, %8, %c0_i32_7 : i32
    %16 = vector.broadcast %15 : i1 to vector<1x128xi1>
    %17 = vector.broadcast %16 : vector<1x128xi1> to vector<1x128xi1>
    %18 = arith.xori %14, %17 : vector<1x128xi1>
    %19 = arith.andi %18, %12 : vector<1x128xi1>
    %20 = vector.broadcast %8 : i32 to vector<1x128xi32>
    %21 = arith.addi %10, %20 : vector<1x128xi32>
    %22 = arith.select %19, %21, %10 : vector<1x128xi1>, vector<1x128xi32>
    %c-1_i32 = arith.constant -1 : i32
    %23 = vector.broadcast %c-1_i32 : i32 to vector<1x128xi32>
    %24 = arith.addi %22, %23 : vector<1x128xi32>
    %c0_i32_8 = arith.constant 0 : i32
    %25 = vector.broadcast %c0_i32_8 : i32 to vector<1x128xi32>
    %26 = arith.cmpi sge, %24, %25 : vector<1x128xi32>
    %c-1_i32_9 = arith.constant -1 : i32
    %27 = vector.broadcast %c-1_i32_9 : i32 to vector<1x128xi32>
    %28 = arith.addi %22, %27 : vector<1x128xi32>
    %c64_i32_10 = arith.constant 64 : i32
    %29 = vector.broadcast %c64_i32_10 : i32 to vector<1x128xi32>
    %30 = arith.cmpi slt, %28, %29 : vector<1x128xi32>
    %31 = arith.andi %26, %30 : vector<1x128xi1>
    %cst = arith.constant 0.000000e+00 : f32
    %32 = vector.shape_cast %31 : vector<1x128xi1> to vector<1x128xi1>
    %33 = vector.broadcast %32 : vector<1x128xi1> to vector<4x128xi1>
    %34 = vector.broadcast %cst : f32 to vector<4x128xf32>
    %35 = arith.select %33, %5, %34 : vector<4x128xi1>, vector<4x128xf32>
    %c127_i32 = arith.constant 127 : i32
    %36 = tpu.dynamic_rotate %4 by %c127_i32 dim 1 : vector<4x128xf32>, i32 -> vector<4x128xf32>
    %c1_i32_11 = arith.constant 1 : i32
    %37 = vector.broadcast %c1_i32_11 : i32 to vector<1x128xi32>
    %38 = arith.addi %22, %37 : vector<1x128xi32>
    %c0_i32_12 = arith.constant 0 : i32
    %39 = vector.broadcast %c0_i32_12 : i32 to vector<1x128xi32>
    %40 = arith.cmpi sge, %38, %39 : vector<1x128xi32>
    %c1_i32_13 = arith.constant 1 : i32
    %41 = vector.broadcast %c1_i32_13 : i32 to vector<1x128xi32>
    %42 = arith.addi %22, %41 : vector<1x128xi32>
    %c64_i32_14 = arith.constant 64 : i32
    %43 = vector.broadcast %c64_i32_14 : i32 to vector<1x128xi32>
    %44 = arith.cmpi slt, %42, %43 : vector<1x128xi32>
    %45 = arith.andi %40, %44 : vector<1x128xi1>
    %cst_15 = arith.constant 0.000000e+00 : f32
    %46 = vector.shape_cast %45 : vector<1x128xi1> to vector<1x128xi1>
    %47 = vector.broadcast %46 : vector<1x128xi1> to vector<4x128xi1>
    %48 = vector.broadcast %cst_15 : f32 to vector<4x128xf32>
    %49 = arith.select %47, %36, %48 : vector<4x128xi1>, vector<4x128xf32>
    %50 = tpu.concatenate %35, %4, %49 in 0 : vector<4x128xf32>, vector<4x128xf32>, vector<4x128xf32> -> vector<12x128xf32>
    %c0_16 = arith.constant 0 : index
    %c0_17 = arith.constant 0 : index
    %c0_18 = arith.constant 0 : index
    %51 = vector.load %arg2[%c0_16, %c0_17, %c0_18] : memref<18x16x48xbf16, #tpu.memory_space<vmem>>, vector<1x16x48xbf16>
    %52 = vector.shape_cast %51 : vector<1x16x48xbf16> to vector<16x48xbf16>
    %53 = vector.extract_strided_slice %52 {offsets = [0, 0], sizes = [8, 12], strides = [1, 1]} : vector<16x48xbf16> to vector<8x12xbf16>
    %54 = arith.truncf %50 : vector<12x128xf32> to vector<12x128xbf16>
    %cst_19 = arith.constant dense<0.000000e+00> : vector<8x128xf32>
    %55 = tpu.matmul %53, %54, %cst_19 {dimension_numbers = #tpu.dot_dimension_numbers<[1], [0], [0], [1], [0, 0, 1, 1], [], []>} : vector<8x12xbf16>, vector<12x128xbf16>, vector<8x128xf32> -> vector<8x128xf32>
    %c0_20 = arith.constant 0 : index
    %c0_21 = arith.constant 0 : index
    %c0_22 = arith.constant 0 : index
    %56 = vector.load %arg4[%c0_20, %c0_21, %c0_22] : memref<18x16x1xf32, #tpu.memory_space<vmem>>, vector<1x16x1xf32>
    %57 = vector.shape_cast %56 : vector<1x16x1xf32> to vector<16x1xf32>
    %58 = vector.extract_strided_slice %57 {offsets = [0, 0], sizes = [8, 1], strides = [1, 1]} : vector<16x1xf32> to vector<8x1xf32>
    %59 = vector.broadcast %58 : vector<8x1xf32> to vector<8x128xf32>
    %60 = arith.addf %55, %59 : vector<8x128xf32>
    %c0_23 = arith.constant 0 : index
    %c0_24 = arith.constant 0 : index
    %c0_25 = arith.constant 0 : index
    %61 = vector.load %arg3[%c0_23, %c0_24, %c0_25] : memref<17x16x2xf32, #tpu.memory_space<vmem>>, vector<1x16x2xf32>
    %62 = vector.shape_cast %61 : vector<1x16x2xf32> to vector<16x2xf32>
    %63 = vector.extract_strided_slice %62 {offsets = [0, 0], sizes = [8, 1], strides = [1, 1]} : vector<16x2xf32> to vector<8x1xf32>
    %64 = vector.broadcast %63 : vector<8x1xf32> to vector<8x128xf32>
    %65 = arith.mulf %60, %64 : vector<8x128xf32>
    %c0_26 = arith.constant 0 : index
    %c0_27 = arith.constant 0 : index
    %c0_28 = arith.constant 0 : index
    %66 = vector.load %arg3[%c0_26, %c0_27, %c0_28] : memref<17x16x2xf32, #tpu.memory_space<vmem>>, vector<1x16x2xf32>
    %67 = vector.shape_cast %66 : vector<1x16x2xf32> to vector<16x2xf32>
    %68 = vector.extract_strided_slice %67 {offsets = [0, 1], sizes = [8, 1], strides = [1, 1]} : vector<16x2xf32> to vector<8x1xf32>
    %69 = vector.broadcast %68 : vector<8x1xf32> to vector<8x128xf32>
    %70 = arith.addf %65, %69 : vector<8x128xf32>
    %cst_29 = arith.constant 0.000000e+00 : f32
    %71 = vector.broadcast %cst_29 : f32 to vector<8x128xf32>
    %72 = arith.maximumf %70, %71 : vector<8x128xf32>
    %c1_i32_30 = arith.constant 1 : i32
    %73 = tpu.dynamic_rotate %72 by %c1_i32_30 dim 1 : vector<8x128xf32>, i32 -> vector<8x128xf32>
    %c-1_i32_31 = arith.constant -1 : i32
    %74 = vector.broadcast %c-1_i32_31 : i32 to vector<1x128xi32>
    %75 = arith.addi %22, %74 : vector<1x128xi32>
    %c0_i32_32 = arith.constant 0 : i32
    %76 = vector.broadcast %c0_i32_32 : i32 to vector<1x128xi32>
    %77 = arith.cmpi sge, %75, %76 : vector<1x128xi32>
    %c-1_i32_33 = arith.constant -1 : i32
    %78 = vector.broadcast %c-1_i32_33 : i32 to vector<1x128xi32>
    %79 = arith.addi %22, %78 : vector<1x128xi32>
    %c64_i32_34 = arith.constant 64 : i32
    %80 = vector.broadcast %c64_i32_34 : i32 to vector<1x128xi32>
    %81 = arith.cmpi slt, %79, %80 : vector<1x128xi32>
    %82 = arith.andi %77, %81 : vector<1x128xi1>
    %cst_35 = arith.constant 0.000000e+00 : f32
    %83 = vector.shape_cast %82 : vector<1x128xi1> to vector<1x128xi1>
    %84 = vector.broadcast %83 : vector<1x128xi1> to vector<8x128xi1>
    %85 = vector.broadcast %cst_35 : f32 to vector<8x128xf32>
    %86 = arith.select %84, %73, %85 : vector<8x128xi1>, vector<8x128xf32>
    %c127_i32_36 = arith.constant 127 : i32
    %87 = tpu.dynamic_rotate %72 by %c127_i32_36 dim 1 : vector<8x128xf32>, i32 -> vector<8x128xf32>
    %c1_i32_37 = arith.constant 1 : i32
    %88 = vector.broadcast %c1_i32_37 : i32 to vector<1x128xi32>
    %89 = arith.addi %22, %88 : vector<1x128xi32>
    %c0_i32_38 = arith.constant 0 : i32
    %90 = vector.broadcast %c0_i32_38 : i32 to vector<1x128xi32>
    %91 = arith.cmpi sge, %89, %90 : vector<1x128xi32>
    %c1_i32_39 = arith.constant 1 : i32
    %92 = vector.broadcast %c1_i32_39 : i32 to vector<1x128xi32>
    %93 = arith.addi %22, %92 : vector<1x128xi32>
    %c64_i32_40 = arith.constant 64 : i32
    %94 = vector.broadcast %c64_i32_40 : i32 to vector<1x128xi32>
    %95 = arith.cmpi slt, %93, %94 : vector<1x128xi32>
    %96 = arith.andi %91, %95 : vector<1x128xi1>
    %cst_41 = arith.constant 0.000000e+00 : f32
    %97 = vector.shape_cast %96 : vector<1x128xi1> to vector<1x128xi1>
    %98 = vector.broadcast %97 : vector<1x128xi1> to vector<8x128xi1>
    %99 = vector.broadcast %cst_41 : f32 to vector<8x128xf32>
    %100 = arith.select %98, %87, %99 : vector<8x128xi1>, vector<8x128xf32>
    %101 = tpu.concatenate %86, %72, %100 in 0 : vector<8x128xf32>, vector<8x128xf32>, vector<8x128xf32> -> vector<24x128xf32>
    %c1_42 = arith.constant 1 : index
    %c0_43 = arith.constant 0 : index
    %c0_44 = arith.constant 0 : index
    %102 = vector.load %arg2[%c1_42, %c0_43, %c0_44] : memref<18x16x48xbf16, #tpu.memory_space<vmem>>, vector<1x16x48xbf16>
    %103 = vector.shape_cast %102 : vector<1x16x48xbf16> to vector<16x48xbf16>
    %104 = vector.extract_strided_slice %103 {offsets = [0, 0], sizes = [8, 24], strides = [1, 1]} : vector<16x48xbf16> to vector<8x24xbf16>
    %105 = arith.truncf %101 : vector<24x128xf32> to vector<24x128xbf16>
    %cst_45 = arith.constant dense<0.000000e+00> : vector<8x128xf32>
    %106 = tpu.matmul %104, %105, %cst_45 {dimension_numbers = #tpu.dot_dimension_numbers<[1], [0], [0], [1], [0, 0, 1, 1], [], []>} : vector<8x24xbf16>, vector<24x128xbf16>, vector<8x128xf32> -> vector<8x128xf32>
    %c1_46 = arith.constant 1 : index
    %c0_47 = arith.constant 0 : index
    %c0_48 = arith.constant 0 : index
    %107 = vector.load %arg4[%c1_46, %c0_47, %c0_48] : memref<18x16x1xf32, #tpu.memory_space<vmem>>, vector<1x16x1xf32>
    %108 = vector.shape_cast %107 : vector<1x16x1xf32> to vector<16x1xf32>
    %109 = vector.extract_strided_slice %108 {offsets = [0, 0], sizes = [8, 1], strides = [1, 1]} : vector<16x1xf32> to vector<8x1xf32>
    %110 = vector.broadcast %109 : vector<8x1xf32> to vector<8x128xf32>
    %111 = arith.addf %106, %110 : vector<8x128xf32>
    %c1_49 = arith.constant 1 : index
    %c0_50 = arith.constant 0 : index
    %c0_51 = arith.constant 0 : index
    %112 = vector.load %arg3[%c1_49, %c0_50, %c0_51] : memref<17x16x2xf32, #tpu.memory_space<vmem>>, vector<1x16x2xf32>
    %113 = vector.shape_cast %112 : vector<1x16x2xf32> to vector<16x2xf32>
    %114 = vector.extract_strided_slice %113 {offsets = [0, 0], sizes = [8, 1], strides = [1, 1]} : vector<16x2xf32> to vector<8x1xf32>
    %115 = vector.broadcast %114 : vector<8x1xf32> to vector<8x128xf32>
    %116 = arith.mulf %111, %115 : vector<8x128xf32>
    %c1_52 = arith.constant 1 : index
    %c0_53 = arith.constant 0 : index
    %c0_54 = arith.constant 0 : index
    %117 = vector.load %arg3[%c1_52, %c0_53, %c0_54] : memref<17x16x2xf32, #tpu.memory_space<vmem>>, vector<1x16x2xf32>
    %118 = vector.shape_cast %117 : vector<1x16x2xf32> to vector<16x2xf32>
    %119 = vector.extract_strided_slice %118 {offsets = [0, 1], sizes = [8, 1], strides = [1, 1]} : vector<16x2xf32> to vector<8x1xf32>
    %120 = vector.broadcast %119 : vector<8x1xf32> to vector<8x128xf32>
    %121 = arith.addf %116, %120 : vector<8x128xf32>
    %cst_55 = arith.constant 0.000000e+00 : f32
    %122 = vector.broadcast %cst_55 : f32 to vector<8x128xf32>
    %123 = arith.maximumf %121, %122 : vector<8x128xf32>
    %c1_i32_56 = arith.constant 1 : i32
    %124 = tpu.dynamic_rotate %123 by %c1_i32_56 dim 1 : vector<8x128xf32>, i32 -> vector<8x128xf32>
    %c-1_i32_57 = arith.constant -1 : i32
    %125 = vector.broadcast %c-1_i32_57 : i32 to vector<1x128xi32>
    %126 = arith.addi %22, %125 : vector<1x128xi32>
    %c0_i32_58 = arith.constant 0 : i32
    %127 = vector.broadcast %c0_i32_58 : i32 to vector<1x128xi32>
    %128 = arith.cmpi sge, %126, %127 : vector<1x128xi32>
    %c-1_i32_59 = arith.constant -1 : i32
    %129 = vector.broadcast %c-1_i32_59 : i32 to vector<1x128xi32>
    %130 = arith.addi %22, %129 : vector<1x128xi32>
    %c64_i32_60 = arith.constant 64 : i32
    %131 = vector.broadcast %c64_i32_60 : i32 to vector<1x128xi32>
    %132 = arith.cmpi slt, %130, %131 : vector<1x128xi32>
    %133 = arith.andi %128, %132 : vector<1x128xi1>
    %cst_61 = arith.constant 0.000000e+00 : f32
    %134 = vector.shape_cast %133 : vector<1x128xi1> to vector<1x128xi1>
    %135 = vector.broadcast %134 : vector<1x128xi1> to vector<8x128xi1>
    %136 = vector.broadcast %cst_61 : f32 to vector<8x128xf32>
    %137 = arith.select %135, %124, %136 : vector<8x128xi1>, vector<8x128xf32>
    %c127_i32_62 = arith.constant 127 : i32
    %138 = tpu.dynamic_rotate %123 by %c127_i32_62 dim 1 : vector<8x128xf32>, i32 -> vector<8x128xf32>
    %c1_i32_63 = arith.constant 1 : i32
    %139 = vector.broadcast %c1_i32_63 : i32 to vector<1x128xi32>
    %140 = arith.addi %22, %139 : vector<1x128xi32>
    %c0_i32_64 = arith.constant 0 : i32
    %141 = vector.broadcast %c0_i32_64 : i32 to vector<1x128xi32>
    %142 = arith.cmpi sge, %140, %141 : vector<1x128xi32>
    %c1_i32_65 = arith.constant 1 : i32
    %143 = vector.broadcast %c1_i32_65 : i32 to vector<1x128xi32>
    %144 = arith.addi %22, %143 : vector<1x128xi32>
    %c64_i32_66 = arith.constant 64 : i32
    %145 = vector.broadcast %c64_i32_66 : i32 to vector<1x128xi32>
    %146 = arith.cmpi slt, %144, %145 : vector<1x128xi32>
    %147 = arith.andi %142, %146 : vector<1x128xi1>
    %cst_67 = arith.constant 0.000000e+00 : f32
    %148 = vector.shape_cast %147 : vector<1x128xi1> to vector<1x128xi1>
    %149 = vector.broadcast %148 : vector<1x128xi1> to vector<8x128xi1>
    %150 = vector.broadcast %cst_67 : f32 to vector<8x128xf32>
    %151 = arith.select %149, %138, %150 : vector<8x128xi1>, vector<8x128xf32>
    %152 = tpu.concatenate %137, %123, %151 in 0 : vector<8x128xf32>, vector<8x128xf32>, vector<8x128xf32> -> vector<24x128xf32>
    %c2 = arith.constant 2 : index
    %c0_68 = arith.constant 0 : index
    %c0_69 = arith.constant 0 : index
    %153 = vector.load %arg2[%c2, %c0_68, %c0_69] : memref<18x16x48xbf16, #tpu.memory_space<vmem>>, vector<1x16x48xbf16>
    %154 = vector.shape_cast %153 : vector<1x16x48xbf16> to vector<16x48xbf16>
    %155 = vector.extract_strided_slice %154 {offsets = [0, 0], sizes = [8, 24], strides = [1, 1]} : vector<16x48xbf16> to vector<8x24xbf16>
    %156 = arith.truncf %152 : vector<24x128xf32> to vector<24x128xbf16>
    %cst_70 = arith.constant dense<0.000000e+00> : vector<8x128xf32>
    %157 = tpu.matmul %155, %156, %cst_70 {dimension_numbers = #tpu.dot_dimension_numbers<[1], [0], [0], [1], [0, 0, 1, 1], [], []>} : vector<8x24xbf16>, vector<24x128xbf16>, vector<8x128xf32> -> vector<8x128xf32>
    %c2_71 = arith.constant 2 : index
    %c0_72 = arith.constant 0 : index
    %c0_73 = arith.constant 0 : index
    %158 = vector.load %arg4[%c2_71, %c0_72, %c0_73] : memref<18x16x1xf32, #tpu.memory_space<vmem>>, vector<1x16x1xf32>
    %159 = vector.shape_cast %158 : vector<1x16x1xf32> to vector<16x1xf32>
    %160 = vector.extract_strided_slice %159 {offsets = [0, 0], sizes = [8, 1], strides = [1, 1]} : vector<16x1xf32> to vector<8x1xf32>
    %161 = vector.broadcast %160 : vector<8x1xf32> to vector<8x128xf32>
    %162 = arith.addf %157, %161 : vector<8x128xf32>
    %163 = arith.addf %162, %72 : vector<8x128xf32>
    %c2_74 = arith.constant 2 : index
    %c0_75 = arith.constant 0 : index
    %c0_76 = arith.constant 0 : index
    %164 = vector.load %arg3[%c2_74, %c0_75, %c0_76] : memref<17x16x2xf32, #tpu.memory_space<vmem>>, vector<1x16x2xf32>
    %165 = vector.shape_cast %164 : vector<1x16x2xf32> to vector<16x2xf32>
    %166 = vector.extract_strided_slice %165 {offsets = [0, 0], sizes = [8, 1], strides = [1, 1]} : vector<16x2xf32> to vector<8x1xf32>
    %167 = vector.broadcast %166 : vector<8x1xf32> to vector<8x128xf32>
    %168 = arith.mulf %163, %167 : vector<8x128xf32>
    %c2_77 = arith.constant 2 : index
    %c0_78 = arith.constant 0 : index
    %c0_79 = arith.constant 0 : index
    %169 = vector.load %arg3[%c2_77, %c0_78, %c0_79] : memref<17x16x2xf32, #tpu.memory_space<vmem>>, vector<1x16x2xf32>
    %170 = vector.shape_cast %169 : vector<1x16x2xf32> to vector<16x2xf32>
    %171 = vector.extract_strided_slice %170 {offsets = [0, 1], sizes = [8, 1], strides = [1, 1]} : vector<16x2xf32> to vector<8x1xf32>
    %172 = vector.broadcast %171 : vector<8x1xf32> to vector<8x128xf32>
    %173 = arith.addf %168, %172 : vector<8x128xf32>
    %cst_80 = arith.constant 0.000000e+00 : f32
    %174 = vector.broadcast %cst_80 : f32 to vector<8x128xf32>
    %175 = arith.maximumf %173, %174 : vector<8x128xf32>
    %c127_i32_81 = arith.constant 127 : i32
    %176 = tpu.dynamic_rotate %175 by %c127_i32_81 dim 1 : vector<8x128xf32>, i32 -> vector<8x128xf32>
    %c1_i32_82 = arith.constant 1 : i32
    %177 = vector.broadcast %c1_i32_82 : i32 to vector<1x128xi32>
    %178 = arith.addi %22, %177 : vector<1x128xi32>
    %c0_i32_83 = arith.constant 0 : i32
    %179 = vector.broadcast %c0_i32_83 : i32 to vector<1x128xi32>
    %180 = arith.cmpi sge, %178, %179 : vector<1x128xi32>
    %c1_i32_84 = arith.constant 1 : i32
    %181 = vector.broadcast %c1_i32_84 : i32 to vector<1x128xi32>
    %182 = arith.addi %22, %181 : vector<1x128xi32>
    %c64_i32_85 = arith.constant 64 : i32
    %183 = vector.broadcast %c64_i32_85 : i32 to vector<1x128xi32>
    %184 = arith.cmpi slt, %182, %183 : vector<1x128xi32>
    %185 = arith.andi %180, %184 : vector<1x128xi1>
    %cst_86 = arith.constant 0.000000e+00 : f32
    %186 = vector.shape_cast %185 : vector<1x128xi1> to vector<1x128xi1>
    %187 = vector.broadcast %186 : vector<1x128xi1> to vector<8x128xi1>
    %188 = vector.broadcast %cst_86 : f32 to vector<8x128xf32>
    %189 = arith.select %187, %176, %188 : vector<8x128xi1>, vector<8x128xf32>
    %c126_i32 = arith.constant 126 : i32
    %190 = tpu.dynamic_rotate %175 by %c126_i32 dim 1 : vector<8x128xf32>, i32 -> vector<8x128xf32>
    %c2_i32 = arith.constant 2 : i32
    %191 = vector.broadcast %c2_i32 : i32 to vector<1x128xi32>
    %192 = arith.addi %22, %191 : vector<1x128xi32>
    %c0_i32_87 = arith.constant 0 : i32
    %193 = vector.broadcast %c0_i32_87 : i32 to vector<1x128xi32>
    %194 = arith.cmpi sge, %192, %193 : vector<1x128xi32>
    %c2_i32_88 = arith.constant 2 : i32
    %195 = vector.broadcast %c2_i32_88 : i32 to vector<1x128xi32>
    %196 = arith.addi %22, %195 : vector<1x128xi32>
    %c64_i32_89 = arith.constant 64 : i32
    %197 = vector.broadcast %c64_i32_89 : i32 to vector<1x128xi32>
    %198 = arith.cmpi slt, %196, %197 : vector<1x128xi32>
    %199 = arith.andi %194, %198 : vector<1x128xi1>
    %cst_90 = arith.constant 0.000000e+00 : f32
    %200 = vector.shape_cast %199 : vector<1x128xi1> to vector<1x128xi1>
    %201 = vector.broadcast %200 : vector<1x128xi1> to vector<8x128xi1>
    %202 = vector.broadcast %cst_90 : f32 to vector<8x128xf32>
    %203 = arith.select %201, %190, %202 : vector<8x128xi1>, vector<8x128xf32>
    %204 = tpu.concatenate %175, %189, %203 in 0 : vector<8x128xf32>, vector<8x128xf32>, vector<8x128xf32> -> vector<24x128xf32>
    %c3 = arith.constant 3 : index
    %c0_91 = arith.constant 0 : index
    %c0_92 = arith.constant 0 : index
    %205 = vector.load %arg2[%c3, %c0_91, %c0_92] : memref<18x16x48xbf16, #tpu.memory_space<vmem>>, vector<1x16x48xbf16>
    %206 = vector.shape_cast %205 : vector<1x16x48xbf16> to vector<16x48xbf16>
    %207 = vector.extract_strided_slice %206 {offsets = [0, 0], sizes = [8, 24], strides = [1, 1]} : vector<16x48xbf16> to vector<8x24xbf16>
    %208 = arith.truncf %204 : vector<24x128xf32> to vector<24x128xbf16>
    %cst_93 = arith.constant dense<0.000000e+00> : vector<8x128xf32>
    %209 = tpu.matmul %207, %208, %cst_93 {dimension_numbers = #tpu.dot_dimension_numbers<[1], [0], [0], [1], [0, 0, 1, 1], [], []>} : vector<8x24xbf16>, vector<24x128xbf16>, vector<8x128xf32> -> vector<8x128xf32>
    %c0_94 = arith.constant 0 : index
    %c0_95 = arith.constant 0 : index
    %c0_96 = arith.constant 0 : index
    %210 = vector.load %arg5[%c0_94, %c0_95, %c0_96] : memref<4x128x64xf32, #tpu.memory_space<vmem>>, vector<1x128x64xf32>
    %211 = vector.shape_cast %210 : vector<1x128x64xf32> to vector<128x64xf32>
    %cst_97 = arith.constant dense<0.000000e+00> : vector<8x64xf32>
    %212 = tpu.matmul %209, %211, %cst_97 {dimension_numbers = #tpu.dot_dimension_numbers<[1], [0], [0], [1], [0, 0, 1, 1], [], []>} : vector<8x128xf32>, vector<128x64xf32>, vector<8x64xf32> -> vector<8x64xf32>
    %c3_98 = arith.constant 3 : index
    %c0_99 = arith.constant 0 : index
    %c0_100 = arith.constant 0 : index
    %213 = vector.load %arg4[%c3_98, %c0_99, %c0_100] : memref<18x16x1xf32, #tpu.memory_space<vmem>>, vector<1x16x1xf32>
    %214 = vector.shape_cast %213 : vector<1x16x1xf32> to vector<16x1xf32>
    %215 = vector.extract_strided_slice %214 {offsets = [0, 0], sizes = [8, 1], strides = [1, 1]} : vector<16x1xf32> to vector<8x1xf32>
    %216 = vector.broadcast %215 : vector<8x1xf32> to vector<8x64xf32>
    %217 = arith.addf %212, %216 : vector<8x64xf32>
    %c3_101 = arith.constant 3 : index
    %c0_102 = arith.constant 0 : index
    %c0_103 = arith.constant 0 : index
    %218 = vector.load %arg3[%c3_101, %c0_102, %c0_103] : memref<17x16x2xf32, #tpu.memory_space<vmem>>, vector<1x16x2xf32>
    %219 = vector.shape_cast %218 : vector<1x16x2xf32> to vector<16x2xf32>
    %220 = vector.extract_strided_slice %219 {offsets = [0, 0], sizes = [8, 1], strides = [1, 1]} : vector<16x2xf32> to vector<8x1xf32>
    %221 = vector.broadcast %220 : vector<8x1xf32> to vector<8x64xf32>
    %222 = arith.mulf %217, %221 : vector<8x64xf32>
    %c3_104 = arith.constant 3 : index
    %c0_105 = arith.constant 0 : index
    %c0_106 = arith.constant 0 : index
    %223 = vector.load %arg3[%c3_104, %c0_105, %c0_106] : memref<17x16x2xf32, #tpu.memory_space<vmem>>, vector<1x16x2xf32>
    %224 = vector.shape_cast %223 : vector<1x16x2xf32> to vector<16x2xf32>
    %225 = vector.extract_strided_slice %224 {offsets = [0, 1], sizes = [8, 1], strides = [1, 1]} : vector<16x2xf32> to vector<8x1xf32>
    %226 = vector.broadcast %225 : vector<8x1xf32> to vector<8x64xf32>
    %227 = arith.addf %222, %226 : vector<8x64xf32>
    %cst_107 = arith.constant 0.000000e+00 : f32
    %228 = vector.broadcast %cst_107 : f32 to vector<8x64xf32>
    %229 = arith.maximumf %227, %228 : vector<8x64xf32>
    %c1_i32_108 = arith.constant 1 : i32
    %230 = tpu.dynamic_rotate %229 by %c1_i32_108 dim 1 : vector<8x64xf32>, i32 -> vector<8x64xf32>
    %231 = tpu.iota {dimensions = array<i32: 1>} : vector<1x64xi32>
    %c32_i32 = arith.constant 32 : i32
    %c0_i32_109 = arith.constant 0 : i32
    %232 = arith.cmpi eq, %c32_i32, %c0_i32_109 : i32
    %c1_i32_110 = arith.constant 1 : i32
    %233 = arith.select %232, %c1_i32_110, %c32_i32 : i32
    %234 = vector.broadcast %233 : i32 to vector<1x64xi32>
    %235 = arith.remsi %231, %234 : vector<1x64xi32>
    %c0_i32_111 = arith.constant 0 : i32
    %236 = vector.broadcast %c0_i32_111 : i32 to vector<1x64xi32>
    %237 = arith.cmpi ne, %235, %236 : vector<1x64xi32>
    %c0_i32_112 = arith.constant 0 : i32
    %238 = vector.broadcast %c0_i32_112 : i32 to vector<1x64xi32>
    %239 = arith.cmpi slt, %235, %238 : vector<1x64xi32>
    %c0_i32_113 = arith.constant 0 : i32
    %240 = arith.cmpi slt, %233, %c0_i32_113 : i32
    %241 = vector.broadcast %240 : i1 to vector<1x64xi1>
    %242 = vector.broadcast %241 : vector<1x64xi1> to vector<1x64xi1>
    %243 = arith.xori %239, %242 : vector<1x64xi1>
    %244 = arith.andi %243, %237 : vector<1x64xi1>
    %245 = vector.broadcast %233 : i32 to vector<1x64xi32>
    %246 = arith.addi %235, %245 : vector<1x64xi32>
    %247 = arith.select %244, %246, %235 : vector<1x64xi1>, vector<1x64xi32>
    %c-1_i32_114 = arith.constant -1 : i32
    %248 = vector.broadcast %c-1_i32_114 : i32 to vector<1x64xi32>
    %249 = arith.addi %247, %248 : vector<1x64xi32>
    %c0_i32_115 = arith.constant 0 : i32
    %250 = vector.broadcast %c0_i32_115 : i32 to vector<1x64xi32>
    %251 = arith.cmpi sge, %249, %250 : vector<1x64xi32>
    %c-1_i32_116 = arith.constant -1 : i32
    %252 = vector.broadcast %c-1_i32_116 : i32 to vector<1x64xi32>
    %253 = arith.addi %247, %252 : vector<1x64xi32>
    %c32_i32_117 = arith.constant 32 : i32
    %254 = vector.broadcast %c32_i32_117 : i32 to vector<1x64xi32>
    %255 = arith.cmpi slt, %253, %254 : vector<1x64xi32>
    %256 = arith.andi %251, %255 : vector<1x64xi1>
    %cst_118 = arith.constant 0.000000e+00 : f32
    %257 = vector.shape_cast %256 : vector<1x64xi1> to vector<1x64xi1>
    %258 = vector.broadcast %257 : vector<1x64xi1> to vector<8x64xi1>
    %259 = vector.broadcast %cst_118 : f32 to vector<8x64xf32>
    %260 = arith.select %258, %230, %259 : vector<8x64xi1>, vector<8x64xf32>
    %c63_i32 = arith.constant 63 : i32
    %261 = tpu.dynamic_rotate %229 by %c63_i32 dim 1 : vector<8x64xf32>, i32 -> vector<8x64xf32>
    %c1_i32_119 = arith.constant 1 : i32
    %262 = vector.broadcast %c1_i32_119 : i32 to vector<1x64xi32>
    %263 = arith.addi %247, %262 : vector<1x64xi32>
    %c0_i32_120 = arith.constant 0 : i32
    %264 = vector.broadcast %c0_i32_120 : i32 to vector<1x64xi32>
    %265 = arith.cmpi sge, %263, %264 : vector<1x64xi32>
    %c1_i32_121 = arith.constant 1 : i32
    %266 = vector.broadcast %c1_i32_121 : i32 to vector<1x64xi32>
    %267 = arith.addi %247, %266 : vector<1x64xi32>
    %c32_i32_122 = arith.constant 32 : i32
    %268 = vector.broadcast %c32_i32_122 : i32 to vector<1x64xi32>
    %269 = arith.cmpi slt, %267, %268 : vector<1x64xi32>
    %270 = arith.andi %265, %269 : vector<1x64xi1>
    %cst_123 = arith.constant 0.000000e+00 : f32
    %271 = vector.shape_cast %270 : vector<1x64xi1> to vector<1x64xi1>
    %272 = vector.broadcast %271 : vector<1x64xi1> to vector<8x64xi1>
    %273 = vector.broadcast %cst_123 : f32 to vector<8x64xf32>
    %274 = arith.select %272, %261, %273 : vector<8x64xi1>, vector<8x64xf32>
    %275 = tpu.concatenate %260, %229, %274 in 0 : vector<8x64xf32>, vector<8x64xf32>, vector<8x64xf32> -> vector<24x64xf32>
    %c4 = arith.constant 4 : index
    %c0_124 = arith.constant 0 : index
    %c0_125 = arith.constant 0 : index
    %276 = vector.load %arg2[%c4, %c0_124, %c0_125] : memref<18x16x48xbf16, #tpu.memory_space<vmem>>, vector<1x16x48xbf16>
    %277 = vector.shape_cast %276 : vector<1x16x48xbf16> to vector<16x48xbf16>
    %278 = vector.extract_strided_slice %277 {offsets = [0, 0], sizes = [8, 24], strides = [1, 1]} : vector<16x48xbf16> to vector<8x24xbf16>
    %279 = arith.truncf %275 : vector<24x64xf32> to vector<24x64xbf16>
    %cst_126 = arith.constant dense<0.000000e+00> : vector<8x64xf32>
    %280 = tpu.matmul %278, %279, %cst_126 {dimension_numbers = #tpu.dot_dimension_numbers<[1], [0], [0], [1], [0, 0, 1, 1], [], []>} : vector<8x24xbf16>, vector<24x64xbf16>, vector<8x64xf32> -> vector<8x64xf32>
    %c4_127 = arith.constant 4 : index
    %c0_128 = arith.constant 0 : index
    %c0_129 = arith.constant 0 : index
    %281 = vector.load %arg4[%c4_127, %c0_128, %c0_129] : memref<18x16x1xf32, #tpu.memory_space<vmem>>, vector<1x16x1xf32>
    %282 = vector.shape_cast %281 : vector<1x16x1xf32> to vector<16x1xf32>
    %283 = vector.extract_strided_slice %282 {offsets = [0, 0], sizes = [8, 1], strides = [1, 1]} : vector<16x1xf32> to vector<8x1xf32>
    %284 = vector.broadcast %283 : vector<8x1xf32> to vector<8x64xf32>
    %285 = arith.addf %280, %284 : vector<8x64xf32>
    %c127_i32_130 = arith.constant 127 : i32
    %286 = tpu.dynamic_rotate %163 by %c127_i32_130 dim 1 : vector<8x128xf32>, i32 -> vector<8x128xf32>
    %c1_i32_131 = arith.constant 1 : i32
    %287 = vector.broadcast %c1_i32_131 : i32 to vector<1x128xi32>
    %288 = arith.addi %22, %287 : vector<1x128xi32>
    %c0_i32_132 = arith.constant 0 : i32
    %289 = vector.broadcast %c0_i32_132 : i32 to vector<1x128xi32>
    %290 = arith.cmpi sge, %288, %289 : vector<1x128xi32>
    %c1_i32_133 = arith.constant 1 : i32
    %291 = vector.broadcast %c1_i32_133 : i32 to vector<1x128xi32>
    %292 = arith.addi %22, %291 : vector<1x128xi32>
    %c64_i32_134 = arith.constant 64 : i32
    %293 = vector.broadcast %c64_i32_134 : i32 to vector<1x128xi32>
    %294 = arith.cmpi slt, %292, %293 : vector<1x128xi32>
    %295 = arith.andi %290, %294 : vector<1x128xi1>
    %cst_135 = arith.constant 0.000000e+00 : f32
    %296 = vector.shape_cast %295 : vector<1x128xi1> to vector<1x128xi1>
    %297 = vector.broadcast %296 : vector<1x128xi1> to vector<8x128xi1>
    %298 = vector.broadcast %cst_135 : f32 to vector<8x128xf32>
    %299 = arith.select %297, %286, %298 : vector<8x128xi1>, vector<8x128xf32>
    %300 = arith.maximumf %163, %299 : vector<8x128xf32>
    %c0_136 = arith.constant 0 : index
    %c0_137 = arith.constant 0 : index
    %c0_138 = arith.constant 0 : index
    %301 = vector.load %arg5[%c0_136, %c0_137, %c0_138] : memref<4x128x64xf32, #tpu.memory_space<vmem>>, vector<1x128x64xf32>
    %302 = vector.shape_cast %301 : vector<1x128x64xf32> to vector<128x64xf32>
    %cst_139 = arith.constant dense<0.000000e+00> : vector<8x64xf32>
    %303 = tpu.matmul %300, %302, %cst_139 {dimension_numbers = #tpu.dot_dimension_numbers<[1], [0], [0], [1], [0, 0, 1, 1], [], []>} : vector<8x128xf32>, vector<128x64xf32>, vector<8x64xf32> -> vector<8x64xf32>
    %304 = arith.addf %285, %303 : vector<8x64xf32>
    %c4_140 = arith.constant 4 : index
    %c0_141 = arith.constant 0 : index
    %c0_142 = arith.constant 0 : index
    %305 = vector.load %arg3[%c4_140, %c0_141, %c0_142] : memref<17x16x2xf32, #tpu.memory_space<vmem>>, vector<1x16x2xf32>
    %306 = vector.shape_cast %305 : vector<1x16x2xf32> to vector<16x2xf32>
    %307 = vector.extract_strided_slice %306 {offsets = [0, 0], sizes = [8, 1], strides = [1, 1]} : vector<16x2xf32> to vector<8x1xf32>
    %308 = vector.broadcast %307 : vector<8x1xf32> to vector<8x64xf32>
    %309 = arith.mulf %304, %308 : vector<8x64xf32>
    %c4_143 = arith.constant 4 : index
    %c0_144 = arith.constant 0 : index
    %c0_145 = arith.constant 0 : index
    %310 = vector.load %arg3[%c4_143, %c0_144, %c0_145] : memref<17x16x2xf32, #tpu.memory_space<vmem>>, vector<1x16x2xf32>
    %311 = vector.shape_cast %310 : vector<1x16x2xf32> to vector<16x2xf32>
    %312 = vector.extract_strided_slice %311 {offsets = [0, 1], sizes = [8, 1], strides = [1, 1]} : vector<16x2xf32> to vector<8x1xf32>
    %313 = vector.broadcast %312 : vector<8x1xf32> to vector<8x64xf32>
    %314 = arith.addf %309, %313 : vector<8x64xf32>
    %cst_146 = arith.constant 0.000000e+00 : f32
    %315 = vector.broadcast %cst_146 : f32 to vector<8x64xf32>
    %316 = arith.maximumf %314, %315 : vector<8x64xf32>
    %c1_i32_147 = arith.constant 1 : i32
    %317 = tpu.dynamic_rotate %316 by %c1_i32_147 dim 1 : vector<8x64xf32>, i32 -> vector<8x64xf32>
    %c-1_i32_148 = arith.constant -1 : i32
    %318 = vector.broadcast %c-1_i32_148 : i32 to vector<1x64xi32>
    %319 = arith.addi %247, %318 : vector<1x64xi32>
    %c0_i32_149 = arith.constant 0 : i32
    %320 = vector.broadcast %c0_i32_149 : i32 to vector<1x64xi32>
    %321 = arith.cmpi sge, %319, %320 : vector<1x64xi32>
    %c-1_i32_150 = arith.constant -1 : i32
    %322 = vector.broadcast %c-1_i32_150 : i32 to vector<1x64xi32>
    %323 = arith.addi %247, %322 : vector<1x64xi32>
    %c32_i32_151 = arith.constant 32 : i32
    %324 = vector.broadcast %c32_i32_151 : i32 to vector<1x64xi32>
    %325 = arith.cmpi slt, %323, %324 : vector<1x64xi32>
    %326 = arith.andi %321, %325 : vector<1x64xi1>
    %cst_152 = arith.constant 0.000000e+00 : f32
    %327 = vector.shape_cast %326 : vector<1x64xi1> to vector<1x64xi1>
    %328 = vector.broadcast %327 : vector<1x64xi1> to vector<8x64xi1>
    %329 = vector.broadcast %cst_152 : f32 to vector<8x64xf32>
    %330 = arith.select %328, %317, %329 : vector<8x64xi1>, vector<8x64xf32>
    %c63_i32_153 = arith.constant 63 : i32
    %331 = tpu.dynamic_rotate %316 by %c63_i32_153 dim 1 : vector<8x64xf32>, i32 -> vector<8x64xf32>
    %c1_i32_154 = arith.constant 1 : i32
    %332 = vector.broadcast %c1_i32_154 : i32 to vector<1x64xi32>
    %333 = arith.addi %247, %332 : vector<1x64xi32>
    %c0_i32_155 = arith.constant 0 : i32
    %334 = vector.broadcast %c0_i32_155 : i32 to vector<1x64xi32>
    %335 = arith.cmpi sge, %333, %334 : vector<1x64xi32>
    %c1_i32_156 = arith.constant 1 : i32
    %336 = vector.broadcast %c1_i32_156 : i32 to vector<1x64xi32>
    %337 = arith.addi %247, %336 : vector<1x64xi32>
    %c32_i32_157 = arith.constant 32 : i32
    %338 = vector.broadcast %c32_i32_157 : i32 to vector<1x64xi32>
    %339 = arith.cmpi slt, %337, %338 : vector<1x64xi32>
    %340 = arith.andi %335, %339 : vector<1x64xi1>
    %cst_158 = arith.constant 0.000000e+00 : f32
    %341 = vector.shape_cast %340 : vector<1x64xi1> to vector<1x64xi1>
    %342 = vector.broadcast %341 : vector<1x64xi1> to vector<8x64xi1>
    %343 = vector.broadcast %cst_158 : f32 to vector<8x64xf32>
    %344 = arith.select %342, %331, %343 : vector<8x64xi1>, vector<8x64xf32>
    %345 = tpu.concatenate %330, %316, %344 in 0 : vector<8x64xf32>, vector<8x64xf32>, vector<8x64xf32> -> vector<24x64xf32>
    %c5 = arith.constant 5 : index
    %c0_159 = arith.constant 0 : index
    %c0_160 = arith.constant 0 : index
    %346 = vector.load %arg2[%c5, %c0_159, %c0_160] : memref<18x16x48xbf16, #tpu.memory_space<vmem>>, vector<1x16x48xbf16>
    %347 = vector.shape_cast %346 : vector<1x16x48xbf16> to vector<16x48xbf16>
    %348 = vector.extract_strided_slice %347 {offsets = [0, 0], sizes = [8, 24], strides = [1, 1]} : vector<16x48xbf16> to vector<8x24xbf16>
    %349 = arith.truncf %345 : vector<24x64xf32> to vector<24x64xbf16>
    %cst_161 = arith.constant dense<0.000000e+00> : vector<8x64xf32>
    %350 = tpu.matmul %348, %349, %cst_161 {dimension_numbers = #tpu.dot_dimension_numbers<[1], [0], [0], [1], [0, 0, 1, 1], [], []>} : vector<8x24xbf16>, vector<24x64xbf16>, vector<8x64xf32> -> vector<8x64xf32>
    %c5_162 = arith.constant 5 : index
    %c0_163 = arith.constant 0 : index
    %c0_164 = arith.constant 0 : index
    %351 = vector.load %arg4[%c5_162, %c0_163, %c0_164] : memref<18x16x1xf32, #tpu.memory_space<vmem>>, vector<1x16x1xf32>
    %352 = vector.shape_cast %351 : vector<1x16x1xf32> to vector<16x1xf32>
    %353 = vector.extract_strided_slice %352 {offsets = [0, 0], sizes = [8, 1], strides = [1, 1]} : vector<16x1xf32> to vector<8x1xf32>
    %354 = vector.broadcast %353 : vector<8x1xf32> to vector<8x64xf32>
    %355 = arith.addf %350, %354 : vector<8x64xf32>
    %c5_165 = arith.constant 5 : index
    %c0_166 = arith.constant 0 : index
    %c0_167 = arith.constant 0 : index
    %356 = vector.load %arg3[%c5_165, %c0_166, %c0_167] : memref<17x16x2xf32, #tpu.memory_space<vmem>>, vector<1x16x2xf32>
    %357 = vector.shape_cast %356 : vector<1x16x2xf32> to vector<16x2xf32>
    %358 = vector.extract_strided_slice %357 {offsets = [0, 0], sizes = [8, 1], strides = [1, 1]} : vector<16x2xf32> to vector<8x1xf32>
    %359 = vector.broadcast %358 : vector<8x1xf32> to vector<8x64xf32>
    %360 = arith.mulf %355, %359 : vector<8x64xf32>
    %c5_168 = arith.constant 5 : index
    %c0_169 = arith.constant 0 : index
    %c0_170 = arith.constant 0 : index
    %361 = vector.load %arg3[%c5_168, %c0_169, %c0_170] : memref<17x16x2xf32, #tpu.memory_space<vmem>>, vector<1x16x2xf32>
    %362 = vector.shape_cast %361 : vector<1x16x2xf32> to vector<16x2xf32>
    %363 = vector.extract_strided_slice %362 {offsets = [0, 1], sizes = [8, 1], strides = [1, 1]} : vector<16x2xf32> to vector<8x1xf32>
    %364 = vector.broadcast %363 : vector<8x1xf32> to vector<8x64xf32>
    %365 = arith.addf %360, %364 : vector<8x64xf32>
    %cst_171 = arith.constant 0.000000e+00 : f32
    %366 = vector.broadcast %cst_171 : f32 to vector<8x64xf32>
    %367 = arith.maximumf %365, %366 : vector<8x64xf32>
    %c1_i32_172 = arith.constant 1 : i32
    %368 = tpu.dynamic_rotate %367 by %c1_i32_172 dim 1 : vector<8x64xf32>, i32 -> vector<8x64xf32>
    %c-1_i32_173 = arith.constant -1 : i32
    %369 = vector.broadcast %c-1_i32_173 : i32 to vector<1x64xi32>
    %370 = arith.addi %247, %369 : vector<1x64xi32>
    %c0_i32_174 = arith.constant 0 : i32
    %371 = vector.broadcast %c0_i32_174 : i32 to vector<1x64xi32>
    %372 = arith.cmpi sge, %370, %371 : vector<1x64xi32>
    %c-1_i32_175 = arith.constant -1 : i32
    %373 = vector.broadcast %c-1_i32_175 : i32 to vector<1x64xi32>
    %374 = arith.addi %247, %373 : vector<1x64xi32>
    %c32_i32_176 = arith.constant 32 : i32
    %375 = vector.broadcast %c32_i32_176 : i32 to vector<1x64xi32>
    %376 = arith.cmpi slt, %374, %375 : vector<1x64xi32>
    %377 = arith.andi %372, %376 : vector<1x64xi1>
    %cst_177 = arith.constant 0.000000e+00 : f32
    %378 = vector.shape_cast %377 : vector<1x64xi1> to vector<1x64xi1>
    %379 = vector.broadcast %378 : vector<1x64xi1> to vector<8x64xi1>
    %380 = vector.broadcast %cst_177 : f32 to vector<8x64xf32>
    %381 = arith.select %379, %368, %380 : vector<8x64xi1>, vector<8x64xf32>
    %c63_i32_178 = arith.constant 63 : i32
    %382 = tpu.dynamic_rotate %367 by %c63_i32_178 dim 1 : vector<8x64xf32>, i32 -> vector<8x64xf32>
    %c1_i32_179 = arith.constant 1 : i32
    %383 = vector.broadcast %c1_i32_179 : i32 to vector<1x64xi32>
    %384 = arith.addi %247, %383 : vector<1x64xi32>
    %c0_i32_180 = arith.constant 0 : i32
    %385 = vector.broadcast %c0_i32_180 : i32 to vector<1x64xi32>
    %386 = arith.cmpi sge, %384, %385 : vector<1x64xi32>
    %c1_i32_181 = arith.constant 1 : i32
    %387 = vector.broadcast %c1_i32_181 : i32 to vector<1x64xi32>
    %388 = arith.addi %247, %387 : vector<1x64xi32>
    %c32_i32_182 = arith.constant 32 : i32
    %389 = vector.broadcast %c32_i32_182 : i32 to vector<1x64xi32>
    %390 = arith.cmpi slt, %388, %389 : vector<1x64xi32>
    %391 = arith.andi %386, %390 : vector<1x64xi1>
    %cst_183 = arith.constant 0.000000e+00 : f32
    %392 = vector.shape_cast %391 : vector<1x64xi1> to vector<1x64xi1>
    %393 = vector.broadcast %392 : vector<1x64xi1> to vector<8x64xi1>
    %394 = vector.broadcast %cst_183 : f32 to vector<8x64xf32>
    %395 = arith.select %393, %382, %394 : vector<8x64xi1>, vector<8x64xf32>
    %396 = tpu.concatenate %381, %367, %395 in 0 : vector<8x64xf32>, vector<8x64xf32>, vector<8x64xf32> -> vector<24x64xf32>
    %c6 = arith.constant 6 : index
    %c0_184 = arith.constant 0 : index
    %c0_185 = arith.constant 0 : index
    %397 = vector.load %arg2[%c6, %c0_184, %c0_185] : memref<18x16x48xbf16, #tpu.memory_space<vmem>>, vector<1x16x48xbf16>
    %398 = vector.shape_cast %397 : vector<1x16x48xbf16> to vector<16x48xbf16>
    %399 = vector.extract_strided_slice %398 {offsets = [0, 0], sizes = [8, 24], strides = [1, 1]} : vector<16x48xbf16> to vector<8x24xbf16>
    %400 = arith.truncf %396 : vector<24x64xf32> to vector<24x64xbf16>
    %cst_186 = arith.constant dense<0.000000e+00> : vector<8x64xf32>
    %401 = tpu.matmul %399, %400, %cst_186 {dimension_numbers = #tpu.dot_dimension_numbers<[1], [0], [0], [1], [0, 0, 1, 1], [], []>} : vector<8x24xbf16>, vector<24x64xbf16>, vector<8x64xf32> -> vector<8x64xf32>
    %c6_187 = arith.constant 6 : index
    %c0_188 = arith.constant 0 : index
    %c0_189 = arith.constant 0 : index
    %402 = vector.load %arg4[%c6_187, %c0_188, %c0_189] : memref<18x16x1xf32, #tpu.memory_space<vmem>>, vector<1x16x1xf32>
    %403 = vector.shape_cast %402 : vector<1x16x1xf32> to vector<16x1xf32>
    %404 = vector.extract_strided_slice %403 {offsets = [0, 0], sizes = [8, 1], strides = [1, 1]} : vector<16x1xf32> to vector<8x1xf32>
    %405 = vector.broadcast %404 : vector<8x1xf32> to vector<8x64xf32>
    %406 = arith.addf %401, %405 : vector<8x64xf32>
    %407 = arith.addf %406, %304 : vector<8x64xf32>
    %c6_190 = arith.constant 6 : index
    %c0_191 = arith.constant 0 : index
    %c0_192 = arith.constant 0 : index
    %408 = vector.load %arg3[%c6_190, %c0_191, %c0_192] : memref<17x16x2xf32, #tpu.memory_space<vmem>>, vector<1x16x2xf32>
    %409 = vector.shape_cast %408 : vector<1x16x2xf32> to vector<16x2xf32>
    %410 = vector.extract_strided_slice %409 {offsets = [0, 0], sizes = [8, 1], strides = [1, 1]} : vector<16x2xf32> to vector<8x1xf32>
    %411 = vector.broadcast %410 : vector<8x1xf32> to vector<8x64xf32>
    %412 = arith.mulf %407, %411 : vector<8x64xf32>
    %c6_193 = arith.constant 6 : index
    %c0_194 = arith.constant 0 : index
    %c0_195 = arith.constant 0 : index
    %413 = vector.load %arg3[%c6_193, %c0_194, %c0_195] : memref<17x16x2xf32, #tpu.memory_space<vmem>>, vector<1x16x2xf32>
    %414 = vector.shape_cast %413 : vector<1x16x2xf32> to vector<16x2xf32>
    %415 = vector.extract_strided_slice %414 {offsets = [0, 1], sizes = [8, 1], strides = [1, 1]} : vector<16x2xf32> to vector<8x1xf32>
    %416 = vector.broadcast %415 : vector<8x1xf32> to vector<8x64xf32>
    %417 = arith.addf %412, %416 : vector<8x64xf32>
    %cst_196 = arith.constant 0.000000e+00 : f32
    %418 = vector.broadcast %cst_196 : f32 to vector<8x64xf32>
    %419 = arith.maximumf %417, %418 : vector<8x64xf32>
    %c63_i32_197 = arith.constant 63 : i32
    %420 = tpu.dynamic_rotate %419 by %c63_i32_197 dim 1 : vector<8x64xf32>, i32 -> vector<8x64xf32>
    %c1_i32_198 = arith.constant 1 : i32
    %421 = vector.broadcast %c1_i32_198 : i32 to vector<1x64xi32>
    %422 = arith.addi %247, %421 : vector<1x64xi32>
    %c0_i32_199 = arith.constant 0 : i32
    %423 = vector.broadcast %c0_i32_199 : i32 to vector<1x64xi32>
    %424 = arith.cmpi sge, %422, %423 : vector<1x64xi32>
    %c1_i32_200 = arith.constant 1 : i32
    %425 = vector.broadcast %c1_i32_200 : i32 to vector<1x64xi32>
    %426 = arith.addi %247, %425 : vector<1x64xi32>
    %c32_i32_201 = arith.constant 32 : i32
    %427 = vector.broadcast %c32_i32_201 : i32 to vector<1x64xi32>
    %428 = arith.cmpi slt, %426, %427 : vector<1x64xi32>
    %429 = arith.andi %424, %428 : vector<1x64xi1>
    %cst_202 = arith.constant 0.000000e+00 : f32
    %430 = vector.shape_cast %429 : vector<1x64xi1> to vector<1x64xi1>
    %431 = vector.broadcast %430 : vector<1x64xi1> to vector<8x64xi1>
    %432 = vector.broadcast %cst_202 : f32 to vector<8x64xf32>
    %433 = arith.select %431, %420, %432 : vector<8x64xi1>, vector<8x64xf32>
    %c62_i32 = arith.constant 62 : i32
    %434 = tpu.dynamic_rotate %419 by %c62_i32 dim 1 : vector<8x64xf32>, i32 -> vector<8x64xf32>
    %c2_i32_203 = arith.constant 2 : i32
    %435 = vector.broadcast %c2_i32_203 : i32 to vector<1x64xi32>
    %436 = arith.addi %247, %435 : vector<1x64xi32>
    %c0_i32_204 = arith.constant 0 : i32
    %437 = vector.broadcast %c0_i32_204 : i32 to vector<1x64xi32>
    %438 = arith.cmpi sge, %436, %437 : vector<1x64xi32>
    %c2_i32_205 = arith.constant 2 : i32
    %439 = vector.broadcast %c2_i32_205 : i32 to vector<1x64xi32>
    %440 = arith.addi %247, %439 : vector<1x64xi32>
    %c32_i32_206 = arith.constant 32 : i32
    %441 = vector.broadcast %c32_i32_206 : i32 to vector<1x64xi32>
    %442 = arith.cmpi slt, %440, %441 : vector<1x64xi32>
    %443 = arith.andi %438, %442 : vector<1x64xi1>
    %cst_207 = arith.constant 0.000000e+00 : f32
    %444 = vector.shape_cast %443 : vector<1x64xi1> to vector<1x64xi1>
    %445 = vector.broadcast %444 : vector<1x64xi1> to vector<8x64xi1>
    %446 = vector.broadcast %cst_207 : f32 to vector<8x64xf32>
    %447 = arith.select %445, %434, %446 : vector<8x64xi1>, vector<8x64xf32>
    %448 = tpu.concatenate %419, %433, %447 in 0 : vector<8x64xf32>, vector<8x64xf32>, vector<8x64xf32> -> vector<24x64xf32>
    %c7 = arith.constant 7 : index
    %c0_208 = arith.constant 0 : index
    %c0_209 = arith.constant 0 : index
    %449 = vector.load %arg2[%c7, %c0_208, %c0_209] : memref<18x16x48xbf16, #tpu.memory_space<vmem>>, vector<1x16x48xbf16>
    %450 = vector.shape_cast %449 : vector<1x16x48xbf16> to vector<16x48xbf16>
    %451 = vector.extract_strided_slice %450 {offsets = [0, 0], sizes = [8, 24], strides = [1, 1]} : vector<16x48xbf16> to vector<8x24xbf16>
    %452 = arith.truncf %448 : vector<24x64xf32> to vector<24x64xbf16>
    %cst_210 = arith.constant dense<0.000000e+00> : vector<8x64xf32>
    %453 = tpu.matmul %451, %452, %cst_210 {dimension_numbers = #tpu.dot_dimension_numbers<[1], [0], [0], [1], [0, 0, 1, 1], [], []>} : vector<8x24xbf16>, vector<24x64xbf16>, vector<8x64xf32> -> vector<8x64xf32>
    %c1_211 = arith.constant 1 : index
    %c0_212 = arith.constant 0 : index
    %c0_213 = arith.constant 0 : index
    %454 = vector.load %arg5[%c1_211, %c0_212, %c0_213] : memref<4x128x64xf32, #tpu.memory_space<vmem>>, vector<1x128x64xf32>
    %455 = vector.shape_cast %454 : vector<1x128x64xf32> to vector<128x64xf32>
    %456 = vector.extract_strided_slice %455 {offsets = [0, 0], sizes = [64, 32], strides = [1, 1]} : vector<128x64xf32> to vector<64x32xf32>
    %cst_214 = arith.constant dense<0.000000e+00> : vector<8x32xf32>
    %457 = tpu.matmul %453, %456, %cst_214 {dimension_numbers = #tpu.dot_dimension_numbers<[1], [0], [0], [1], [0, 0, 1, 1], [], []>} : vector<8x64xf32>, vector<64x32xf32>, vector<8x32xf32> -> vector<8x32xf32>
    %c7_215 = arith.constant 7 : index
    %c0_216 = arith.constant 0 : index
    %c0_217 = arith.constant 0 : index
    %458 = vector.load %arg4[%c7_215, %c0_216, %c0_217] : memref<18x16x1xf32, #tpu.memory_space<vmem>>, vector<1x16x1xf32>
    %459 = vector.shape_cast %458 : vector<1x16x1xf32> to vector<16x1xf32>
    %460 = vector.extract_strided_slice %459 {offsets = [0, 0], sizes = [8, 1], strides = [1, 1]} : vector<16x1xf32> to vector<8x1xf32>
    %461 = vector.broadcast %460 : vector<8x1xf32> to vector<8x32xf32>
    %462 = arith.addf %457, %461 : vector<8x32xf32>
    %c7_218 = arith.constant 7 : index
    %c0_219 = arith.constant 0 : index
    %c0_220 = arith.constant 0 : index
    %463 = vector.load %arg3[%c7_218, %c0_219, %c0_220] : memref<17x16x2xf32, #tpu.memory_space<vmem>>, vector<1x16x2xf32>
    %464 = vector.shape_cast %463 : vector<1x16x2xf32> to vector<16x2xf32>
    %465 = vector.extract_strided_slice %464 {offsets = [0, 0], sizes = [8, 1], strides = [1, 1]} : vector<16x2xf32> to vector<8x1xf32>
    %466 = vector.broadcast %465 : vector<8x1xf32> to vector<8x32xf32>
    %467 = arith.mulf %462, %466 : vector<8x32xf32>
    %c7_221 = arith.constant 7 : index
    %c0_222 = arith.constant 0 : index
    %c0_223 = arith.constant 0 : index
    %468 = vector.load %arg3[%c7_221, %c0_222, %c0_223] : memref<17x16x2xf32, #tpu.memory_space<vmem>>, vector<1x16x2xf32>
    %469 = vector.shape_cast %468 : vector<1x16x2xf32> to vector<16x2xf32>
    %470 = vector.extract_strided_slice %469 {offsets = [0, 1], sizes = [8, 1], strides = [1, 1]} : vector<16x2xf32> to vector<8x1xf32>
    %471 = vector.broadcast %470 : vector<8x1xf32> to vector<8x32xf32>
    %472 = arith.addf %467, %471 : vector<8x32xf32>
    %cst_224 = arith.constant 0.000000e+00 : f32
    %473 = vector.broadcast %cst_224 : f32 to vector<8x32xf32>
    %474 = arith.maximumf %472, %473 : vector<8x32xf32>
    %c1_i32_225 = arith.constant 1 : i32
    %475 = tpu.dynamic_rotate %474 by %c1_i32_225 dim 1 : vector<8x32xf32>, i32 -> vector<8x32xf32>
    %476 = tpu.iota {dimensions = array<i32: 1>} : vector<1x32xi32>
    %c16_i32 = arith.constant 16 : i32
    %c0_i32_226 = arith.constant 0 : i32
    %477 = arith.cmpi eq, %c16_i32, %c0_i32_226 : i32
    %c1_i32_227 = arith.constant 1 : i32
    %478 = arith.select %477, %c1_i32_227, %c16_i32 : i32
    %479 = vector.broadcast %478 : i32 to vector<1x32xi32>
    %480 = arith.remsi %476, %479 : vector<1x32xi32>
    %c0_i32_228 = arith.constant 0 : i32
    %481 = vector.broadcast %c0_i32_228 : i32 to vector<1x32xi32>
    %482 = arith.cmpi ne, %480, %481 : vector<1x32xi32>
    %c0_i32_229 = arith.constant 0 : i32
    %483 = vector.broadcast %c0_i32_229 : i32 to vector<1x32xi32>
    %484 = arith.cmpi slt, %480, %483 : vector<1x32xi32>
    %c0_i32_230 = arith.constant 0 : i32
    %485 = arith.cmpi slt, %478, %c0_i32_230 : i32
    %486 = vector.broadcast %485 : i1 to vector<1x32xi1>
    %487 = vector.broadcast %486 : vector<1x32xi1> to vector<1x32xi1>
    %488 = arith.xori %484, %487 : vector<1x32xi1>
    %489 = arith.andi %488, %482 : vector<1x32xi1>
    %490 = vector.broadcast %478 : i32 to vector<1x32xi32>
    %491 = arith.addi %480, %490 : vector<1x32xi32>
    %492 = arith.select %489, %491, %480 : vector<1x32xi1>, vector<1x32xi32>
    %c-1_i32_231 = arith.constant -1 : i32
    %493 = vector.broadcast %c-1_i32_231 : i32 to vector<1x32xi32>
    %494 = arith.addi %492, %493 : vector<1x32xi32>
    %c0_i32_232 = arith.constant 0 : i32
    %495 = vector.broadcast %c0_i32_232 : i32 to vector<1x32xi32>
    %496 = arith.cmpi sge, %494, %495 : vector<1x32xi32>
    %c-1_i32_233 = arith.constant -1 : i32
    %497 = vector.broadcast %c-1_i32_233 : i32 to vector<1x32xi32>
    %498 = arith.addi %492, %497 : vector<1x32xi32>
    %c16_i32_234 = arith.constant 16 : i32
    %499 = vector.broadcast %c16_i32_234 : i32 to vector<1x32xi32>
    %500 = arith.cmpi slt, %498, %499 : vector<1x32xi32>
    %501 = arith.andi %496, %500 : vector<1x32xi1>
    %cst_235 = arith.constant 0.000000e+00 : f32
    %502 = vector.shape_cast %501 : vector<1x32xi1> to vector<1x32xi1>
    %503 = vector.broadcast %502 : vector<1x32xi1> to vector<8x32xi1>
    %504 = vector.broadcast %cst_235 : f32 to vector<8x32xf32>
    %505 = arith.select %503, %475, %504 : vector<8x32xi1>, vector<8x32xf32>
    %c31_i32 = arith.constant 31 : i32
    %506 = tpu.dynamic_rotate %474 by %c31_i32 dim 1 : vector<8x32xf32>, i32 -> vector<8x32xf32>
    %c1_i32_236 = arith.constant 1 : i32
    %507 = vector.broadcast %c1_i32_236 : i32 to vector<1x32xi32>
    %508 = arith.addi %492, %507 : vector<1x32xi32>
    %c0_i32_237 = arith.constant 0 : i32
    %509 = vector.broadcast %c0_i32_237 : i32 to vector<1x32xi32>
    %510 = arith.cmpi sge, %508, %509 : vector<1x32xi32>
    %c1_i32_238 = arith.constant 1 : i32
    %511 = vector.broadcast %c1_i32_238 : i32 to vector<1x32xi32>
    %512 = arith.addi %492, %511 : vector<1x32xi32>
    %c16_i32_239 = arith.constant 16 : i32
    %513 = vector.broadcast %c16_i32_239 : i32 to vector<1x32xi32>
    %514 = arith.cmpi slt, %512, %513 : vector<1x32xi32>
    %515 = arith.andi %510, %514 : vector<1x32xi1>
    %cst_240 = arith.constant 0.000000e+00 : f32
    %516 = vector.shape_cast %515 : vector<1x32xi1> to vector<1x32xi1>
    %517 = vector.broadcast %516 : vector<1x32xi1> to vector<8x32xi1>
    %518 = vector.broadcast %cst_240 : f32 to vector<8x32xf32>
    %519 = arith.select %517, %506, %518 : vector<8x32xi1>, vector<8x32xf32>
    %520 = tpu.concatenate %505, %474, %519 in 0 : vector<8x32xf32>, vector<8x32xf32>, vector<8x32xf32> -> vector<24x32xf32>
    %c8 = arith.constant 8 : index
    %c0_241 = arith.constant 0 : index
    %c0_242 = arith.constant 0 : index
    %521 = vector.load %arg2[%c8, %c0_241, %c0_242] : memref<18x16x48xbf16, #tpu.memory_space<vmem>>, vector<1x16x48xbf16>
    %522 = vector.shape_cast %521 : vector<1x16x48xbf16> to vector<16x48xbf16>
    %523 = vector.extract_strided_slice %522 {offsets = [0, 0], sizes = [8, 24], strides = [1, 1]} : vector<16x48xbf16> to vector<8x24xbf16>
    %524 = arith.truncf %520 : vector<24x32xf32> to vector<24x32xbf16>
    %cst_243 = arith.constant dense<0.000000e+00> : vector<8x32xf32>
    %525 = tpu.matmul %523, %524, %cst_243 {dimension_numbers = #tpu.dot_dimension_numbers<[1], [0], [0], [1], [0, 0, 1, 1], [], []>} : vector<8x24xbf16>, vector<24x32xbf16>, vector<8x32xf32> -> vector<8x32xf32>
    %c8_244 = arith.constant 8 : index
    %c0_245 = arith.constant 0 : index
    %c0_246 = arith.constant 0 : index
    %526 = vector.load %arg4[%c8_244, %c0_245, %c0_246] : memref<18x16x1xf32, #tpu.memory_space<vmem>>, vector<1x16x1xf32>
    %527 = vector.shape_cast %526 : vector<1x16x1xf32> to vector<16x1xf32>
    %528 = vector.extract_strided_slice %527 {offsets = [0, 0], sizes = [8, 1], strides = [1, 1]} : vector<16x1xf32> to vector<8x1xf32>
    %529 = vector.broadcast %528 : vector<8x1xf32> to vector<8x32xf32>
    %530 = arith.addf %525, %529 : vector<8x32xf32>
    %c63_i32_247 = arith.constant 63 : i32
    %531 = tpu.dynamic_rotate %407 by %c63_i32_247 dim 1 : vector<8x64xf32>, i32 -> vector<8x64xf32>
    %c1_i32_248 = arith.constant 1 : i32
    %532 = vector.broadcast %c1_i32_248 : i32 to vector<1x64xi32>
    %533 = arith.addi %247, %532 : vector<1x64xi32>
    %c0_i32_249 = arith.constant 0 : i32
    %534 = vector.broadcast %c0_i32_249 : i32 to vector<1x64xi32>
    %535 = arith.cmpi sge, %533, %534 : vector<1x64xi32>
    %c1_i32_250 = arith.constant 1 : i32
    %536 = vector.broadcast %c1_i32_250 : i32 to vector<1x64xi32>
    %537 = arith.addi %247, %536 : vector<1x64xi32>
    %c32_i32_251 = arith.constant 32 : i32
    %538 = vector.broadcast %c32_i32_251 : i32 to vector<1x64xi32>
    %539 = arith.cmpi slt, %537, %538 : vector<1x64xi32>
    %540 = arith.andi %535, %539 : vector<1x64xi1>
    %cst_252 = arith.constant 0.000000e+00 : f32
    %541 = vector.shape_cast %540 : vector<1x64xi1> to vector<1x64xi1>
    %542 = vector.broadcast %541 : vector<1x64xi1> to vector<8x64xi1>
    %543 = vector.broadcast %cst_252 : f32 to vector<8x64xf32>
    %544 = arith.select %542, %531, %543 : vector<8x64xi1>, vector<8x64xf32>
    %545 = arith.maximumf %407, %544 : vector<8x64xf32>
    %c1_253 = arith.constant 1 : index
    %c0_254 = arith.constant 0 : index
    %c0_255 = arith.constant 0 : index
    %546 = vector.load %arg5[%c1_253, %c0_254, %c0_255] : memref<4x128x64xf32, #tpu.memory_space<vmem>>, vector<1x128x64xf32>
    %547 = vector.shape_cast %546 : vector<1x128x64xf32> to vector<128x64xf32>
    %548 = vector.extract_strided_slice %547 {offsets = [0, 0], sizes = [64, 32], strides = [1, 1]} : vector<128x64xf32> to vector<64x32xf32>
    %cst_256 = arith.constant dense<0.000000e+00> : vector<8x32xf32>
    %549 = tpu.matmul %545, %548, %cst_256 {dimension_numbers = #tpu.dot_dimension_numbers<[1], [0], [0], [1], [0, 0, 1, 1], [], []>} : vector<8x64xf32>, vector<64x32xf32>, vector<8x32xf32> -> vector<8x32xf32>
    %550 = arith.addf %530, %549 : vector<8x32xf32>
    %c8_257 = arith.constant 8 : index
    %c0_258 = arith.constant 0 : index
    %c0_259 = arith.constant 0 : index
    %551 = vector.load %arg3[%c8_257, %c0_258, %c0_259] : memref<17x16x2xf32, #tpu.memory_space<vmem>>, vector<1x16x2xf32>
    %552 = vector.shape_cast %551 : vector<1x16x2xf32> to vector<16x2xf32>
    %553 = vector.extract_strided_slice %552 {offsets = [0, 0], sizes = [8, 1], strides = [1, 1]} : vector<16x2xf32> to vector<8x1xf32>
    %554 = vector.broadcast %553 : vector<8x1xf32> to vector<8x32xf32>
    %555 = arith.mulf %550, %554 : vector<8x32xf32>
    %c8_260 = arith.constant 8 : index
    %c0_261 = arith.constant 0 : index
    %c0_262 = arith.constant 0 : index
    %556 = vector.load %arg3[%c8_260, %c0_261, %c0_262] : memref<17x16x2xf32, #tpu.memory_space<vmem>>, vector<1x16x2xf32>
    %557 = vector.shape_cast %556 : vector<1x16x2xf32> to vector<16x2xf32>
    %558 = vector.extract_strided_slice %557 {offsets = [0, 1], sizes = [8, 1], strides = [1, 1]} : vector<16x2xf32> to vector<8x1xf32>
    %559 = vector.broadcast %558 : vector<8x1xf32> to vector<8x32xf32>
    %560 = arith.addf %555, %559 : vector<8x32xf32>
    %cst_263 = arith.constant 0.000000e+00 : f32
    %561 = vector.broadcast %cst_263 : f32 to vector<8x32xf32>
    %562 = arith.maximumf %560, %561 : vector<8x32xf32>
    %c1_i32_264 = arith.constant 1 : i32
    %563 = tpu.dynamic_rotate %562 by %c1_i32_264 dim 1 : vector<8x32xf32>, i32 -> vector<8x32xf32>
    %c-1_i32_265 = arith.constant -1 : i32
    %564 = vector.broadcast %c-1_i32_265 : i32 to vector<1x32xi32>
    %565 = arith.addi %492, %564 : vector<1x32xi32>
    %c0_i32_266 = arith.constant 0 : i32
    %566 = vector.broadcast %c0_i32_266 : i32 to vector<1x32xi32>
    %567 = arith.cmpi sge, %565, %566 : vector<1x32xi32>
    %c-1_i32_267 = arith.constant -1 : i32
    %568 = vector.broadcast %c-1_i32_267 : i32 to vector<1x32xi32>
    %569 = arith.addi %492, %568 : vector<1x32xi32>
    %c16_i32_268 = arith.constant 16 : i32
    %570 = vector.broadcast %c16_i32_268 : i32 to vector<1x32xi32>
    %571 = arith.cmpi slt, %569, %570 : vector<1x32xi32>
    %572 = arith.andi %567, %571 : vector<1x32xi1>
    %cst_269 = arith.constant 0.000000e+00 : f32
    %573 = vector.shape_cast %572 : vector<1x32xi1> to vector<1x32xi1>
    %574 = vector.broadcast %573 : vector<1x32xi1> to vector<8x32xi1>
    %575 = vector.broadcast %cst_269 : f32 to vector<8x32xf32>
    %576 = arith.select %574, %563, %575 : vector<8x32xi1>, vector<8x32xf32>
    %c31_i32_270 = arith.constant 31 : i32
    %577 = tpu.dynamic_rotate %562 by %c31_i32_270 dim 1 : vector<8x32xf32>, i32 -> vector<8x32xf32>
    %c1_i32_271 = arith.constant 1 : i32
    %578 = vector.broadcast %c1_i32_271 : i32 to vector<1x32xi32>
    %579 = arith.addi %492, %578 : vector<1x32xi32>
    %c0_i32_272 = arith.constant 0 : i32
    %580 = vector.broadcast %c0_i32_272 : i32 to vector<1x32xi32>
    %581 = arith.cmpi sge, %579, %580 : vector<1x32xi32>
    %c1_i32_273 = arith.constant 1 : i32
    %582 = vector.broadcast %c1_i32_273 : i32 to vector<1x32xi32>
    %583 = arith.addi %492, %582 : vector<1x32xi32>
    %c16_i32_274 = arith.constant 16 : i32
    %584 = vector.broadcast %c16_i32_274 : i32 to vector<1x32xi32>
    %585 = arith.cmpi slt, %583, %584 : vector<1x32xi32>
    %586 = arith.andi %581, %585 : vector<1x32xi1>
    %cst_275 = arith.constant 0.000000e+00 : f32
    %587 = vector.shape_cast %586 : vector<1x32xi1> to vector<1x32xi1>
    %588 = vector.broadcast %587 : vector<1x32xi1> to vector<8x32xi1>
    %589 = vector.broadcast %cst_275 : f32 to vector<8x32xf32>
    %590 = arith.select %588, %577, %589 : vector<8x32xi1>, vector<8x32xf32>
    %591 = tpu.concatenate %576, %562, %590 in 0 : vector<8x32xf32>, vector<8x32xf32>, vector<8x32xf32> -> vector<24x32xf32>
    %c9 = arith.constant 9 : index
    %c0_276 = arith.constant 0 : index
    %c0_277 = arith.constant 0 : index
    %592 = vector.load %arg2[%c9, %c0_276, %c0_277] : memref<18x16x48xbf16, #tpu.memory_space<vmem>>, vector<1x16x48xbf16>
    %593 = vector.shape_cast %592 : vector<1x16x48xbf16> to vector<16x48xbf16>
    %594 = vector.extract_strided_slice %593 {offsets = [0, 0], sizes = [16, 24], strides = [1, 1]} : vector<16x48xbf16> to vector<16x24xbf16>
    %595 = arith.truncf %591 : vector<24x32xf32> to vector<24x32xbf16>
    %cst_278 = arith.constant dense<0.000000e+00> : vector<16x32xf32>
    %596 = tpu.matmul %594, %595, %cst_278 {dimension_numbers = #tpu.dot_dimension_numbers<[1], [0], [0], [1], [0, 0, 1, 1], [], []>} : vector<16x24xbf16>, vector<24x32xbf16>, vector<16x32xf32> -> vector<16x32xf32>
    %c9_279 = arith.constant 9 : index
    %c0_280 = arith.constant 0 : index
    %c0_281 = arith.constant 0 : index
    %597 = vector.load %arg4[%c9_279, %c0_280, %c0_281] : memref<18x16x1xf32, #tpu.memory_space<vmem>>, vector<1x16x1xf32>
    %598 = vector.shape_cast %597 : vector<1x16x1xf32> to vector<16x1xf32>
    %599 = vector.broadcast %598 : vector<16x1xf32> to vector<16x32xf32>
    %600 = arith.addf %596, %599 : vector<16x32xf32>
    %c9_282 = arith.constant 9 : index
    %c0_283 = arith.constant 0 : index
    %c0_284 = arith.constant 0 : index
    %601 = vector.load %arg3[%c9_282, %c0_283, %c0_284] : memref<17x16x2xf32, #tpu.memory_space<vmem>>, vector<1x16x2xf32>
    %602 = vector.shape_cast %601 : vector<1x16x2xf32> to vector<16x2xf32>
    %603 = vector.extract_strided_slice %602 {offsets = [0, 0], sizes = [16, 1], strides = [1, 1]} : vector<16x2xf32> to vector<16x1xf32>
    %604 = vector.broadcast %603 : vector<16x1xf32> to vector<16x32xf32>
    %605 = arith.mulf %600, %604 : vector<16x32xf32>
    %c9_285 = arith.constant 9 : index
    %c0_286 = arith.constant 0 : index
    %c0_287 = arith.constant 0 : index
    %606 = vector.load %arg3[%c9_285, %c0_286, %c0_287] : memref<17x16x2xf32, #tpu.memory_space<vmem>>, vector<1x16x2xf32>
    %607 = vector.shape_cast %606 : vector<1x16x2xf32> to vector<16x2xf32>
    %608 = vector.extract_strided_slice %607 {offsets = [0, 1], sizes = [16, 1], strides = [1, 1]} : vector<16x2xf32> to vector<16x1xf32>
    %609 = vector.broadcast %608 : vector<16x1xf32> to vector<16x32xf32>
    %610 = arith.addf %605, %609 : vector<16x32xf32>
    %cst_288 = arith.constant 0.000000e+00 : f32
    %611 = vector.broadcast %cst_288 : f32 to vector<16x32xf32>
    %612 = arith.maximumf %610, %611 : vector<16x32xf32>
    %c1_i32_289 = arith.constant 1 : i32
    %613 = tpu.dynamic_rotate %612 by %c1_i32_289 dim 1 : vector<16x32xf32>, i32 -> vector<16x32xf32>
    %c-1_i32_290 = arith.constant -1 : i32
    %614 = vector.broadcast %c-1_i32_290 : i32 to vector<1x32xi32>
    %615 = arith.addi %492, %614 : vector<1x32xi32>
    %c0_i32_291 = arith.constant 0 : i32
    %616 = vector.broadcast %c0_i32_291 : i32 to vector<1x32xi32>
    %617 = arith.cmpi sge, %615, %616 : vector<1x32xi32>
    %c-1_i32_292 = arith.constant -1 : i32
    %618 = vector.broadcast %c-1_i32_292 : i32 to vector<1x32xi32>
    %619 = arith.addi %492, %618 : vector<1x32xi32>
    %c16_i32_293 = arith.constant 16 : i32
    %620 = vector.broadcast %c16_i32_293 : i32 to vector<1x32xi32>
    %621 = arith.cmpi slt, %619, %620 : vector<1x32xi32>
    %622 = arith.andi %617, %621 : vector<1x32xi1>
    %cst_294 = arith.constant 0.000000e+00 : f32
    %623 = vector.shape_cast %622 : vector<1x32xi1> to vector<1x32xi1>
    %624 = vector.broadcast %623 : vector<1x32xi1> to vector<16x32xi1>
    %625 = vector.broadcast %cst_294 : f32 to vector<16x32xf32>
    %626 = arith.select %624, %613, %625 : vector<16x32xi1>, vector<16x32xf32>
    %c31_i32_295 = arith.constant 31 : i32
    %627 = tpu.dynamic_rotate %612 by %c31_i32_295 dim 1 : vector<16x32xf32>, i32 -> vector<16x32xf32>
    %c1_i32_296 = arith.constant 1 : i32
    %628 = vector.broadcast %c1_i32_296 : i32 to vector<1x32xi32>
    %629 = arith.addi %492, %628 : vector<1x32xi32>
    %c0_i32_297 = arith.constant 0 : i32
    %630 = vector.broadcast %c0_i32_297 : i32 to vector<1x32xi32>
    %631 = arith.cmpi sge, %629, %630 : vector<1x32xi32>
    %c1_i32_298 = arith.constant 1 : i32
    %632 = vector.broadcast %c1_i32_298 : i32 to vector<1x32xi32>
    %633 = arith.addi %492, %632 : vector<1x32xi32>
    %c16_i32_299 = arith.constant 16 : i32
    %634 = vector.broadcast %c16_i32_299 : i32 to vector<1x32xi32>
    %635 = arith.cmpi slt, %633, %634 : vector<1x32xi32>
    %636 = arith.andi %631, %635 : vector<1x32xi1>
    %cst_300 = arith.constant 0.000000e+00 : f32
    %637 = vector.shape_cast %636 : vector<1x32xi1> to vector<1x32xi1>
    %638 = vector.broadcast %637 : vector<1x32xi1> to vector<16x32xi1>
    %639 = vector.broadcast %cst_300 : f32 to vector<16x32xf32>
    %640 = arith.select %638, %627, %639 : vector<16x32xi1>, vector<16x32xf32>
    %641 = tpu.concatenate %626, %612, %640 in 0 : vector<16x32xf32>, vector<16x32xf32>, vector<16x32xf32> -> vector<48x32xf32>
    %c10 = arith.constant 10 : index
    %c0_301 = arith.constant 0 : index
    %c0_302 = arith.constant 0 : index
    %642 = vector.load %arg2[%c10, %c0_301, %c0_302] : memref<18x16x48xbf16, #tpu.memory_space<vmem>>, vector<1x16x48xbf16>
    %643 = vector.shape_cast %642 : vector<1x16x48xbf16> to vector<16x48xbf16>
    %644 = arith.truncf %641 : vector<48x32xf32> to vector<48x32xbf16>
    %cst_303 = arith.constant dense<0.000000e+00> : vector<16x32xf32>
    %645 = tpu.matmul %643, %644, %cst_303 {dimension_numbers = #tpu.dot_dimension_numbers<[1], [0], [0], [1], [0, 0, 1, 1], [], []>} : vector<16x48xbf16>, vector<48x32xbf16>, vector<16x32xf32> -> vector<16x32xf32>
    %c10_304 = arith.constant 10 : index
    %c0_305 = arith.constant 0 : index
    %c0_306 = arith.constant 0 : index
    %646 = vector.load %arg4[%c10_304, %c0_305, %c0_306] : memref<18x16x1xf32, #tpu.memory_space<vmem>>, vector<1x16x1xf32>
    %647 = vector.shape_cast %646 : vector<1x16x1xf32> to vector<16x1xf32>
    %648 = vector.broadcast %647 : vector<16x1xf32> to vector<16x32xf32>
    %649 = arith.addf %645, %648 : vector<16x32xf32>
    %cst_307 = arith.constant 0.000000e+00 : f32
    %650 = vector.broadcast %cst_307 : f32 to vector<4x32xf32>
    %cst_308 = arith.constant 0.000000e+00 : f32
    %651 = vector.broadcast %cst_308 : f32 to vector<4x32xf32>
    %652 = tpu.concatenate %650, %550, %651 in 0 : vector<4x32xf32>, vector<8x32xf32>, vector<4x32xf32> -> vector<16x32xf32>
    %653 = arith.addf %649, %652 : vector<16x32xf32>
    %c10_309 = arith.constant 10 : index
    %c0_310 = arith.constant 0 : index
    %c0_311 = arith.constant 0 : index
    %654 = vector.load %arg3[%c10_309, %c0_310, %c0_311] : memref<17x16x2xf32, #tpu.memory_space<vmem>>, vector<1x16x2xf32>
    %655 = vector.shape_cast %654 : vector<1x16x2xf32> to vector<16x2xf32>
    %656 = vector.extract_strided_slice %655 {offsets = [0, 0], sizes = [16, 1], strides = [1, 1]} : vector<16x2xf32> to vector<16x1xf32>
    %657 = vector.broadcast %656 : vector<16x1xf32> to vector<16x32xf32>
    %658 = arith.mulf %653, %657 : vector<16x32xf32>
    %c10_312 = arith.constant 10 : index
    %c0_313 = arith.constant 0 : index
    %c0_314 = arith.constant 0 : index
    %659 = vector.load %arg3[%c10_312, %c0_313, %c0_314] : memref<17x16x2xf32, #tpu.memory_space<vmem>>, vector<1x16x2xf32>
    %660 = vector.shape_cast %659 : vector<1x16x2xf32> to vector<16x2xf32>
    %661 = vector.extract_strided_slice %660 {offsets = [0, 1], sizes = [16, 1], strides = [1, 1]} : vector<16x2xf32> to vector<16x1xf32>
    %662 = vector.broadcast %661 : vector<16x1xf32> to vector<16x32xf32>
    %663 = arith.addf %658, %662 : vector<16x32xf32>
    %cst_315 = arith.constant 0.000000e+00 : f32
    %664 = vector.broadcast %cst_315 : f32 to vector<16x32xf32>
    %665 = arith.maximumf %663, %664 : vector<16x32xf32>
    %c31_i32_316 = arith.constant 31 : i32
    %666 = tpu.dynamic_rotate %665 by %c31_i32_316 dim 1 : vector<16x32xf32>, i32 -> vector<16x32xf32>
    %c1_i32_317 = arith.constant 1 : i32
    %667 = vector.broadcast %c1_i32_317 : i32 to vector<1x32xi32>
    %668 = arith.addi %492, %667 : vector<1x32xi32>
    %c0_i32_318 = arith.constant 0 : i32
    %669 = vector.broadcast %c0_i32_318 : i32 to vector<1x32xi32>
    %670 = arith.cmpi sge, %668, %669 : vector<1x32xi32>
    %c1_i32_319 = arith.constant 1 : i32
    %671 = vector.broadcast %c1_i32_319 : i32 to vector<1x32xi32>
    %672 = arith.addi %492, %671 : vector<1x32xi32>
    %c16_i32_320 = arith.constant 16 : i32
    %673 = vector.broadcast %c16_i32_320 : i32 to vector<1x32xi32>
    %674 = arith.cmpi slt, %672, %673 : vector<1x32xi32>
    %675 = arith.andi %670, %674 : vector<1x32xi1>
    %cst_321 = arith.constant 0.000000e+00 : f32
    %676 = vector.shape_cast %675 : vector<1x32xi1> to vector<1x32xi1>
    %677 = vector.broadcast %676 : vector<1x32xi1> to vector<16x32xi1>
    %678 = vector.broadcast %cst_321 : f32 to vector<16x32xf32>
    %679 = arith.select %677, %666, %678 : vector<16x32xi1>, vector<16x32xf32>
    %c30_i32 = arith.constant 30 : i32
    %680 = tpu.dynamic_rotate %665 by %c30_i32 dim 1 : vector<16x32xf32>, i32 -> vector<16x32xf32>
    %c2_i32_322 = arith.constant 2 : i32
    %681 = vector.broadcast %c2_i32_322 : i32 to vector<1x32xi32>
    %682 = arith.addi %492, %681 : vector<1x32xi32>
    %c0_i32_323 = arith.constant 0 : i32
    %683 = vector.broadcast %c0_i32_323 : i32 to vector<1x32xi32>
    %684 = arith.cmpi sge, %682, %683 : vector<1x32xi32>
    %c2_i32_324 = arith.constant 2 : i32
    %685 = vector.broadcast %c2_i32_324 : i32 to vector<1x32xi32>
    %686 = arith.addi %492, %685 : vector<1x32xi32>
    %c16_i32_325 = arith.constant 16 : i32
    %687 = vector.broadcast %c16_i32_325 : i32 to vector<1x32xi32>
    %688 = arith.cmpi slt, %686, %687 : vector<1x32xi32>
    %689 = arith.andi %684, %688 : vector<1x32xi1>
    %cst_326 = arith.constant 0.000000e+00 : f32
    %690 = vector.shape_cast %689 : vector<1x32xi1> to vector<1x32xi1>
    %691 = vector.broadcast %690 : vector<1x32xi1> to vector<16x32xi1>
    %692 = vector.broadcast %cst_326 : f32 to vector<16x32xf32>
    %693 = arith.select %691, %680, %692 : vector<16x32xi1>, vector<16x32xf32>
    %694 = tpu.concatenate %665, %679, %693 in 0 : vector<16x32xf32>, vector<16x32xf32>, vector<16x32xf32> -> vector<48x32xf32>
    %c11 = arith.constant 11 : index
    %c0_327 = arith.constant 0 : index
    %c0_328 = arith.constant 0 : index
    %695 = vector.load %arg2[%c11, %c0_327, %c0_328] : memref<18x16x48xbf16, #tpu.memory_space<vmem>>, vector<1x16x48xbf16>
    %696 = vector.shape_cast %695 : vector<1x16x48xbf16> to vector<16x48xbf16>
    %697 = arith.truncf %694 : vector<48x32xf32> to vector<48x32xbf16>
    %cst_329 = arith.constant dense<0.000000e+00> : vector<16x32xf32>
    %698 = tpu.matmul %696, %697, %cst_329 {dimension_numbers = #tpu.dot_dimension_numbers<[1], [0], [0], [1], [0, 0, 1, 1], [], []>} : vector<16x48xbf16>, vector<48x32xbf16>, vector<16x32xf32> -> vector<16x32xf32>
    %c2_330 = arith.constant 2 : index
    %c0_331 = arith.constant 0 : index
    %c0_332 = arith.constant 0 : index
    %699 = vector.load %arg5[%c2_330, %c0_331, %c0_332] : memref<4x128x64xf32, #tpu.memory_space<vmem>>, vector<1x128x64xf32>
    %700 = vector.shape_cast %699 : vector<1x128x64xf32> to vector<128x64xf32>
    %701 = vector.extract_strided_slice %700 {offsets = [0, 0], sizes = [32, 16], strides = [1, 1]} : vector<128x64xf32> to vector<32x16xf32>
    %cst_333 = arith.constant dense<0.000000e+00> : vector<16x16xf32>
    %702 = tpu.matmul %698, %701, %cst_333 {dimension_numbers = #tpu.dot_dimension_numbers<[1], [0], [0], [1], [0, 0, 1, 1], [], []>} : vector<16x32xf32>, vector<32x16xf32>, vector<16x16xf32> -> vector<16x16xf32>
    %c11_334 = arith.constant 11 : index
    %c0_335 = arith.constant 0 : index
    %c0_336 = arith.constant 0 : index
    %703 = vector.load %arg4[%c11_334, %c0_335, %c0_336] : memref<18x16x1xf32, #tpu.memory_space<vmem>>, vector<1x16x1xf32>
    %704 = vector.shape_cast %703 : vector<1x16x1xf32> to vector<16x1xf32>
    %705 = vector.broadcast %704 : vector<16x1xf32> to vector<16x16xf32>
    %706 = arith.addf %702, %705 : vector<16x16xf32>
    %c11_337 = arith.constant 11 : index
    %c0_338 = arith.constant 0 : index
    %c0_339 = arith.constant 0 : index
    %707 = vector.load %arg3[%c11_337, %c0_338, %c0_339] : memref<17x16x2xf32, #tpu.memory_space<vmem>>, vector<1x16x2xf32>
    %708 = vector.shape_cast %707 : vector<1x16x2xf32> to vector<16x2xf32>
    %709 = vector.extract_strided_slice %708 {offsets = [0, 0], sizes = [16, 1], strides = [1, 1]} : vector<16x2xf32> to vector<16x1xf32>
    %710 = vector.broadcast %709 : vector<16x1xf32> to vector<16x16xf32>
    %711 = arith.mulf %706, %710 : vector<16x16xf32>
    %c11_340 = arith.constant 11 : index
    %c0_341 = arith.constant 0 : index
    %c0_342 = arith.constant 0 : index
    %712 = vector.load %arg3[%c11_340, %c0_341, %c0_342] : memref<17x16x2xf32, #tpu.memory_space<vmem>>, vector<1x16x2xf32>
    %713 = vector.shape_cast %712 : vector<1x16x2xf32> to vector<16x2xf32>
    %714 = vector.extract_strided_slice %713 {offsets = [0, 1], sizes = [16, 1], strides = [1, 1]} : vector<16x2xf32> to vector<16x1xf32>
    %715 = vector.broadcast %714 : vector<16x1xf32> to vector<16x16xf32>
    %716 = arith.addf %711, %715 : vector<16x16xf32>
    %cst_343 = arith.constant 0.000000e+00 : f32
    %717 = vector.broadcast %cst_343 : f32 to vector<16x16xf32>
    %718 = arith.maximumf %716, %717 : vector<16x16xf32>
    %c1_i32_344 = arith.constant 1 : i32
    %719 = tpu.dynamic_rotate %718 by %c1_i32_344 dim 1 : vector<16x16xf32>, i32 -> vector<16x16xf32>
    %720 = tpu.iota {dimensions = array<i32: 1>} : vector<1x16xi32>
    %c8_i32 = arith.constant 8 : i32
    %c0_i32_345 = arith.constant 0 : i32
    %721 = arith.cmpi eq, %c8_i32, %c0_i32_345 : i32
    %c1_i32_346 = arith.constant 1 : i32
    %722 = arith.select %721, %c1_i32_346, %c8_i32 : i32
    %723 = vector.broadcast %722 : i32 to vector<1x16xi32>
    %724 = arith.remsi %720, %723 : vector<1x16xi32>
    %c0_i32_347 = arith.constant 0 : i32
    %725 = vector.broadcast %c0_i32_347 : i32 to vector<1x16xi32>
    %726 = arith.cmpi ne, %724, %725 : vector<1x16xi32>
    %c0_i32_348 = arith.constant 0 : i32
    %727 = vector.broadcast %c0_i32_348 : i32 to vector<1x16xi32>
    %728 = arith.cmpi slt, %724, %727 : vector<1x16xi32>
    %c0_i32_349 = arith.constant 0 : i32
    %729 = arith.cmpi slt, %722, %c0_i32_349 : i32
    %730 = vector.broadcast %729 : i1 to vector<1x16xi1>
    %731 = vector.broadcast %730 : vector<1x16xi1> to vector<1x16xi1>
    %732 = arith.xori %728, %731 : vector<1x16xi1>
    %733 = arith.andi %732, %726 : vector<1x16xi1>
    %734 = vector.broadcast %722 : i32 to vector<1x16xi32>
    %735 = arith.addi %724, %734 : vector<1x16xi32>
    %736 = arith.select %733, %735, %724 : vector<1x16xi1>, vector<1x16xi32>
    %c-1_i32_350 = arith.constant -1 : i32
    %737 = vector.broadcast %c-1_i32_350 : i32 to vector<1x16xi32>
    %738 = arith.addi %736, %737 : vector<1x16xi32>
    %c0_i32_351 = arith.constant 0 : i32
    %739 = vector.broadcast %c0_i32_351 : i32 to vector<1x16xi32>
    %740 = arith.cmpi sge, %738, %739 : vector<1x16xi32>
    %c-1_i32_352 = arith.constant -1 : i32
    %741 = vector.broadcast %c-1_i32_352 : i32 to vector<1x16xi32>
    %742 = arith.addi %736, %741 : vector<1x16xi32>
    %c8_i32_353 = arith.constant 8 : i32
    %743 = vector.broadcast %c8_i32_353 : i32 to vector<1x16xi32>
    %744 = arith.cmpi slt, %742, %743 : vector<1x16xi32>
    %745 = arith.andi %740, %744 : vector<1x16xi1>
    %cst_354 = arith.constant 0.000000e+00 : f32
    %746 = vector.shape_cast %745 : vector<1x16xi1> to vector<1x16xi1>
    %747 = vector.broadcast %746 : vector<1x16xi1> to vector<16x16xi1>
    %748 = vector.broadcast %cst_354 : f32 to vector<16x16xf32>
    %749 = arith.select %747, %719, %748 : vector<16x16xi1>, vector<16x16xf32>
    %c15_i32 = arith.constant 15 : i32
    %750 = tpu.dynamic_rotate %718 by %c15_i32 dim 1 : vector<16x16xf32>, i32 -> vector<16x16xf32>
    %c1_i32_355 = arith.constant 1 : i32
    %751 = vector.broadcast %c1_i32_355 : i32 to vector<1x16xi32>
    %752 = arith.addi %736, %751 : vector<1x16xi32>
    %c0_i32_356 = arith.constant 0 : i32
    %753 = vector.broadcast %c0_i32_356 : i32 to vector<1x16xi32>
    %754 = arith.cmpi sge, %752, %753 : vector<1x16xi32>
    %c1_i32_357 = arith.constant 1 : i32
    %755 = vector.broadcast %c1_i32_357 : i32 to vector<1x16xi32>
    %756 = arith.addi %736, %755 : vector<1x16xi32>
    %c8_i32_358 = arith.constant 8 : i32
    %757 = vector.broadcast %c8_i32_358 : i32 to vector<1x16xi32>
    %758 = arith.cmpi slt, %756, %757 : vector<1x16xi32>
    %759 = arith.andi %754, %758 : vector<1x16xi1>
    %cst_359 = arith.constant 0.000000e+00 : f32
    %760 = vector.shape_cast %759 : vector<1x16xi1> to vector<1x16xi1>
    %761 = vector.broadcast %760 : vector<1x16xi1> to vector<16x16xi1>
    %762 = vector.broadcast %cst_359 : f32 to vector<16x16xf32>
    %763 = arith.select %761, %750, %762 : vector<16x16xi1>, vector<16x16xf32>
    %764 = tpu.concatenate %749, %718, %763 in 0 : vector<16x16xf32>, vector<16x16xf32>, vector<16x16xf32> -> vector<48x16xf32>
    %c12 = arith.constant 12 : index
    %c0_360 = arith.constant 0 : index
    %c0_361 = arith.constant 0 : index
    %765 = vector.load %arg2[%c12, %c0_360, %c0_361] : memref<18x16x48xbf16, #tpu.memory_space<vmem>>, vector<1x16x48xbf16>
    %766 = vector.shape_cast %765 : vector<1x16x48xbf16> to vector<16x48xbf16>
    %767 = arith.truncf %764 : vector<48x16xf32> to vector<48x16xbf16>
    %cst_362 = arith.constant dense<0.000000e+00> : vector<16x16xf32>
    %768 = tpu.matmul %766, %767, %cst_362 {dimension_numbers = #tpu.dot_dimension_numbers<[1], [0], [0], [1], [0, 0, 1, 1], [], []>} : vector<16x48xbf16>, vector<48x16xbf16>, vector<16x16xf32> -> vector<16x16xf32>
    %c12_363 = arith.constant 12 : index
    %c0_364 = arith.constant 0 : index
    %c0_365 = arith.constant 0 : index
    %769 = vector.load %arg4[%c12_363, %c0_364, %c0_365] : memref<18x16x1xf32, #tpu.memory_space<vmem>>, vector<1x16x1xf32>
    %770 = vector.shape_cast %769 : vector<1x16x1xf32> to vector<16x1xf32>
    %771 = vector.broadcast %770 : vector<16x1xf32> to vector<16x16xf32>
    %772 = arith.addf %768, %771 : vector<16x16xf32>
    %c31_i32_366 = arith.constant 31 : i32
    %773 = tpu.dynamic_rotate %653 by %c31_i32_366 dim 1 : vector<16x32xf32>, i32 -> vector<16x32xf32>
    %c1_i32_367 = arith.constant 1 : i32
    %774 = vector.broadcast %c1_i32_367 : i32 to vector<1x32xi32>
    %775 = arith.addi %492, %774 : vector<1x32xi32>
    %c0_i32_368 = arith.constant 0 : i32
    %776 = vector.broadcast %c0_i32_368 : i32 to vector<1x32xi32>
    %777 = arith.cmpi sge, %775, %776 : vector<1x32xi32>
    %c1_i32_369 = arith.constant 1 : i32
    %778 = vector.broadcast %c1_i32_369 : i32 to vector<1x32xi32>
    %779 = arith.addi %492, %778 : vector<1x32xi32>
    %c16_i32_370 = arith.constant 16 : i32
    %780 = vector.broadcast %c16_i32_370 : i32 to vector<1x32xi32>
    %781 = arith.cmpi slt, %779, %780 : vector<1x32xi32>
    %782 = arith.andi %777, %781 : vector<1x32xi1>
    %cst_371 = arith.constant 0.000000e+00 : f32
    %783 = vector.shape_cast %782 : vector<1x32xi1> to vector<1x32xi1>
    %784 = vector.broadcast %783 : vector<1x32xi1> to vector<16x32xi1>
    %785 = vector.broadcast %cst_371 : f32 to vector<16x32xf32>
    %786 = arith.select %784, %773, %785 : vector<16x32xi1>, vector<16x32xf32>
    %787 = arith.maximumf %653, %786 : vector<16x32xf32>
    %c2_372 = arith.constant 2 : index
    %c0_373 = arith.constant 0 : index
    %c0_374 = arith.constant 0 : index
    %788 = vector.load %arg5[%c2_372, %c0_373, %c0_374] : memref<4x128x64xf32, #tpu.memory_space<vmem>>, vector<1x128x64xf32>
    %789 = vector.shape_cast %788 : vector<1x128x64xf32> to vector<128x64xf32>
    %790 = vector.extract_strided_slice %789 {offsets = [0, 0], sizes = [32, 16], strides = [1, 1]} : vector<128x64xf32> to vector<32x16xf32>
    %cst_375 = arith.constant dense<0.000000e+00> : vector<16x16xf32>
    %791 = tpu.matmul %787, %790, %cst_375 {dimension_numbers = #tpu.dot_dimension_numbers<[1], [0], [0], [1], [0, 0, 1, 1], [], []>} : vector<16x32xf32>, vector<32x16xf32>, vector<16x16xf32> -> vector<16x16xf32>
    %792 = arith.addf %772, %791 : vector<16x16xf32>
    %c12_376 = arith.constant 12 : index
    %c0_377 = arith.constant 0 : index
    %c0_378 = arith.constant 0 : index
    %793 = vector.load %arg3[%c12_376, %c0_377, %c0_378] : memref<17x16x2xf32, #tpu.memory_space<vmem>>, vector<1x16x2xf32>
    %794 = vector.shape_cast %793 : vector<1x16x2xf32> to vector<16x2xf32>
    %795 = vector.extract_strided_slice %794 {offsets = [0, 0], sizes = [16, 1], strides = [1, 1]} : vector<16x2xf32> to vector<16x1xf32>
    %796 = vector.broadcast %795 : vector<16x1xf32> to vector<16x16xf32>
    %797 = arith.mulf %792, %796 : vector<16x16xf32>
    %c12_379 = arith.constant 12 : index
    %c0_380 = arith.constant 0 : index
    %c0_381 = arith.constant 0 : index
    %798 = vector.load %arg3[%c12_379, %c0_380, %c0_381] : memref<17x16x2xf32, #tpu.memory_space<vmem>>, vector<1x16x2xf32>
    %799 = vector.shape_cast %798 : vector<1x16x2xf32> to vector<16x2xf32>
    %800 = vector.extract_strided_slice %799 {offsets = [0, 1], sizes = [16, 1], strides = [1, 1]} : vector<16x2xf32> to vector<16x1xf32>
    %801 = vector.broadcast %800 : vector<16x1xf32> to vector<16x16xf32>
    %802 = arith.addf %797, %801 : vector<16x16xf32>
    %cst_382 = arith.constant 0.000000e+00 : f32
    %803 = vector.broadcast %cst_382 : f32 to vector<16x16xf32>
    %804 = arith.maximumf %802, %803 : vector<16x16xf32>
    %c1_i32_383 = arith.constant 1 : i32
    %805 = tpu.dynamic_rotate %804 by %c1_i32_383 dim 1 : vector<16x16xf32>, i32 -> vector<16x16xf32>
    %c-1_i32_384 = arith.constant -1 : i32
    %806 = vector.broadcast %c-1_i32_384 : i32 to vector<1x16xi32>
    %807 = arith.addi %736, %806 : vector<1x16xi32>
    %c0_i32_385 = arith.constant 0 : i32
    %808 = vector.broadcast %c0_i32_385 : i32 to vector<1x16xi32>
    %809 = arith.cmpi sge, %807, %808 : vector<1x16xi32>
    %c-1_i32_386 = arith.constant -1 : i32
    %810 = vector.broadcast %c-1_i32_386 : i32 to vector<1x16xi32>
    %811 = arith.addi %736, %810 : vector<1x16xi32>
    %c8_i32_387 = arith.constant 8 : i32
    %812 = vector.broadcast %c8_i32_387 : i32 to vector<1x16xi32>
    %813 = arith.cmpi slt, %811, %812 : vector<1x16xi32>
    %814 = arith.andi %809, %813 : vector<1x16xi1>
    %cst_388 = arith.constant 0.000000e+00 : f32
    %815 = vector.shape_cast %814 : vector<1x16xi1> to vector<1x16xi1>
    %816 = vector.broadcast %815 : vector<1x16xi1> to vector<16x16xi1>
    %817 = vector.broadcast %cst_388 : f32 to vector<16x16xf32>
    %818 = arith.select %816, %805, %817 : vector<16x16xi1>, vector<16x16xf32>
    %c15_i32_389 = arith.constant 15 : i32
    %819 = tpu.dynamic_rotate %804 by %c15_i32_389 dim 1 : vector<16x16xf32>, i32 -> vector<16x16xf32>
    %c1_i32_390 = arith.constant 1 : i32
    %820 = vector.broadcast %c1_i32_390 : i32 to vector<1x16xi32>
    %821 = arith.addi %736, %820 : vector<1x16xi32>
    %c0_i32_391 = arith.constant 0 : i32
    %822 = vector.broadcast %c0_i32_391 : i32 to vector<1x16xi32>
    %823 = arith.cmpi sge, %821, %822 : vector<1x16xi32>
    %c1_i32_392 = arith.constant 1 : i32
    %824 = vector.broadcast %c1_i32_392 : i32 to vector<1x16xi32>
    %825 = arith.addi %736, %824 : vector<1x16xi32>
    %c8_i32_393 = arith.constant 8 : i32
    %826 = vector.broadcast %c8_i32_393 : i32 to vector<1x16xi32>
    %827 = arith.cmpi slt, %825, %826 : vector<1x16xi32>
    %828 = arith.andi %823, %827 : vector<1x16xi1>
    %cst_394 = arith.constant 0.000000e+00 : f32
    %829 = vector.shape_cast %828 : vector<1x16xi1> to vector<1x16xi1>
    %830 = vector.broadcast %829 : vector<1x16xi1> to vector<16x16xi1>
    %831 = vector.broadcast %cst_394 : f32 to vector<16x16xf32>
    %832 = arith.select %830, %819, %831 : vector<16x16xi1>, vector<16x16xf32>
    %833 = tpu.concatenate %818, %804, %832 in 0 : vector<16x16xf32>, vector<16x16xf32>, vector<16x16xf32> -> vector<48x16xf32>
    %c13 = arith.constant 13 : index
    %c0_395 = arith.constant 0 : index
    %c0_396 = arith.constant 0 : index
    %834 = vector.load %arg2[%c13, %c0_395, %c0_396] : memref<18x16x48xbf16, #tpu.memory_space<vmem>>, vector<1x16x48xbf16>
    %835 = vector.shape_cast %834 : vector<1x16x48xbf16> to vector<16x48xbf16>
    %836 = arith.truncf %833 : vector<48x16xf32> to vector<48x16xbf16>
    %cst_397 = arith.constant dense<0.000000e+00> : vector<16x16xf32>
    %837 = tpu.matmul %835, %836, %cst_397 {dimension_numbers = #tpu.dot_dimension_numbers<[1], [0], [0], [1], [0, 0, 1, 1], [], []>} : vector<16x48xbf16>, vector<48x16xbf16>, vector<16x16xf32> -> vector<16x16xf32>
    %c13_398 = arith.constant 13 : index
    %c0_399 = arith.constant 0 : index
    %c0_400 = arith.constant 0 : index
    %838 = vector.load %arg4[%c13_398, %c0_399, %c0_400] : memref<18x16x1xf32, #tpu.memory_space<vmem>>, vector<1x16x1xf32>
    %839 = vector.shape_cast %838 : vector<1x16x1xf32> to vector<16x1xf32>
    %840 = vector.broadcast %839 : vector<16x1xf32> to vector<16x16xf32>
    %841 = arith.addf %837, %840 : vector<16x16xf32>
    %c13_401 = arith.constant 13 : index
    %c0_402 = arith.constant 0 : index
    %c0_403 = arith.constant 0 : index
    %842 = vector.load %arg3[%c13_401, %c0_402, %c0_403] : memref<17x16x2xf32, #tpu.memory_space<vmem>>, vector<1x16x2xf32>
    %843 = vector.shape_cast %842 : vector<1x16x2xf32> to vector<16x2xf32>
    %844 = vector.extract_strided_slice %843 {offsets = [0, 0], sizes = [16, 1], strides = [1, 1]} : vector<16x2xf32> to vector<16x1xf32>
    %845 = vector.broadcast %844 : vector<16x1xf32> to vector<16x16xf32>
    %846 = arith.mulf %841, %845 : vector<16x16xf32>
    %c13_404 = arith.constant 13 : index
    %c0_405 = arith.constant 0 : index
    %c0_406 = arith.constant 0 : index
    %847 = vector.load %arg3[%c13_404, %c0_405, %c0_406] : memref<17x16x2xf32, #tpu.memory_space<vmem>>, vector<1x16x2xf32>
    %848 = vector.shape_cast %847 : vector<1x16x2xf32> to vector<16x2xf32>
    %849 = vector.extract_strided_slice %848 {offsets = [0, 1], sizes = [16, 1], strides = [1, 1]} : vector<16x2xf32> to vector<16x1xf32>
    %850 = vector.broadcast %849 : vector<16x1xf32> to vector<16x16xf32>
    %851 = arith.addf %846, %850 : vector<16x16xf32>
    %cst_407 = arith.constant 0.000000e+00 : f32
    %852 = vector.broadcast %cst_407 : f32 to vector<16x16xf32>
    %853 = arith.maximumf %851, %852 : vector<16x16xf32>
    %c1_i32_408 = arith.constant 1 : i32
    %854 = tpu.dynamic_rotate %853 by %c1_i32_408 dim 1 : vector<16x16xf32>, i32 -> vector<16x16xf32>
    %c-1_i32_409 = arith.constant -1 : i32
    %855 = vector.broadcast %c-1_i32_409 : i32 to vector<1x16xi32>
    %856 = arith.addi %736, %855 : vector<1x16xi32>
    %c0_i32_410 = arith.constant 0 : i32
    %857 = vector.broadcast %c0_i32_410 : i32 to vector<1x16xi32>
    %858 = arith.cmpi sge, %856, %857 : vector<1x16xi32>
    %c-1_i32_411 = arith.constant -1 : i32
    %859 = vector.broadcast %c-1_i32_411 : i32 to vector<1x16xi32>
    %860 = arith.addi %736, %859 : vector<1x16xi32>
    %c8_i32_412 = arith.constant 8 : i32
    %861 = vector.broadcast %c8_i32_412 : i32 to vector<1x16xi32>
    %862 = arith.cmpi slt, %860, %861 : vector<1x16xi32>
    %863 = arith.andi %858, %862 : vector<1x16xi1>
    %cst_413 = arith.constant 0.000000e+00 : f32
    %864 = vector.shape_cast %863 : vector<1x16xi1> to vector<1x16xi1>
    %865 = vector.broadcast %864 : vector<1x16xi1> to vector<16x16xi1>
    %866 = vector.broadcast %cst_413 : f32 to vector<16x16xf32>
    %867 = arith.select %865, %854, %866 : vector<16x16xi1>, vector<16x16xf32>
    %c15_i32_414 = arith.constant 15 : i32
    %868 = tpu.dynamic_rotate %853 by %c15_i32_414 dim 1 : vector<16x16xf32>, i32 -> vector<16x16xf32>
    %c1_i32_415 = arith.constant 1 : i32
    %869 = vector.broadcast %c1_i32_415 : i32 to vector<1x16xi32>
    %870 = arith.addi %736, %869 : vector<1x16xi32>
    %c0_i32_416 = arith.constant 0 : i32
    %871 = vector.broadcast %c0_i32_416 : i32 to vector<1x16xi32>
    %872 = arith.cmpi sge, %870, %871 : vector<1x16xi32>
    %c1_i32_417 = arith.constant 1 : i32
    %873 = vector.broadcast %c1_i32_417 : i32 to vector<1x16xi32>
    %874 = arith.addi %736, %873 : vector<1x16xi32>
    %c8_i32_418 = arith.constant 8 : i32
    %875 = vector.broadcast %c8_i32_418 : i32 to vector<1x16xi32>
    %876 = arith.cmpi slt, %874, %875 : vector<1x16xi32>
    %877 = arith.andi %872, %876 : vector<1x16xi1>
    %cst_419 = arith.constant 0.000000e+00 : f32
    %878 = vector.shape_cast %877 : vector<1x16xi1> to vector<1x16xi1>
    %879 = vector.broadcast %878 : vector<1x16xi1> to vector<16x16xi1>
    %880 = vector.broadcast %cst_419 : f32 to vector<16x16xf32>
    %881 = arith.select %879, %868, %880 : vector<16x16xi1>, vector<16x16xf32>
    %882 = tpu.concatenate %867, %853, %881 in 0 : vector<16x16xf32>, vector<16x16xf32>, vector<16x16xf32> -> vector<48x16xf32>
    %c14 = arith.constant 14 : index
    %c0_420 = arith.constant 0 : index
    %c0_421 = arith.constant 0 : index
    %883 = vector.load %arg2[%c14, %c0_420, %c0_421] : memref<18x16x48xbf16, #tpu.memory_space<vmem>>, vector<1x16x48xbf16>
    %884 = vector.shape_cast %883 : vector<1x16x48xbf16> to vector<16x48xbf16>
    %885 = arith.truncf %882 : vector<48x16xf32> to vector<48x16xbf16>
    %cst_422 = arith.constant dense<0.000000e+00> : vector<16x16xf32>
    %886 = tpu.matmul %884, %885, %cst_422 {dimension_numbers = #tpu.dot_dimension_numbers<[1], [0], [0], [1], [0, 0, 1, 1], [], []>} : vector<16x48xbf16>, vector<48x16xbf16>, vector<16x16xf32> -> vector<16x16xf32>
    %c14_423 = arith.constant 14 : index
    %c0_424 = arith.constant 0 : index
    %c0_425 = arith.constant 0 : index
    %887 = vector.load %arg4[%c14_423, %c0_424, %c0_425] : memref<18x16x1xf32, #tpu.memory_space<vmem>>, vector<1x16x1xf32>
    %888 = vector.shape_cast %887 : vector<1x16x1xf32> to vector<16x1xf32>
    %889 = vector.broadcast %888 : vector<16x1xf32> to vector<16x16xf32>
    %890 = arith.addf %886, %889 : vector<16x16xf32>
    %891 = arith.addf %890, %792 : vector<16x16xf32>
    %c14_426 = arith.constant 14 : index
    %c0_427 = arith.constant 0 : index
    %c0_428 = arith.constant 0 : index
    %892 = vector.load %arg3[%c14_426, %c0_427, %c0_428] : memref<17x16x2xf32, #tpu.memory_space<vmem>>, vector<1x16x2xf32>
    %893 = vector.shape_cast %892 : vector<1x16x2xf32> to vector<16x2xf32>
    %894 = vector.extract_strided_slice %893 {offsets = [0, 0], sizes = [16, 1], strides = [1, 1]} : vector<16x2xf32> to vector<16x1xf32>
    %895 = vector.broadcast %894 : vector<16x1xf32> to vector<16x16xf32>
    %896 = arith.mulf %891, %895 : vector<16x16xf32>
    %c14_429 = arith.constant 14 : index
    %c0_430 = arith.constant 0 : index
    %c0_431 = arith.constant 0 : index
    %897 = vector.load %arg3[%c14_429, %c0_430, %c0_431] : memref<17x16x2xf32, #tpu.memory_space<vmem>>, vector<1x16x2xf32>
    %898 = vector.shape_cast %897 : vector<1x16x2xf32> to vector<16x2xf32>
    %899 = vector.extract_strided_slice %898 {offsets = [0, 1], sizes = [16, 1], strides = [1, 1]} : vector<16x2xf32> to vector<16x1xf32>
    %900 = vector.broadcast %899 : vector<16x1xf32> to vector<16x16xf32>
    %901 = arith.addf %896, %900 : vector<16x16xf32>
    %cst_432 = arith.constant 0.000000e+00 : f32
    %902 = vector.broadcast %cst_432 : f32 to vector<16x16xf32>
    %903 = arith.maximumf %901, %902 : vector<16x16xf32>
    %c15_i32_433 = arith.constant 15 : i32
    %904 = tpu.dynamic_rotate %903 by %c15_i32_433 dim 1 : vector<16x16xf32>, i32 -> vector<16x16xf32>
    %c1_i32_434 = arith.constant 1 : i32
    %905 = vector.broadcast %c1_i32_434 : i32 to vector<1x16xi32>
    %906 = arith.addi %736, %905 : vector<1x16xi32>
    %c0_i32_435 = arith.constant 0 : i32
    %907 = vector.broadcast %c0_i32_435 : i32 to vector<1x16xi32>
    %908 = arith.cmpi sge, %906, %907 : vector<1x16xi32>
    %c1_i32_436 = arith.constant 1 : i32
    %909 = vector.broadcast %c1_i32_436 : i32 to vector<1x16xi32>
    %910 = arith.addi %736, %909 : vector<1x16xi32>
    %c8_i32_437 = arith.constant 8 : i32
    %911 = vector.broadcast %c8_i32_437 : i32 to vector<1x16xi32>
    %912 = arith.cmpi slt, %910, %911 : vector<1x16xi32>
    %913 = arith.andi %908, %912 : vector<1x16xi1>
    %cst_438 = arith.constant 0.000000e+00 : f32
    %914 = vector.shape_cast %913 : vector<1x16xi1> to vector<1x16xi1>
    %915 = vector.broadcast %914 : vector<1x16xi1> to vector<16x16xi1>
    %916 = vector.broadcast %cst_438 : f32 to vector<16x16xf32>
    %917 = arith.select %915, %904, %916 : vector<16x16xi1>, vector<16x16xf32>
    %c14_i32 = arith.constant 14 : i32
    %918 = tpu.dynamic_rotate %903 by %c14_i32 dim 1 : vector<16x16xf32>, i32 -> vector<16x16xf32>
    %c2_i32_439 = arith.constant 2 : i32
    %919 = vector.broadcast %c2_i32_439 : i32 to vector<1x16xi32>
    %920 = arith.addi %736, %919 : vector<1x16xi32>
    %c0_i32_440 = arith.constant 0 : i32
    %921 = vector.broadcast %c0_i32_440 : i32 to vector<1x16xi32>
    %922 = arith.cmpi sge, %920, %921 : vector<1x16xi32>
    %c2_i32_441 = arith.constant 2 : i32
    %923 = vector.broadcast %c2_i32_441 : i32 to vector<1x16xi32>
    %924 = arith.addi %736, %923 : vector<1x16xi32>
    %c8_i32_442 = arith.constant 8 : i32
    %925 = vector.broadcast %c8_i32_442 : i32 to vector<1x16xi32>
    %926 = arith.cmpi slt, %924, %925 : vector<1x16xi32>
    %927 = arith.andi %922, %926 : vector<1x16xi1>
    %cst_443 = arith.constant 0.000000e+00 : f32
    %928 = vector.shape_cast %927 : vector<1x16xi1> to vector<1x16xi1>
    %929 = vector.broadcast %928 : vector<1x16xi1> to vector<16x16xi1>
    %930 = vector.broadcast %cst_443 : f32 to vector<16x16xf32>
    %931 = arith.select %929, %918, %930 : vector<16x16xi1>, vector<16x16xf32>
    %932 = tpu.concatenate %903, %917, %931 in 0 : vector<16x16xf32>, vector<16x16xf32>, vector<16x16xf32> -> vector<48x16xf32>
    %c15 = arith.constant 15 : index
    %c0_444 = arith.constant 0 : index
    %c0_445 = arith.constant 0 : index
    %933 = vector.load %arg2[%c15, %c0_444, %c0_445] : memref<18x16x48xbf16, #tpu.memory_space<vmem>>, vector<1x16x48xbf16>
    %934 = vector.shape_cast %933 : vector<1x16x48xbf16> to vector<16x48xbf16>
    %935 = arith.truncf %932 : vector<48x16xf32> to vector<48x16xbf16>
    %cst_446 = arith.constant dense<0.000000e+00> : vector<16x16xf32>
    %936 = tpu.matmul %934, %935, %cst_446 {dimension_numbers = #tpu.dot_dimension_numbers<[1], [0], [0], [1], [0, 0, 1, 1], [], []>} : vector<16x48xbf16>, vector<48x16xbf16>, vector<16x16xf32> -> vector<16x16xf32>
    %c3_447 = arith.constant 3 : index
    %c0_448 = arith.constant 0 : index
    %c0_449 = arith.constant 0 : index
    %937 = vector.load %arg5[%c3_447, %c0_448, %c0_449] : memref<4x128x64xf32, #tpu.memory_space<vmem>>, vector<1x128x64xf32>
    %938 = vector.shape_cast %937 : vector<1x128x64xf32> to vector<128x64xf32>
    %939 = vector.extract_strided_slice %938 {offsets = [0, 0], sizes = [16, 8], strides = [1, 1]} : vector<128x64xf32> to vector<16x8xf32>
    %cst_450 = arith.constant dense<0.000000e+00> : vector<16x8xf32>
    %940 = tpu.matmul %936, %939, %cst_450 {dimension_numbers = #tpu.dot_dimension_numbers<[1], [0], [0], [1], [0, 0, 1, 1], [], []>} : vector<16x16xf32>, vector<16x8xf32>, vector<16x8xf32> -> vector<16x8xf32>
    %c15_451 = arith.constant 15 : index
    %c0_452 = arith.constant 0 : index
    %c0_453 = arith.constant 0 : index
    %941 = vector.load %arg4[%c15_451, %c0_452, %c0_453] : memref<18x16x1xf32, #tpu.memory_space<vmem>>, vector<1x16x1xf32>
    %942 = vector.shape_cast %941 : vector<1x16x1xf32> to vector<16x1xf32>
    %943 = vector.broadcast %942 : vector<16x1xf32> to vector<16x8xf32>
    %944 = arith.addf %940, %943 : vector<16x8xf32>
    %c15_454 = arith.constant 15 : index
    %c0_455 = arith.constant 0 : index
    %c0_456 = arith.constant 0 : index
    %945 = vector.load %arg3[%c15_454, %c0_455, %c0_456] : memref<17x16x2xf32, #tpu.memory_space<vmem>>, vector<1x16x2xf32>
    %946 = vector.shape_cast %945 : vector<1x16x2xf32> to vector<16x2xf32>
    %947 = vector.extract_strided_slice %946 {offsets = [0, 0], sizes = [16, 1], strides = [1, 1]} : vector<16x2xf32> to vector<16x1xf32>
    %948 = vector.broadcast %947 : vector<16x1xf32> to vector<16x8xf32>
    %949 = arith.mulf %944, %948 : vector<16x8xf32>
    %c15_457 = arith.constant 15 : index
    %c0_458 = arith.constant 0 : index
    %c0_459 = arith.constant 0 : index
    %950 = vector.load %arg3[%c15_457, %c0_458, %c0_459] : memref<17x16x2xf32, #tpu.memory_space<vmem>>, vector<1x16x2xf32>
    %951 = vector.shape_cast %950 : vector<1x16x2xf32> to vector<16x2xf32>
    %952 = vector.extract_strided_slice %951 {offsets = [0, 1], sizes = [16, 1], strides = [1, 1]} : vector<16x2xf32> to vector<16x1xf32>
    %953 = vector.broadcast %952 : vector<16x1xf32> to vector<16x8xf32>
    %954 = arith.addf %949, %953 : vector<16x8xf32>
    %cst_460 = arith.constant 0.000000e+00 : f32
    %955 = vector.broadcast %cst_460 : f32 to vector<16x8xf32>
    %956 = arith.maximumf %954, %955 : vector<16x8xf32>
    %c1_i32_461 = arith.constant 1 : i32
    %957 = tpu.dynamic_rotate %956 by %c1_i32_461 dim 1 : vector<16x8xf32>, i32 -> vector<16x8xf32>
    %958 = tpu.iota {dimensions = array<i32: 1>} : vector<1x8xi32>
    %c4_i32 = arith.constant 4 : i32
    %c0_i32_462 = arith.constant 0 : i32
    %959 = arith.cmpi eq, %c4_i32, %c0_i32_462 : i32
    %c1_i32_463 = arith.constant 1 : i32
    %960 = arith.select %959, %c1_i32_463, %c4_i32 : i32
    %961 = vector.broadcast %960 : i32 to vector<1x8xi32>
    %962 = arith.remsi %958, %961 : vector<1x8xi32>
    %c0_i32_464 = arith.constant 0 : i32
    %963 = vector.broadcast %c0_i32_464 : i32 to vector<1x8xi32>
    %964 = arith.cmpi ne, %962, %963 : vector<1x8xi32>
    %c0_i32_465 = arith.constant 0 : i32
    %965 = vector.broadcast %c0_i32_465 : i32 to vector<1x8xi32>
    %966 = arith.cmpi slt, %962, %965 : vector<1x8xi32>
    %c0_i32_466 = arith.constant 0 : i32
    %967 = arith.cmpi slt, %960, %c0_i32_466 : i32
    %968 = vector.broadcast %967 : i1 to vector<1x8xi1>
    %969 = vector.broadcast %968 : vector<1x8xi1> to vector<1x8xi1>
    %970 = arith.xori %966, %969 : vector<1x8xi1>
    %971 = arith.andi %970, %964 : vector<1x8xi1>
    %972 = vector.broadcast %960 : i32 to vector<1x8xi32>
    %973 = arith.addi %962, %972 : vector<1x8xi32>
    %974 = arith.select %971, %973, %962 : vector<1x8xi1>, vector<1x8xi32>
    %c-1_i32_467 = arith.constant -1 : i32
    %975 = vector.broadcast %c-1_i32_467 : i32 to vector<1x8xi32>
    %976 = arith.addi %974, %975 : vector<1x8xi32>
    %c0_i32_468 = arith.constant 0 : i32
    %977 = vector.broadcast %c0_i32_468 : i32 to vector<1x8xi32>
    %978 = arith.cmpi sge, %976, %977 : vector<1x8xi32>
    %c-1_i32_469 = arith.constant -1 : i32
    %979 = vector.broadcast %c-1_i32_469 : i32 to vector<1x8xi32>
    %980 = arith.addi %974, %979 : vector<1x8xi32>
    %c4_i32_470 = arith.constant 4 : i32
    %981 = vector.broadcast %c4_i32_470 : i32 to vector<1x8xi32>
    %982 = arith.cmpi slt, %980, %981 : vector<1x8xi32>
    %983 = arith.andi %978, %982 : vector<1x8xi1>
    %cst_471 = arith.constant 0.000000e+00 : f32
    %984 = vector.shape_cast %983 : vector<1x8xi1> to vector<1x8xi1>
    %985 = vector.broadcast %984 : vector<1x8xi1> to vector<16x8xi1>
    %986 = vector.broadcast %cst_471 : f32 to vector<16x8xf32>
    %987 = arith.select %985, %957, %986 : vector<16x8xi1>, vector<16x8xf32>
    %c7_i32 = arith.constant 7 : i32
    %988 = tpu.dynamic_rotate %956 by %c7_i32 dim 1 : vector<16x8xf32>, i32 -> vector<16x8xf32>
    %c1_i32_472 = arith.constant 1 : i32
    %989 = vector.broadcast %c1_i32_472 : i32 to vector<1x8xi32>
    %990 = arith.addi %974, %989 : vector<1x8xi32>
    %c0_i32_473 = arith.constant 0 : i32
    %991 = vector.broadcast %c0_i32_473 : i32 to vector<1x8xi32>
    %992 = arith.cmpi sge, %990, %991 : vector<1x8xi32>
    %c1_i32_474 = arith.constant 1 : i32
    %993 = vector.broadcast %c1_i32_474 : i32 to vector<1x8xi32>
    %994 = arith.addi %974, %993 : vector<1x8xi32>
    %c4_i32_475 = arith.constant 4 : i32
    %995 = vector.broadcast %c4_i32_475 : i32 to vector<1x8xi32>
    %996 = arith.cmpi slt, %994, %995 : vector<1x8xi32>
    %997 = arith.andi %992, %996 : vector<1x8xi1>
    %cst_476 = arith.constant 0.000000e+00 : f32
    %998 = vector.shape_cast %997 : vector<1x8xi1> to vector<1x8xi1>
    %999 = vector.broadcast %998 : vector<1x8xi1> to vector<16x8xi1>
    %1000 = vector.broadcast %cst_476 : f32 to vector<16x8xf32>
    %1001 = arith.select %999, %988, %1000 : vector<16x8xi1>, vector<16x8xf32>
    %1002 = tpu.concatenate %987, %956, %1001 in 0 : vector<16x8xf32>, vector<16x8xf32>, vector<16x8xf32> -> vector<48x8xf32>
    %c16 = arith.constant 16 : index
    %c0_477 = arith.constant 0 : index
    %c0_478 = arith.constant 0 : index
    %1003 = vector.load %arg2[%c16, %c0_477, %c0_478] : memref<18x16x48xbf16, #tpu.memory_space<vmem>>, vector<1x16x48xbf16>
    %1004 = vector.shape_cast %1003 : vector<1x16x48xbf16> to vector<16x48xbf16>
    %1005 = arith.truncf %1002 : vector<48x8xf32> to vector<48x8xbf16>
    %cst_479 = arith.constant dense<0.000000e+00> : vector<16x8xf32>
    %1006 = tpu.matmul %1004, %1005, %cst_479 {dimension_numbers = #tpu.dot_dimension_numbers<[1], [0], [0], [1], [0, 0, 1, 1], [], []>} : vector<16x48xbf16>, vector<48x8xbf16>, vector<16x8xf32> -> vector<16x8xf32>
    %c16_480 = arith.constant 16 : index
    %c0_481 = arith.constant 0 : index
    %c0_482 = arith.constant 0 : index
    %1007 = vector.load %arg4[%c16_480, %c0_481, %c0_482] : memref<18x16x1xf32, #tpu.memory_space<vmem>>, vector<1x16x1xf32>
    %1008 = vector.shape_cast %1007 : vector<1x16x1xf32> to vector<16x1xf32>
    %1009 = vector.broadcast %1008 : vector<16x1xf32> to vector<16x8xf32>
    %1010 = arith.addf %1006, %1009 : vector<16x8xf32>
    %c15_i32_483 = arith.constant 15 : i32
    %1011 = tpu.dynamic_rotate %891 by %c15_i32_483 dim 1 : vector<16x16xf32>, i32 -> vector<16x16xf32>
    %c1_i32_484 = arith.constant 1 : i32
    %1012 = vector.broadcast %c1_i32_484 : i32 to vector<1x16xi32>
    %1013 = arith.addi %736, %1012 : vector<1x16xi32>
    %c0_i32_485 = arith.constant 0 : i32
    %1014 = vector.broadcast %c0_i32_485 : i32 to vector<1x16xi32>
    %1015 = arith.cmpi sge, %1013, %1014 : vector<1x16xi32>
    %c1_i32_486 = arith.constant 1 : i32
    %1016 = vector.broadcast %c1_i32_486 : i32 to vector<1x16xi32>
    %1017 = arith.addi %736, %1016 : vector<1x16xi32>
    %c8_i32_487 = arith.constant 8 : i32
    %1018 = vector.broadcast %c8_i32_487 : i32 to vector<1x16xi32>
    %1019 = arith.cmpi slt, %1017, %1018 : vector<1x16xi32>
    %1020 = arith.andi %1015, %1019 : vector<1x16xi1>
    %cst_488 = arith.constant 0.000000e+00 : f32
    %1021 = vector.shape_cast %1020 : vector<1x16xi1> to vector<1x16xi1>
    %1022 = vector.broadcast %1021 : vector<1x16xi1> to vector<16x16xi1>
    %1023 = vector.broadcast %cst_488 : f32 to vector<16x16xf32>
    %1024 = arith.select %1022, %1011, %1023 : vector<16x16xi1>, vector<16x16xf32>
    %1025 = arith.maximumf %891, %1024 : vector<16x16xf32>
    %c3_489 = arith.constant 3 : index
    %c0_490 = arith.constant 0 : index
    %c0_491 = arith.constant 0 : index
    %1026 = vector.load %arg5[%c3_489, %c0_490, %c0_491] : memref<4x128x64xf32, #tpu.memory_space<vmem>>, vector<1x128x64xf32>
    %1027 = vector.shape_cast %1026 : vector<1x128x64xf32> to vector<128x64xf32>
    %1028 = vector.extract_strided_slice %1027 {offsets = [0, 0], sizes = [16, 8], strides = [1, 1]} : vector<128x64xf32> to vector<16x8xf32>
    %cst_492 = arith.constant dense<0.000000e+00> : vector<16x8xf32>
    %1029 = tpu.matmul %1025, %1028, %cst_492 {dimension_numbers = #tpu.dot_dimension_numbers<[1], [0], [0], [1], [0, 0, 1, 1], [], []>} : vector<16x16xf32>, vector<16x8xf32>, vector<16x8xf32> -> vector<16x8xf32>
    %1030 = arith.addf %1010, %1029 : vector<16x8xf32>
    %c16_493 = arith.constant 16 : index
    %c0_494 = arith.constant 0 : index
    %c0_495 = arith.constant 0 : index
    %1031 = vector.load %arg3[%c16_493, %c0_494, %c0_495] : memref<17x16x2xf32, #tpu.memory_space<vmem>>, vector<1x16x2xf32>
    %1032 = vector.shape_cast %1031 : vector<1x16x2xf32> to vector<16x2xf32>
    %1033 = vector.extract_strided_slice %1032 {offsets = [0, 0], sizes = [16, 1], strides = [1, 1]} : vector<16x2xf32> to vector<16x1xf32>
    %1034 = vector.broadcast %1033 : vector<16x1xf32> to vector<16x8xf32>
    %1035 = arith.mulf %1030, %1034 : vector<16x8xf32>
    %c16_496 = arith.constant 16 : index
    %c0_497 = arith.constant 0 : index
    %c0_498 = arith.constant 0 : index
    %1036 = vector.load %arg3[%c16_496, %c0_497, %c0_498] : memref<17x16x2xf32, #tpu.memory_space<vmem>>, vector<1x16x2xf32>
    %1037 = vector.shape_cast %1036 : vector<1x16x2xf32> to vector<16x2xf32>
    %1038 = vector.extract_strided_slice %1037 {offsets = [0, 1], sizes = [16, 1], strides = [1, 1]} : vector<16x2xf32> to vector<16x1xf32>
    %1039 = vector.broadcast %1038 : vector<16x1xf32> to vector<16x8xf32>
    %1040 = arith.addf %1035, %1039 : vector<16x8xf32>
    %cst_499 = arith.constant 0.000000e+00 : f32
    %1041 = vector.broadcast %cst_499 : f32 to vector<16x8xf32>
    %1042 = arith.maximumf %1040, %1041 : vector<16x8xf32>
    %c17 = arith.constant 17 : index
    %c0_500 = arith.constant 0 : index
    %c0_501 = arith.constant 0 : index
    %1043 = vector.load %arg2[%c17, %c0_500, %c0_501] : memref<18x16x48xbf16, #tpu.memory_space<vmem>>, vector<1x16x48xbf16>
    %1044 = vector.shape_cast %1043 : vector<1x16x48xbf16> to vector<16x48xbf16>
    %1045 = vector.extract_strided_slice %1044 {offsets = [0, 0], sizes = [5, 16], strides = [1, 1]} : vector<16x48xbf16> to vector<5x16xbf16>
    %1046 = arith.truncf %1042 : vector<16x8xf32> to vector<16x8xbf16>
    %cst_502 = arith.constant dense<0.000000e+00> : vector<5x8xf32>
    %1047 = tpu.matmul %1045, %1046, %cst_502 {dimension_numbers = #tpu.dot_dimension_numbers<[1], [0], [0], [1], [0, 0, 1, 1], [], []>} : vector<5x16xbf16>, vector<16x8xbf16>, vector<5x8xf32> -> vector<5x8xf32>
    %1048 = vector.extract_strided_slice %1047 {offsets = [0, 0], sizes = [5, 4], strides = [1, 1]} : vector<5x8xf32> to vector<5x4xf32>
    %cst_503 = arith.constant dense<0.000000e+00> : vector<5xf32>
    %1049 = vector.multi_reduction <add>, %1048, %cst_503 [1] : vector<5x4xf32> to vector<5xf32>
    %1050 = vector.shape_cast %1049 : vector<5xf32> to vector<5x1xf32>
    %cst_504 = arith.constant 4.000000e+00 : f32
    %1051 = vector.broadcast %cst_504 : f32 to vector<5x1xf32>
    %1052 = arith.divf %1050, %1051 : vector<5x1xf32>
    %1053 = vector.extract_strided_slice %1047 {offsets = [0, 4], sizes = [5, 4], strides = [1, 1]} : vector<5x8xf32> to vector<5x4xf32>
    %cst_505 = arith.constant dense<0.000000e+00> : vector<5xf32>
    %1054 = vector.multi_reduction <add>, %1053, %cst_505 [1] : vector<5x4xf32> to vector<5xf32>
    %1055 = vector.shape_cast %1054 : vector<5xf32> to vector<5x1xf32>
    %cst_506 = arith.constant 4.000000e+00 : f32
    %1056 = vector.broadcast %cst_506 : f32 to vector<5x1xf32>
    %1057 = arith.divf %1055, %1056 : vector<5x1xf32>
    %1058 = tpu.concatenate %1052, %1057 in 1 : vector<5x1xf32>, vector<5x1xf32> -> vector<5x2xf32>
    %c17_507 = arith.constant 17 : index
    %c0_508 = arith.constant 0 : index
    %c0_509 = arith.constant 0 : index
    %1059 = vector.load %arg4[%c17_507, %c0_508, %c0_509] : memref<18x16x1xf32, #tpu.memory_space<vmem>>, vector<1x16x1xf32>
    %1060 = vector.shape_cast %1059 : vector<1x16x1xf32> to vector<16x1xf32>
    %1061 = vector.extract_strided_slice %1060 {offsets = [0, 0], sizes = [5, 1], strides = [1, 1]} : vector<16x1xf32> to vector<5x1xf32>
    %1062 = vector.broadcast %1061 : vector<5x1xf32> to vector<5x2xf32>
    %1063 = arith.addf %1058, %1062 : vector<5x2xf32>
    %c0_510 = arith.constant 0 : index
    %c0_511 = arith.constant 0 : index
    %c0_512 = arith.constant 0 : index
    %1064 = vector.load %arg6[%c0_510, %c0_511, %c0_512] : memref<1x5x2xf32, #tpu.memory_space<vmem>>, vector<1x5x2xf32>
    %1065 = vector.shape_cast %1064 : vector<1x5x2xf32> to vector<5x2xf32>
    %1066 = vector.shape_cast %1063 : vector<5x2xf32> to vector<1x5x2xf32>
    tpu.vector_store %arg6[%c0_510, %c0_511, %c0_512], %1066 {strides = array<i32>} : memref<1x5x2xf32, #tpu.memory_space<vmem>>, vector<1x5x2xf32>,
    return
  }
  func.func @transform_0(%arg0: i32) -> (i32, i32, i32) {
    %c0_i32 = arith.constant 0 : i32
    %c0_i32_0 = arith.constant 0 : i32
    %c0_i32_1 = arith.constant 0 : i32
    return %arg0, %c0_i32, %c0_i32_0 : i32, i32, i32
  }
  func.func @transform_1(%arg0: i32) -> (i32, i32, i32) {
    %c0_i32 = arith.constant 0 : i32
    %c0_i32_0 = arith.constant 0 : i32
    %c0_i32_1 = arith.constant 0 : i32
    %c0_i32_2 = arith.constant 0 : i32
    return %c0_i32, %c0_i32_0, %c0_i32_1 : i32, i32, i32
  }
  func.func @transform_2(%arg0: i32) -> (i32, i32, i32) {
    %c0_i32 = arith.constant 0 : i32
    %c0_i32_0 = arith.constant 0 : i32
    %c0_i32_1 = arith.constant 0 : i32
    %c0_i32_2 = arith.constant 0 : i32
    return %c0_i32, %c0_i32_0, %c0_i32_1 : i32, i32, i32
  }
  func.func @transform_3(%arg0: i32) -> (i32, i32, i32) {
    %c0_i32 = arith.constant 0 : i32
    %c0_i32_0 = arith.constant 0 : i32
    %c0_i32_1 = arith.constant 0 : i32
    %c0_i32_2 = arith.constant 0 : i32
    return %c0_i32, %c0_i32_0, %c0_i32_1 : i32, i32, i32
  }
  func.func @transform_4(%arg0: i32) -> (i32, i32, i32) {
    %c0_i32 = arith.constant 0 : i32
    %c0_i32_0 = arith.constant 0 : i32
    %c0_i32_1 = arith.constant 0 : i32
    %c0_i32_2 = arith.constant 0 : i32
    return %c0_i32, %c0_i32_0, %c0_i32_1 : i32, i32, i32
  }
  func.func @transform_5(%arg0: i32) -> (i32, i32, i32) {
    %c0_i32 = arith.constant 0 : i32
    %c0_i32_0 = arith.constant 0 : i32
    %c0_i32_1 = arith.constant 0 : i32
    return %arg0, %c0_i32, %c0_i32_0 : i32, i32, i32
  }
}

</mosaic_0001>

<llo_original>
// kernel: tpu_custom_call.1
$region0: #{tpu_custom_call.1}
  #allocation0 [shape = 'u32[]', space=smem, size = 0x4, offset = 0x4, fixed_abs, tag = 'smem constant byte address 0x4 - core index']
  #allocation1 [shape = 'u32[72,128]{1,0:T(1,128)}', space=vmem, size = 0x9000, scoped, tag = 'internal scratch']
  %s0 = inlined_call_operand.vmem [shape: f32[2,4,64], index: 0, kind: input, shape index: {}]
  %s1 = inlined_call_operand.vmem [shape: bf16[18,16,48], index: 1, kind: input, shape index: {}]
  %s2 = inlined_call_operand.vmem [shape: f32[17,16,2], index: 2, kind: input, shape index: {}]
  %s3 = inlined_call_operand.vmem [shape: f32[18,16,1], index: 3, kind: input, shape index: {}]
  %s4 = inlined_call_operand.vmem [shape: f32[4,128,64], index: 4, kind: input, shape index: {}]
  %s5 = inlined_call_operand.vmem [shape: f32[1,5,2], index: 5, kind: output, shape index: {}]
  %s6 = sld [smem:[#allocation0]]
  $region30: #{tpu_custom_call.1} parent=0
    _
  %s8 = ssub.s32 1, %s6
  %s9 = scalar_select 0, %s8, %s6
  // Predicated region
  $region2: #{tpu_custom_call.1} parent=0 // pred_check
    _
  $region3: #{tpu_custom_call.1} parent=0 // pred_check_branch
    %11 = sbr.rel (0) target = $region5
  $region4: #{tpu_custom_call.1} parent=0 // pred_region
    _
  $region5: #{tpu_custom_call.1} parent=0 // pred_fallthru
    _
  // Predicated region
  $region6: #{tpu_custom_call.1} parent=0 // pred_check
    _
  $region7: #{tpu_custom_call.1} parent=0 // pred_check_branch
    %13 = sbr.rel (0) target = $region9
  $region8: #{tpu_custom_call.1} parent=0 // pred_region
    _
  $region9: #{tpu_custom_call.1} parent=0 // pred_fallthru
    _
  // Predicated region
  $region10: #{tpu_custom_call.1} parent=0 // pred_check
    _
  $region11: #{tpu_custom_call.1} parent=0 // pred_check_branch
    %15 = sbr.rel (0) target = $region13
  $region12: #{tpu_custom_call.1} parent=0 // pred_region
    _
  $region13: #{tpu_custom_call.1} parent=0 // pred_fallthru
    _
  // Predicated region
  $region14: #{tpu_custom_call.1} parent=0 // pred_check
    _
  $region15: #{tpu_custom_call.1} parent=0 // pred_check_branch
    %17 = sbr.rel (0) target = $region17
  $region16: #{tpu_custom_call.1} parent=0 // pred_region
    _
  $region17: #{tpu_custom_call.1} parent=0 // pred_fallthru
    _
  // Predicated region
  $region18: #{tpu_custom_call.1} parent=0 // pred_check
    _
  $region19: #{tpu_custom_call.1} parent=0 // pred_check_branch
    %19 = sbr.rel (0) target = $region21
  $region20: #{tpu_custom_call.1} parent=0 // pred_region
    _
  $region21: #{tpu_custom_call.1} parent=0 // pred_fallthru
    _
  %v21 = vld [vmem:[%s0] sm:$0xf]
  %s22 = scalar_lea.vmem %s0, 4
  %v23 = vld [vmem:[%s22] sm:$0xf]
  %25 = vrot.lane.b32.xlu0 %v23, 64
  %v26 = vpop.permute.xlu0 %25
  %vm28 = vcmask 523264
  %v29 = vsel %vm28, %v21, %v26
  %30 = vrot.lane.b32.xlu0 %v29, 1
  %v31 = vpop.permute.xlu0 %30
  %v32 = vlaneseq
  %v33 = vand.u32 %v32, 127
  %vm34 = vcmp.lt.s32.totalorder %v33, 0
  %v35 = vsub.s32 0, %v33
  %v36 = vsel %vm34, %v35, %v33
  %v37 = vshrl.u32 %v36, 6
  %v38 = vand.u32 %v36, 63
  %v39 = vsub.s32 0, %v38
  %v40 = vsel %vm34, %v39, %v38
  %vm41 = vcmp.ne.s32.totalorder %v40, 0
  %vm42 = vcmp.lt.s32.totalorder %v40, 0
  %vm43 = vmand %vm42, %vm41
  %v44 = vadd.s32 %v40, 64
  %v45 = vsel %vm43, %v44, %v40
  %v46 = vadd.s32 %v45, 4294967295
  %vm47 = vcmp.ge.s32.totalorder %v46, 0
  %vm48 = vcmp.lt.s32.totalorder %v46, 64
  %vm49 = vmand %vm47, %vm48
  %v50 = vsel %vm49, 1, 0
  %vm51 = vcmp.eq.s32.totalorder %v50, 1
  %v52 = vsel %vm51, %v31, 0.0
  %53 = vrot.lane.b32.xlu0 %v29, 127
  %v54 = vpop.permute.xlu0 %53
  %v55 = vadd.s32 %v45, 1
  %vm56 = vcmp.ge.s32.totalorder %v55, 0
  %vm57 = vcmp.lt.s32.totalorder %v55, 64
  %vm58 = vmand %vm56, %vm57
  %v59 = vsel %vm58, 1, 0
  %vm60 = vcmp.eq.s32.totalorder %v59, 1
  %v61 = vsel %vm60, %v54, 0.0
  %v63 = vrot.slane %v29, 4
  %vm65 = vcmask 1043456
  %v66 = vsel %vm65, %v52, %v63
  %v67 = vld [vmem:[%s1] sm:$0xf]
  %v68 = vpack.c.bf16 %v61, %v66
  %v69 = vld [vmem:[%s3] sm:$0xff]
  %71 = vset.pattern.permute.xlu0 0
  %72 = vperm.xlu0 %71, %v69
  %v73 = vpop.permute.xlu0 %72
  %vm75 = vcmask 97280
  %v77 = vsel %vm75, %v67, 0
  %vm79 = vcmask 1045504
  %v81 = vsel %vm79, %v68, 0
  %83 = vmatpush.bf16.msra.mxu0 0
  %84 = vmatpush.bf16.msra.mxu0 0
  %85 = vmatpush.bf16.msra.mxu0 0
  %86 = vmatpush.bf16.msra.mxu0 0
  %87 = vmatpush.bf16.msra.mxu0 0
  %88 = vmatpush.bf16.msra.mxu0 0
  %89 = vmatpush.bf16.msra.mxu0 0
  %90 = vmatpush.bf16.msra.mxu0 %v81
  %91 = vmatmul.bf16.gmra.mxu0 %v77
  %v92 = vpop.f32.mrf.mxu0
  %v93 = vadd.f32 %v73, %v92
  %v94 = vpop.f32.mrf.mxu0
  %95 = vdwg.mxu0
  %v96 = vld [vmem:[%s2] sm:$0xff]
  %98 = vset.pattern.permute.xlu0 0
  %99 = vperm.xlu0 %98, %v96
  %v100 = vpop.permute.xlu0 %99
  %v102 = vmul.f32 %v93, %v100
  %103 = vset.pattern.permute.xlu0 1
  %104 = vperm.xlu0 %103, %v96
  %v105 = vpop.permute.xlu0 %104
  %v107 = vadd.f32 %v102, %v105
  %v108 = vmax.f32 %v107, 0.0
  %109 = vrot.lane.b32.xlu0 %v108, 1
  %v110 = vpop.permute.xlu0 %109
  %v111 = vsel %vm51, %v110, 0.0
  %112 = vrot.lane.b32.xlu0 %v108, 127
  %v113 = vpop.permute.xlu0 %112
  %v114 = vsel %vm60, %v113, 0.0
  %s115 = scalar_lea.vmem %s1, 8
  %v116 = vld [vmem:[%s115] sm:$0xf]
  %v117 = vpack.c.bf16 %v108, %v111
  %v118 = vpack.c.bf16 %v114, %v114
  %s119 = scalar_lea.vmem %s3, 16
  %v120 = vld [vmem:[%s119] sm:$0xff]
  %122 = vset.pattern.permute.xlu0 0
  %123 = vperm.xlu0 %122, %v120
  %v124 = vpop.permute.xlu0 %123
  %vm126 = vcmask 195584
  %v128 = vsel %vm126, %v116, 0
  %v131 = vsel %vm65, %v118, 0
  %133 = vmatpush.bf16.msra.mxu0 0
  %134 = vmatpush.bf16.msra.mxu0 0
  %135 = vmatpush.bf16.msra.mxu0 0
  %136 = vmatpush.bf16.msra.mxu0 0
  %137 = vmatpush.bf16.msra.mxu0 0
  %138 = vmatpush.bf16.msra.mxu0 0
  %139 = vmatpush.bf16.msra.mxu0 %v131
  %140 = vmatpush.bf16.msra.mxu0 %v117
  %141 = vmatmul.bf16.gmra.mxu0 %v128
  %v142 = vpop.f32.mrf.mxu0
  %v143 = vadd.f32 %v124, %v142
  %v144 = vpop.f32.mrf.mxu0
  %145 = vdwg.mxu0
  %s146 = scalar_lea.vmem %s2, 16
  %v147 = vld [vmem:[%s146] sm:$0xff]
  %149 = vset.pattern.permute.xlu0 0
  %150 = vperm.xlu0 %149, %v147
  %v151 = vpop.permute.xlu0 %150
  %v153 = vmul.f32 %v143, %v151
  %154 = vset.pattern.permute.xlu0 1
  %155 = vperm.xlu0 %154, %v147
  %v156 = vpop.permute.xlu0 %155
  %v158 = vadd.f32 %v153, %v156
  %v159 = vmax.f32 %v158, 0.0
  %160 = vrot.lane.b32.xlu0 %v159, 1
  %v161 = vpop.permute.xlu0 %160
  %v162 = vsel %vm51, %v161, 0.0
  %163 = vrot.lane.b32.xlu0 %v159, 127
  %v164 = vpop.permute.xlu0 %163
  %v165 = vsel %vm60, %v164, 0.0
  %s166 = scalar_lea.vmem %s1, 16
  %v167 = vld [vmem:[%s166] sm:$0xf]
  %v168 = vpack.c.bf16 %v159, %v162
  %v169 = vpack.c.bf16 %v165, %v165
  %s170 = scalar_lea.vmem %s3, 32
  %v171 = vld [vmem:[%s170] sm:$0xff]
  %173 = vset.pattern.permute.xlu0 0
  %174 = vperm.xlu0 %173, %v171
  %v175 = vpop.permute.xlu0 %174
  %v178 = vsel %vm126, %v167, 0
  %v181 = vsel %vm65, %v169, 0
  %183 = vmatpush.bf16.msra.mxu0 0
  %184 = vmatpush.bf16.msra.mxu0 0
  %185 = vmatpush.bf16.msra.mxu0 0
  %186 = vmatpush.bf16.msra.mxu0 0
  %187 = vmatpush.bf16.msra.mxu0 0
  %188 = vmatpush.bf16.msra.mxu0 0
  %189 = vmatpush.bf16.msra.mxu0 %v181
  %190 = vmatpush.bf16.msra.mxu0 %v168
  %191 = vmatmul.bf16.gmra.mxu0 %v178
  %v192 = vpop.f32.mrf.mxu0
  %v193 = vadd.f32 %v175, %v192
  %v194 = vpop.f32.mrf.mxu0
  %195 = vdwg.mxu0
  %v196 = vadd.f32 %v193, %v108
  %s197 = scalar_lea.vmem %s2, 32
  %v198 = vld [vmem:[%s197] sm:$0xff]
  %200 = vset.pattern.permute.xlu0 0
  %201 = vperm.xlu0 %200, %v198
  %v202 = vpop.permute.xlu0 %201
  %v204 = vmul.f32 %v196, %v202
  %205 = vset.pattern.permute.xlu0 1
  %206 = vperm.xlu0 %205, %v198
  %v207 = vpop.permute.xlu0 %206
  %v209 = vadd.f32 %v204, %v207
  %v210 = vmax.f32 %v209, 0.0
  %211 = vrot.lane.b32.xlu0 %v210, 127
  %v212 = vpop.permute.xlu0 %211
  %v213 = vsel %vm60, %v212, 0.0
  %214 = vrot.lane.b32.xlu0 %v210, 126
  %v215 = vpop.permute.xlu0 %214
  %v216 = vadd.s32 %v45, 2
  %vm217 = vcmp.ge.s32.totalorder %v216, 0
  %vm218 = vcmp.lt.s32.totalorder %v216, 64
  %vm219 = vmand %vm217, %vm218
  %v220 = vsel %vm219, 1, 0
  %vm221 = vcmp.eq.s32.totalorder %v220, 1
  %v222 = vsel %vm221, %v215, 0.0
  %s223 = scalar_lea.vmem %s1, 24
  %v224 = vld [vmem:[%s223] sm:$0xf]
  %v225 = vpack.c.bf16 %v213, %v210
  %v226 = vpack.c.bf16 %v222, %v222
  %v228 = vsel %vm126, %v224, 0
  %v231 = vsel %vm65, %v226, 0
  %233 = vmatpush.bf16.msra.mxu0 0
  %234 = vmatpush.bf16.msra.mxu0 0
  %235 = vmatpush.bf16.msra.mxu0 0
  %236 = vmatpush.bf16.msra.mxu0 0
  %237 = vmatpush.bf16.msra.mxu0 0
  %238 = vmatpush.bf16.msra.mxu0 0
  %239 = vmatpush.bf16.msra.mxu0 %v231
  %240 = vmatpush.bf16.msra.mxu0 %v225
  %241 = vmatmul.bf16.gmra.mxu0 %v228
  %v242 = vpop.f32.mrf.mxu0
  %v243 = vadd.f32 0.0, %v242
  %v244 = vpop.f32.mrf.mxu0
  %245 = vdwg.mxu0
  %v246 = vld [vmem:[%s4] sm:$0xff]
  %v247 = vld [vmem:[%s4 + $0x8] sm:$0xff]
  %v248 = vld [vmem:[%s4 + $0x10] sm:$0xff]
  %v249 = vld [vmem:[%s4 + $0x18] sm:$0xff]
  %v250 = vld [vmem:[%s4 + $0x20] sm:$0xff]
  %v251 = vld [vmem:[%s4 + $0x28] sm:$0xff]
  %v252 = vld [vmem:[%s4 + $0x30] sm:$0xff]
  %v253 = vld [vmem:[%s4 + $0x38] sm:$0xff]
  %v254 = vld [vmem:[%s4 + $0x40] sm:$0xff]
  %v255 = vld [vmem:[%s4 + $0x48] sm:$0xff]
  %v256 = vld [vmem:[%s4 + $0x50] sm:$0xff]
  %v257 = vld [vmem:[%s4 + $0x58] sm:$0xff]
  %v258 = vld [vmem:[%s4 + $0x60] sm:$0xff]
  %v259 = vld [vmem:[%s4 + $0x68] sm:$0xff]
  %v260 = vld [vmem:[%s4 + $0x70] sm:$0xff]
  %v261 = vld [vmem:[%s4 + $0x78] sm:$0xff]
  %s262 = scalar_lea.vmem %s3, 48
  %v263 = vld [vmem:[%s262] sm:$0xff]
  %265 = vset.pattern.permute.xlu0 0
  %266 = vperm.xlu0 %265, %v263
  %v267 = vpop.permute.xlu0 %266
  %269 = vmatpush.msra.mxu0 %v261
  %270 = vmatpush.msra.mxu0 %v260
  %271 = vmatpush.msra.mxu0 %v259
  %272 = vmatpush.msra.mxu0 %v258
  %273 = vmatpush.msra.mxu0 %v257
  %274 = vmatpush.msra.mxu0 %v256
  %275 = vmatpush.msra.mxu0 %v255
  %276 = vmatpush.msra.mxu0 %v254
  %277 = vmatpush.msra.mxu0 %v253
  %278 = vmatpush.msra.mxu0 %v252
  %279 = vmatpush.msra.mxu0 %v251
  %280 = vmatpush.msra.mxu0 %v250
  %281 = vmatpush.msra.mxu0 %v249
  %282 = vmatpush.msra.mxu0 %v248
  %283 = vmatpush.msra.mxu0 %v247
  %284 = vmatpush.msra.mxu0 %v246
  %285 = vmatmul.f32.gmra.mxu0 %v243
  %v286 = vpop.f32.mrf.mxu0
  %v287 = vadd.f32 %v267, %v286
  %288 = vdwg.mxu0
  %s289 = scalar_lea.vmem %s2, 48
  %v290 = vld [vmem:[%s289] sm:$0xff]
  %292 = vset.pattern.permute.xlu0 0
  %293 = vperm.xlu0 %292, %v290
  %v294 = vpop.permute.xlu0 %293
  %v296 = vmul.f32 %v287, %v294
  %297 = vset.pattern.permute.xlu0 1
  %298 = vperm.xlu0 %297, %v290
  %v299 = vpop.permute.xlu0 %298
  %v301 = vadd.f32 %v296, %v299
  %v302 = vmax.f32 %v301, 0.0
  %vm303 = vcmask 1048064
  %304 = vrot.lane.b32.xlu0 %v302, 64
  %v305 = vpop.permute.xlu0 %304
  %v306 = vsel %vm303, %v305, %v302
  %307 = vrot.lane.b32.xlu0 %v306, 64
  %v308 = vpop.permute.xlu0 %307
  %v309 = vsel %vm303, %v308, %v302
  %vm310 = vcmp.lt.s32.totalorder %v33, 0
  %v311 = vsub.s32 0, %v33
  %v312 = vsel %vm310, %v311, %v33
  %v313 = vshrl.u32 %v312, 5
  %v314 = vand.u32 %v312, 31
  %v315 = vsub.s32 0, %v314
  %v316 = vsel %vm310, %v315, %v314
  %vm317 = vcmp.ne.s32.totalorder %v316, 0
  %vm318 = vcmp.lt.s32.totalorder %v316, 0
  %vm319 = vmand %vm318, %vm317
  %v320 = vadd.s32 %v316, 32
  %v321 = vsel %vm319, %v320, %v316
  %v322 = vadd.s32 %v321, 4294967295
  %vm323 = vcmp.ge.s32.totalorder %v322, 0
  %vm324 = vcmp.lt.s32.totalorder %v322, 32
  %vm325 = vmand %vm323, %vm324
  %v326 = vsel %vm325, 1, 0
  %vm327 = vcmp.eq.s32.totalorder %v326, 1
  %329 = vrot.lane.b32.xlu0 %v309, 65
  %v330 = vpop.permute.xlu0 %329
  %v332 = vsel %vm327, %v330, 0.0
  %v333 = vadd.s32 %v321, 1
  %vm334 = vcmp.ge.s32.totalorder %v333, 0
  %vm335 = vcmp.lt.s32.totalorder %v333, 32
  %vm336 = vmand %vm334, %vm335
  %v337 = vsel %vm336, 1, 0
  %vm338 = vcmp.eq.s32.totalorder %v337, 1
  %339 = vrot.lane.b32.xlu0 %v309, 127
  %v340 = vpop.permute.xlu0 %339
  %v342 = vsel %vm338, %v340, 0.0
  %s343 = scalar_lea.vmem %s1, 32
  %v344 = vld [vmem:[%s343] sm:$0xf]
  %v345 = vpack.c.bf16 %v302, %v332
  %v346 = vpack.c.bf16 %v342, %v342
  %s347 = scalar_lea.vmem %s3, 64
  %v348 = vld [vmem:[%s347] sm:$0xff]
  %350 = vset.pattern.permute.xlu0 0
  %351 = vperm.xlu0 %350, %v348
  %v352 = vpop.permute.xlu0 %351
  %v355 = vsel %vm126, %v344, 0
  %v358 = vsel %vm65, %v346, 0
  %360 = vmatpush.bf16.msra.mxu0 0
  %361 = vmatpush.bf16.msra.mxu0 0
  %362 = vmatpush.bf16.msra.mxu0 0
  %363 = vmatpush.bf16.msra.mxu0 0
  %364 = vmatpush.bf16.msra.mxu0 0
  %365 = vmatpush.bf16.msra.mxu0 0
  %366 = vmatpush.bf16.msra.mxu0 %v358
  %367 = vmatpush.bf16.msra.mxu0 %v345
  %368 = vmatmul.bf16.gmra.mxu0 %v355
  %v369 = vpop.f32.mrf.mxu0
  %v370 = vadd.f32 %v352, %v369
  %v371 = vpop.f32.mrf.mxu0
  %372 = vdwg.mxu0
  %373 = vrot.lane.b32.xlu0 %v196, 127
  %v374 = vpop.permute.xlu0 %373
  %v375 = vsel %vm60, %v374, 0.0
  %v376 = vmax.f32 %v196, %v375
  %377 = vmatpush.msra.mxu0 %v261
  %378 = vmatpush.msra.mxu0 %v260
  %379 = vmatpush.msra.mxu0 %v259
  %380 = vmatpush.msra.mxu0 %v258
  %381 = vmatpush.msra.mxu0 %v257
  %382 = vmatpush.msra.mxu0 %v256
  %383 = vmatpush.msra.mxu0 %v255
  %384 = vmatpush.msra.mxu0 %v254
  %385 = vmatpush.msra.mxu0 %v253
  %386 = vmatpush.msra.mxu0 %v252
  %387 = vmatpush.msra.mxu0 %v251
  %388 = vmatpush.msra.mxu0 %v250
  %389 = vmatpush.msra.mxu0 %v249
  %390 = vmatpush.msra.mxu0 %v248
  %391 = vmatpush.msra.mxu0 %v247
  %392 = vmatpush.msra.mxu0 %v246
  %393 = vmatmul.f32.gmra.mxu0 %v376
  %v394 = vpop.f32.mrf.mxu0
  %v395 = vadd.f32 0.0, %v394
  %396 = vdwg.mxu0
  %v397 = vadd.f32 %v370, %v395
  %s398 = scalar_lea.vmem %s2, 64
  %v399 = vld [vmem:[%s398] sm:$0xff]
  %401 = vset.pattern.permute.xlu0 0
  %402 = vperm.xlu0 %401, %v399
  %v403 = vpop.permute.xlu0 %402
  %v405 = vmul.f32 %v397, %v403
  %406 = vset.pattern.permute.xlu0 1
  %407 = vperm.xlu0 %406, %v399
  %v408 = vpop.permute.xlu0 %407
  %v410 = vadd.f32 %v405, %v408
  %v411 = vmax.f32 %v410, 0.0
  %412 = vrot.lane.b32.xlu0 %v411, 64
  %v413 = vpop.permute.xlu0 %412
  %v414 = vsel %vm303, %v413, %v411
  %415 = vrot.lane.b32.xlu0 %v414, 64
  %v416 = vpop.permute.xlu0 %415
  %v417 = vsel %vm303, %v416, %v411
  %419 = vrot.lane.b32.xlu0 %v417, 65
  %v420 = vpop.permute.xlu0 %419
  %v422 = vsel %vm327, %v420, 0.0
  %423 = vrot.lane.b32.xlu0 %v417, 127
  %v424 = vpop.permute.xlu0 %423
  %v426 = vsel %vm338, %v424, 0.0
  %s427 = scalar_lea.vmem %s1, 40
  %v428 = vld [vmem:[%s427] sm:$0xf]
  %v429 = vpack.c.bf16 %v411, %v422
  %v430 = vpack.c.bf16 %v426, %v426
  %s431 = scalar_lea.vmem %s3, 80
  %v432 = vld [vmem:[%s431] sm:$0xff]
  %434 = vset.pattern.permute.xlu0 0
  %435 = vperm.xlu0 %434, %v432
  %v436 = vpop.permute.xlu0 %435
  %v439 = vsel %vm126, %v428, 0
  %v442 = vsel %vm65, %v430, 0
  %444 = vmatpush.bf16.msra.mxu0 0
  %445 = vmatpush.bf16.msra.mxu0 0
  %446 = vmatpush.bf16.msra.mxu0 0
  %447 = vmatpush.bf16.msra.mxu0 0
  %448 = vmatpush.bf16.msra.mxu0 0
  %449 = vmatpush.bf16.msra.mxu0 0
  %450 = vmatpush.bf16.msra.mxu0 %v442
  %451 = vmatpush.bf16.msra.mxu0 %v429
  %452 = vmatmul.bf16.gmra.mxu0 %v439
  %v453 = vpop.f32.mrf.mxu0
  %v454 = vadd.f32 %v436, %v453
  %v455 = vpop.f32.mrf.mxu0
  %456 = vdwg.mxu0
  %s457 = scalar_lea.vmem %s2, 80
  %v458 = vld [vmem:[%s457] sm:$0xff]
  %460 = vset.pattern.permute.xlu0 0
  %461 = vperm.xlu0 %460, %v458
  %v462 = vpop.permute.xlu0 %461
  %v464 = vmul.f32 %v454, %v462
  %465 = vset.pattern.permute.xlu0 1
  %466 = vperm.xlu0 %465, %v458
  %v467 = vpop.permute.xlu0 %466
  %v469 = vadd.f32 %v464, %v467
  %v470 = vmax.f32 %v469, 0.0
  %471 = vrot.lane.b32.xlu0 %v470, 64
  %v472 = vpop.permute.xlu0 %471
  %v473 = vsel %vm303, %v472, %v470
  %474 = vrot.lane.b32.xlu0 %v473, 64
  %v475 = vpop.permute.xlu0 %474
  %v476 = vsel %vm303, %v475, %v470
  %478 = vrot.lane.b32.xlu0 %v476, 65
  %v479 = vpop.permute.xlu0 %478
  %v481 = vsel %vm327, %v479, 0.0
  %482 = vrot.lane.b32.xlu0 %v476, 127
  %v483 = vpop.permute.xlu0 %482
  %v485 = vsel %vm338, %v483, 0.0
  %s486 = scalar_lea.vmem %s1, 48
  %v487 = vld [vmem:[%s486] sm:$0xf]
  %v488 = vpack.c.bf16 %v470, %v481
  %v489 = vpack.c.bf16 %v485, %v485
  %s490 = scalar_lea.vmem %s3, 96
  %v491 = vld [vmem:[%s490] sm:$0xff]
  %493 = vset.pattern.permute.xlu0 0
  %494 = vperm.xlu0 %493, %v491
  %v495 = vpop.permute.xlu0 %494
  %v498 = vsel %vm126, %v487, 0
  %v501 = vsel %vm65, %v489, 0
  %503 = vmatpush.bf16.msra.mxu0 0
  %504 = vmatpush.bf16.msra.mxu0 0
  %505 = vmatpush.bf16.msra.mxu0 0
  %506 = vmatpush.bf16.msra.mxu0 0
  %507 = vmatpush.bf16.msra.mxu0 0
  %508 = vmatpush.bf16.msra.mxu0 0
  %509 = vmatpush.bf16.msra.mxu0 %v501
  %510 = vmatpush.bf16.msra.mxu0 %v488
  %511 = vmatmul.bf16.gmra.mxu0 %v498
  %v512 = vpop.f32.mrf.mxu0
  %v513 = vadd.f32 %v495, %v512
  %v514 = vpop.f32.mrf.mxu0
  %515 = vdwg.mxu0
  %v516 = vadd.f32 %v513, %v397
  %s517 = scalar_lea.vmem %s2, 96
  %v518 = vld [vmem:[%s517] sm:$0xff]
  %520 = vset.pattern.permute.xlu0 0
  %521 = vperm.xlu0 %520, %v518
  %v522 = vpop.permute.xlu0 %521
  %v524 = vmul.f32 %v516, %v522
  %525 = vset.pattern.permute.xlu0 1
  %526 = vperm.xlu0 %525, %v518
  %v527 = vpop.permute.xlu0 %526
  %v529 = vadd.f32 %v524, %v527
  %v530 = vmax.f32 %v529, 0.0
  %531 = vrot.lane.b32.xlu0 %v530, 64
  %v532 = vpop.permute.xlu0 %531
  %v533 = vsel %vm303, %v532, %v530
  %534 = vrot.lane.b32.xlu0 %v533, 64
  %v535 = vpop.permute.xlu0 %534
  %v536 = vsel %vm303, %v535, %v530
  %538 = vrot.lane.b32.xlu0 %v536, 127
  %v539 = vpop.permute.xlu0 %538
  %v541 = vsel %vm338, %v539, 0.0
  %v542 = vadd.s32 %v321, 2
  %vm543 = vcmp.ge.s32.totalorder %v542, 0
  %vm544 = vcmp.lt.s32.totalorder %v542, 32
  %vm545 = vmand %vm543, %vm544
  %v546 = vsel %vm545, 1, 0
  %vm547 = vcmp.eq.s32.totalorder %v546, 1
  %548 = vrot.lane.b32.xlu0 %v536, 126
  %v549 = vpop.permute.xlu0 %548
  %v551 = vsel %vm547, %v549, 0.0
  %s552 = scalar_lea.vmem %s1, 56
  %v553 = vld [vmem:[%s552] sm:$0xf]
  %v554 = vpack.c.bf16 %v541, %v530
  %v555 = vpack.c.bf16 %v551, %v551
  %v557 = vsel %vm126, %v553, 0
  %v560 = vsel %vm65, %v555, 0
  %562 = vmatpush.bf16.msra.mxu0 0
  %563 = vmatpush.bf16.msra.mxu0 0
  %564 = vmatpush.bf16.msra.mxu0 0
  %565 = vmatpush.bf16.msra.mxu0 0
  %566 = vmatpush.bf16.msra.mxu0 0
  %567 = vmatpush.bf16.msra.mxu0 0
  %568 = vmatpush.bf16.msra.mxu0 %v560
  %569 = vmatpush.bf16.msra.mxu0 %v554
  %570 = vmatmul.bf16.gmra.mxu0 %v557
  %v571 = vpop.f32.mrf.mxu0
  %v572 = vadd.f32 0.0, %v571
  %v573 = vpop.f32.mrf.mxu0
  %574 = vdwg.mxu0
  %s575 = scalar_lea.vmem %s4, 128
  %v576 = vld [vmem:[%s575] sm:$0xff]
  %v577 = vld [vmem:[%s575 + $0x8] sm:$0xff]
  %v578 = vld [vmem:[%s575 + $0x10] sm:$0xff]
  %v579 = vld [vmem:[%s575 + $0x18] sm:$0xff]
  %v580 = vld [vmem:[%s575 + $0x20] sm:$0xff]
  %v581 = vld [vmem:[%s575 + $0x28] sm:$0xff]
  %v582 = vld [vmem:[%s575 + $0x30] sm:$0xff]
  %v583 = vld [vmem:[%s575 + $0x38] sm:$0xff]
  %s584 = scalar_lea.vmem %s3, 112
  %v585 = vld [vmem:[%s584] sm:$0xff]
  %587 = vset.pattern.permute.xlu0 0
  %588 = vperm.xlu0 %587, %v585
  %v589 = vpop.permute.xlu0 %588
  %v592 = vsel %vm28, %v572, 0
  %594 = vmatpush.msra.mxu0 0.0
  %595 = vmatpush.msra.mxu0 0.0
  %596 = vmatpush.msra.mxu0 0.0
  %597 = vmatpush.msra.mxu0 0.0
  %598 = vmatpush.msra.mxu0 0.0
  %599 = vmatpush.msra.mxu0 0.0
  %600 = vmatpush.msra.mxu0 0.0
  %601 = vmatpush.msra.mxu0 0.0
  %602 = vmatpush.msra.mxu0 %v583
  %603 = vmatpush.msra.mxu0 %v582
  %604 = vmatpush.msra.mxu0 %v581
  %605 = vmatpush.msra.mxu0 %v580
  %606 = vmatpush.msra.mxu0 %v579
  %607 = vmatpush.msra.mxu0 %v578
  %608 = vmatpush.msra.mxu0 %v577
  %609 = vmatpush.msra.mxu0 %v576
  %610 = vmatmul.f32.gmra.mxu0 %v592
  %v611 = vpop.f32.mrf.mxu0
  %v612 = vadd.f32 %v589, %v611
  %613 = vdwg.mxu0
  %s614 = scalar_lea.vmem %s2, 112
  %v615 = vld [vmem:[%s614] sm:$0xff]
  %617 = vset.pattern.permute.xlu0 0
  %618 = vperm.xlu0 %617, %v615
  %v619 = vpop.permute.xlu0 %618
  %v621 = vmul.f32 %v612, %v619
  %622 = vset.pattern.permute.xlu0 1
  %623 = vperm.xlu0 %622, %v615
  %v624 = vpop.permute.xlu0 %623
  %v626 = vadd.f32 %v621, %v624
  %v627 = vmax.f32 %v626, 0.0
  %vm628 = vcmask 1047808
  %629 = vrot.lane.b32.xlu0 %v627, 32
  %v630 = vpop.permute.xlu0 %629
  %v631 = vsel %vm628, %v630, %v627
  %632 = vrot.lane.b32.xlu0 %v631, 32
  %v633 = vpop.permute.xlu0 %632
  %v634 = vsel %vm628, %v633, %v627
  %vm635 = vcmp.lt.s32.totalorder %v33, 0
  %v636 = vsub.s32 0, %v33
  %v637 = vsel %vm635, %v636, %v33
  %v638 = vshrl.u32 %v637, 4
  %v639 = vand.u32 %v637, 15
  %v640 = vsub.s32 0, %v639
  %v641 = vsel %vm635, %v640, %v639
  %vm642 = vcmp.ne.s32.totalorder %v641, 0
  %vm643 = vcmp.lt.s32.totalorder %v641, 0
  %vm644 = vmand %vm643, %vm642
  %v645 = vadd.s32 %v641, 16
  %v646 = vsel %vm644, %v645, %v641
  %v647 = vadd.s32 %v646, 4294967295
  %vm648 = vcmp.ge.s32.totalorder %v647, 0
  %vm649 = vcmp.lt.s32.totalorder %v647, 16
  %vm650 = vmand %vm648, %vm649
  %v651 = vsel %vm650, 1, 0
  %vm652 = vcmp.eq.s32.totalorder %v651, 1
  %654 = vrot.lane.b32.xlu0 %v634, 97
  %v655 = vpop.permute.xlu0 %654
  %v657 = vsel %vm652, %v655, 0.0
  %v658 = vadd.s32 %v646, 1
  %vm659 = vcmp.ge.s32.totalorder %v658, 0
  %vm660 = vcmp.lt.s32.totalorder %v658, 16
  %vm661 = vmand %vm659, %vm660
  %v662 = vsel %vm661, 1, 0
  %vm663 = vcmp.eq.s32.totalorder %v662, 1
  %664 = vrot.lane.b32.xlu0 %v634, 127
  %v665 = vpop.permute.xlu0 %664
  %v667 = vsel %vm663, %v665, 0.0
  %s668 = scalar_lea.vmem %s1, 64
  %v669 = vld [vmem:[%s668] sm:$0xf]
  %v670 = vpack.c.bf16 %v627, %v657
  %v671 = vpack.c.bf16 %v667, %v667
  %s672 = scalar_lea.vmem %s3, 128
  %v673 = vld [vmem:[%s672] sm:$0xff]
  %675 = vset.pattern.permute.xlu0 0
  %676 = vperm.xlu0 %675, %v673
  %v677 = vpop.permute.xlu0 %676
  %v680 = vsel %vm126, %v669, 0
  %v683 = vsel %vm65, %v671, 0
  %685 = vmatpush.bf16.msra.mxu0 0
  %686 = vmatpush.bf16.msra.mxu0 0
  %687 = vmatpush.bf16.msra.mxu0 0
  %688 = vmatpush.bf16.msra.mxu0 0
  %689 = vmatpush.bf16.msra.mxu0 0
  %690 = vmatpush.bf16.msra.mxu0 0
  %691 = vmatpush.bf16.msra.mxu0 %v683
  %692 = vmatpush.bf16.msra.mxu0 %v670
  %693 = vmatmul.bf16.gmra.mxu0 %v680
  %v694 = vpop.f32.mrf.mxu0
  %v695 = vadd.f32 %v677, %v694
  %v696 = vpop.f32.mrf.mxu0
  %697 = vdwg.mxu0
  %698 = vrot.lane.b32.xlu0 %v516, 64
  %v699 = vpop.permute.xlu0 %698
  %v700 = vsel %vm303, %v699, %v516
  %701 = vrot.lane.b32.xlu0 %v700, 64
  %v702 = vpop.permute.xlu0 %701
  %v703 = vsel %vm303, %v702, %v516
  %705 = vrot.lane.b32.xlu0 %v703, 127
  %v706 = vpop.permute.xlu0 %705
  %v708 = vsel %vm338, %v706, 0.0
  %v709 = vmax.f32 %v516, %v708
  %v711 = vsel %vm28, %v709, 0
  %713 = vmatpush.msra.mxu0 0.0
  %714 = vmatpush.msra.mxu0 0.0
  %715 = vmatpush.msra.mxu0 0.0
  %716 = vmatpush.msra.mxu0 0.0
  %717 = vmatpush.msra.mxu0 0.0
  %718 = vmatpush.msra.mxu0 0.0
  %719 = vmatpush.msra.mxu0 0.0
  %720 = vmatpush.msra.mxu0 0.0
  %721 = vmatpush.msra.mxu0 %v583
  %722 = vmatpush.msra.mxu0 %v582
  %723 = vmatpush.msra.mxu0 %v581
  %724 = vmatpush.msra.mxu0 %v580
  %725 = vmatpush.msra.mxu0 %v579
  %726 = vmatpush.msra.mxu0 %v578
  %727 = vmatpush.msra.mxu0 %v577
  %728 = vmatpush.msra.mxu0 %v576
  %729 = vmatmul.f32.gmra.mxu0 %v711
  %v730 = vpop.f32.mrf.mxu0
  %v731 = vadd.f32 0.0, %v730
  %732 = vdwg.mxu0
  %v733 = vadd.f32 %v695, %v731
  %s734 = scalar_lea.vmem %s2, 128
  %v735 = vld [vmem:[%s734] sm:$0xff]
  %737 = vset.pattern.permute.xlu0 0
  %738 = vperm.xlu0 %737, %v735
  %v739 = vpop.permute.xlu0 %738
  %v741 = vmul.f32 %v733, %v739
  %742 = vset.pattern.permute.xlu0 1
  %743 = vperm.xlu0 %742, %v735
  %v744 = vpop.permute.xlu0 %743
  %v746 = vadd.f32 %v741, %v744
  %v747 = vmax.f32 %v746, 0.0
  %748 = vrot.lane.b32.xlu0 %v747, 32
  %v749 = vpop.permute.xlu0 %748
  %v750 = vsel %vm628, %v749, %v747
  %751 = vrot.lane.b32.xlu0 %v750, 32
  %v752 = vpop.permute.xlu0 %751
  %v753 = vsel %vm628, %v752, %v747
  %755 = vrot.lane.b32.xlu0 %v753, 97
  %v756 = vpop.permute.xlu0 %755
  %v758 = vsel %vm652, %v756, 0.0
  %759 = vrot.lane.b32.xlu0 %v753, 127
  %v760 = vpop.permute.xlu0 %759
  %v762 = vsel %vm663, %v760, 0.0
  %s763 = scalar_lea.vmem %s1, 72
  %v764 = vld [vmem:[%s763] sm:$0xf]
  %v765 = vld [vmem:[%s763 + $0x4] sm:$0xf]
  %v766 = vpack.c.bf16 %v747, %v758
  %v767 = vpack.c.bf16 %v762, %v762
  %s768 = scalar_lea.vmem %s3, 144
  %v769 = vld [vmem:[%s768] sm:$0xff]
  %v770 = vld [vmem:[%s768 + $0x8] sm:$0xff]
  %772 = vset.pattern.permute.xlu0 0
  %773 = vperm.xlu0 %772, %v769
  %v774 = vpop.permute.xlu0 %773
  %777 = vset.pattern.permute.xlu0 0
  %778 = vperm.xlu0 %777, %v770
  %v779 = vpop.permute.xlu0 %778
  %v783 = vunpack.c.l.b16 %v764
  %v784 = vunpack.c.l.b16 %v765
  %v785 = vpack.c.b16 %v784, %v783
  %v787 = vsel %vm126, %v785, 0
  %v790 = vsel %vm65, %v767, 0
  %792 = vmatpush.bf16.msra.mxu0 0
  %793 = vmatpush.bf16.msra.mxu0 0
  %794 = vmatpush.bf16.msra.mxu0 0
  %795 = vmatpush.bf16.msra.mxu0 0
  %796 = vmatpush.bf16.msra.mxu0 0
  %797 = vmatpush.bf16.msra.mxu0 0
  %798 = vmatpush.bf16.msra.mxu0 %v790
  %799 = vmatpush.bf16.msra.mxu0 %v766
  %800 = vmatmul.bf16.gmra.mxu0 %v787
  %v801 = vpop.f32.mrf.mxu0
  %v802 = vadd.f32 %v774, %v801
  %v803 = vpop.f32.mrf.mxu0
  %v804 = vadd.f32 %v779, %v803
  %805 = vdwg.mxu0
  %s806 = scalar_lea.vmem %s2, 144
  %v807 = vld [vmem:[%s806] sm:$0xff]
  %v808 = vld [vmem:[%s806 + $0x8] sm:$0xff]
  %810 = vset.pattern.permute.xlu0 0
  %811 = vperm.xlu0 %810, %v807
  %v812 = vpop.permute.xlu0 %811
  %815 = vset.pattern.permute.xlu0 0
  %816 = vperm.xlu0 %815, %v808
  %v817 = vpop.permute.xlu0 %816
  %v819 = vmul.f32 %v802, %v812
  %v820 = vmul.f32 %v804, %v817
  %821 = vset.pattern.permute.xlu0 1
  %822 = vperm.xlu0 %821, %v807
  %v823 = vpop.permute.xlu0 %822
  %825 = vset.pattern.permute.xlu0 1
  %826 = vperm.xlu0 %825, %v808
  %v827 = vpop.permute.xlu0 %826
  %v829 = vadd.f32 %v819, %v823
  %v830 = vadd.f32 %v820, %v827
  %v831 = vmax.f32 %v829, 0.0
  %v832 = vmax.f32 %v830, 0.0
  %833 = vrot.lane.b32.xlu0 %v831, 32
  %v834 = vpop.permute.xlu0 %833
  %v835 = vsel %vm628, %v834, %v831
  %836 = vrot.lane.b32.xlu0 %v832, 32
  %v837 = vpop.permute.xlu0 %836
  %v838 = vsel %vm628, %v837, %v832
  %839 = vrot.lane.b32.xlu0 %v835, 32
  %v840 = vpop.permute.xlu0 %839
  %841 = vrot.lane.b32.xlu0 %v838, 32
  %v842 = vpop.permute.xlu0 %841
  %v843 = vsel %vm628, %v840, %v831
  %v844 = vsel %vm628, %v842, %v832
  %847 = vrot.lane.b32.xlu0 %v843, 97
  %v848 = vpop.permute.xlu0 %847
  %849 = vrot.lane.b32.xlu0 %v844, 97
  %v850 = vpop.permute.xlu0 %849
  %v853 = vsel %vm652, %v848, 0.0
  %v854 = vsel %vm652, %v850, 0.0
  %855 = vrot.lane.b32.xlu0 %v843, 127
  %v856 = vpop.permute.xlu0 %855
  %857 = vrot.lane.b32.xlu0 %v844, 127
  %v858 = vpop.permute.xlu0 %857
  %v861 = vsel %vm663, %v856, 0.0
  %v862 = vsel %vm663, %v858, 0.0
  %s863 = scalar_lea.vmem %s1, 80
  %v864 = vld [vmem:[%s863] sm:$0xf]
  %v865 = vld [vmem:[%s863 + $0x4] sm:$0xf]
  %v866 = vpack.c.bf16 %v854, %v853
  %v867 = vpack.c.bf16 %v832, %v831
  %v868 = vpack.c.bf16 %v862, %v861
  %s869 = scalar_lea.vmem %s3, 160
  %v870 = vld [vmem:[%s869] sm:$0xff]
  %v871 = vld [vmem:[%s869 + $0x8] sm:$0xff]
  %873 = vset.pattern.permute.xlu0 0
  %874 = vperm.xlu0 %873, %v870
  %v875 = vpop.permute.xlu0 %874
  %878 = vset.pattern.permute.xlu0 0
  %879 = vperm.xlu0 %878, %v871
  %v880 = vpop.permute.xlu0 %879
  %v884 = vunpack.c.l.b16 %v864
  %v885 = vunpack.c.l.b16 %v865
  %v886 = vpack.c.b16 %v885, %v884
  %vm887 = vcmask 392192
  %v889 = vsel %vm887, %v886, 0
  %891 = vmatpush.bf16.msra.mxu0 0
  %892 = vmatpush.bf16.msra.mxu0 0
  %893 = vmatpush.bf16.msra.mxu0 0
  %894 = vmatpush.bf16.msra.mxu0 0
  %895 = vmatpush.bf16.msra.mxu0 0
  %896 = vmatpush.bf16.msra.mxu0 %v868
  %897 = vmatpush.bf16.msra.mxu0 %v867
  %898 = vmatpush.bf16.msra.mxu0 %v866
  %899 = vmatmul.bf16.gmra.mxu0 %v889
  %v900 = vpop.f32.mrf.mxu0
  %v901 = vadd.f32 %v875, %v900
  %v902 = vpop.f32.mrf.mxu0
  %v903 = vadd.f32 %v880, %v902
  %904 = vdwg.mxu0
  %v906 = vrot.slane %v733, 4
  %v908 = vsel %vm65, 0.0, %v906
  %v909 = vsel %vm65, %v906, 0.0
  %v910 = vadd.f32 %v901, %v908
  %v911 = vadd.f32 %v903, %v909
  %s912 = scalar_lea.vmem %s2, 160
  %v913 = vld [vmem:[%s912] sm:$0xff]
  %v914 = vld [vmem:[%s912 + $0x8] sm:$0xff]
  %916 = vset.pattern.permute.xlu0 0
  %917 = vperm.xlu0 %916, %v913
  %v918 = vpop.permute.xlu0 %917
  %921 = vset.pattern.permute.xlu0 0
  %922 = vperm.xlu0 %921, %v914
  %v923 = vpop.permute.xlu0 %922
  %v925 = vmul.f32 %v910, %v918
  %v926 = vmul.f32 %v911, %v923
  %927 = vset.pattern.permute.xlu0 1
  %928 = vperm.xlu0 %927, %v913
  %v929 = vpop.permute.xlu0 %928
  %931 = vset.pattern.permute.xlu0 1
  %932 = vperm.xlu0 %931, %v914
  %v933 = vpop.permute.xlu0 %932
  %v935 = vadd.f32 %v925, %v929
  %v936 = vadd.f32 %v926, %v933
  %v937 = vmax.f32 %v935, 0.0
  %v938 = vmax.f32 %v936, 0.0
  %939 = vrot.lane.b32.xlu0 %v937, 32
  %v940 = vpop.permute.xlu0 %939
  %v941 = vsel %vm628, %v940, %v937
  %942 = vrot.lane.b32.xlu0 %v938, 32
  %v943 = vpop.permute.xlu0 %942
  %v944 = vsel %vm628, %v943, %v938
  %945 = vrot.lane.b32.xlu0 %v941, 32
  %v946 = vpop.permute.xlu0 %945
  %947 = vrot.lane.b32.xlu0 %v944, 32
  %v948 = vpop.permute.xlu0 %947
  %v949 = vsel %vm628, %v946, %v937
  %v950 = vsel %vm628, %v948, %v938
  %953 = vrot.lane.b32.xlu0 %v949, 127
  %v954 = vpop.permute.xlu0 %953
  %955 = vrot.lane.b32.xlu0 %v950, 127
  %v956 = vpop.permute.xlu0 %955
  %v959 = vsel %vm663, %v954, 0.0
  %v960 = vsel %vm663, %v956, 0.0
  %v961 = vadd.s32 %v646, 2
  %vm962 = vcmp.ge.s32.totalorder %v961, 0
  %vm963 = vcmp.lt.s32.totalorder %v961, 16
  %vm964 = vmand %vm962, %vm963
  %v965 = vsel %vm964, 1, 0
  %vm966 = vcmp.eq.s32.totalorder %v965, 1
  %967 = vrot.lane.b32.xlu0 %v949, 126
  %v968 = vpop.permute.xlu0 %967
  %969 = vrot.lane.b32.xlu0 %v950, 126
  %v970 = vpop.permute.xlu0 %969
  %v973 = vsel %vm966, %v968, 0.0
  %v974 = vsel %vm966, %v970, 0.0
  %s975 = scalar_lea.vmem %s1, 88
  %v976 = vld [vmem:[%s975] sm:$0xf]
  %v977 = vld [vmem:[%s975 + $0x4] sm:$0xf]
  %v978 = vpack.c.bf16 %v938, %v937
  %v979 = vpack.c.bf16 %v960, %v959
  %v980 = vpack.c.bf16 %v974, %v973
  %v983 = vunpack.c.l.b16 %v976
  %v984 = vunpack.c.l.b16 %v977
  %v985 = vpack.c.b16 %v984, %v983
  %v987 = vsel %vm887, %v985, 0
  %989 = vmatpush.bf16.msra.mxu0 0
  %990 = vmatpush.bf16.msra.mxu0 0
  %991 = vmatpush.bf16.msra.mxu0 0
  %992 = vmatpush.bf16.msra.mxu0 0
  %993 = vmatpush.bf16.msra.mxu0 0
  %994 = vmatpush.bf16.msra.mxu0 %v980
  %995 = vmatpush.bf16.msra.mxu0 %v979
  %996 = vmatpush.bf16.msra.mxu0 %v978
  %997 = vmatmul.bf16.gmra.mxu0 %v987
  %v998 = vpop.f32.mrf.mxu0
  %v999 = vadd.f32 0.0, %v998
  %v1000 = vpop.f32.mrf.mxu0
  %v1001 = vadd.f32 0.0, %v1000
  %1002 = vdwg.mxu0
  %s1003 = scalar_lea.vmem %s4, 256
  %v1004 = vld [vmem:[%s1003] sm:$0xff]
  %v1005 = vld [vmem:[%s1003 + $0x8] sm:$0xff]
  %v1006 = vld [vmem:[%s1003 + $0x10] sm:$0xff]
  %v1007 = vld [vmem:[%s1003 + $0x18] sm:$0xff]
  %s1008 = scalar_lea.vmem %s3, 176
  %v1009 = vld [vmem:[%s1008] sm:$0xff]
  %v1010 = vld [vmem:[%s1008 + $0x8] sm:$0xff]
  %1012 = vset.pattern.permute.xlu0 0
  %1013 = vperm.xlu0 %1012, %v1009
  %v1014 = vpop.permute.xlu0 %1013
  %1017 = vset.pattern.permute.xlu0 0
  %1018 = vperm.xlu0 %1017, %v1010
  %v1019 = vpop.permute.xlu0 %1018
  %vm1021 = vcmask 261120
  %v1023 = vsel %vm1021, %v999, 0
  %v1026 = vsel %vm1021, %v1001, 0
  %1028 = vmatpush.msra.mxu0 0.0
  %1029 = vmatpush.msra.mxu0 0.0
  %1030 = vmatpush.msra.mxu0 0.0
  %1031 = vmatpush.msra.mxu0 0.0
  %1032 = vmatpush.msra.mxu0 0.0
  %1033 = vmatpush.msra.mxu0 0.0
  %1034 = vmatpush.msra.mxu0 0.0
  %1035 = vmatpush.msra.mxu0 0.0
  %1036 = vmatpush.msra.mxu0 0.0
  %1037 = vmatpush.msra.mxu0 0.0
  %1038 = vmatpush.msra.mxu0 0.0
  %1039 = vmatpush.msra.mxu0 0.0
  %1040 = vmatpush.msra.mxu0 %v1007
  %1041 = vmatpush.msra.mxu0 %v1006
  %1042 = vmatpush.msra.mxu0 %v1005
  %1043 = vmatpush.msra.mxu0 %v1004
  %1044 = vmatmul.f32.gmra.mxu0 %v1023
  %v1045 = vpop.f32.mrf.mxu0
  %v1046 = vadd.f32 %v1014, %v1045
  %1047 = vmatmul.f32.gmra.mxu0 %v1026
  %v1048 = vpop.f32.mrf.mxu0
  %v1049 = vadd.f32 %v1019, %v1048
  %1050 = vdwg.mxu0
  %s1051 = scalar_lea.vmem %s2, 176
  %v1052 = vld [vmem:[%s1051] sm:$0xff]
  %v1053 = vld [vmem:[%s1051 + $0x8] sm:$0xff]
  %1055 = vset.pattern.permute.xlu0 0
  %1056 = vperm.xlu0 %1055, %v1052
  %v1057 = vpop.permute.xlu0 %1056
  %1060 = vset.pattern.permute.xlu0 0
  %1061 = vperm.xlu0 %1060, %v1053
  %v1062 = vpop.permute.xlu0 %1061
  %v1064 = vmul.f32 %v1046, %v1057
  %v1065 = vmul.f32 %v1049, %v1062
  %1066 = vset.pattern.permute.xlu0 1
  %1067 = vperm.xlu0 %1066, %v1052
  %v1068 = vpop.permute.xlu0 %1067
  %1070 = vset.pattern.permute.xlu0 1
  %1071 = vperm.xlu0 %1070, %v1053
  %v1072 = vpop.permute.xlu0 %1071
  %v1074 = vadd.f32 %v1064, %v1068
  %v1075 = vadd.f32 %v1065, %v1072
  %v1076 = vmax.f32 %v1074, 0.0
  %v1077 = vmax.f32 %v1075, 0.0
  %vm1078 = vcmask 1047680
  %1079 = vrot.lane.b32.xlu0 %v1076, 16
  %v1080 = vpop.permute.xlu0 %1079
  %v1081 = vsel %vm1078, %v1080, %v1076
  %1082 = vrot.lane.b32.xlu0 %v1077, 16
  %v1083 = vpop.permute.xlu0 %1082
  %v1084 = vsel %vm1078, %v1083, %v1077
  %1085 = vrot.lane.b32.xlu0 %v1081, 16
  %v1086 = vpop.permute.xlu0 %1085
  %1087 = vrot.lane.b32.xlu0 %v1084, 16
  %v1088 = vpop.permute.xlu0 %1087
  %v1089 = vsel %vm1078, %v1086, %v1076
  %v1090 = vsel %vm1078, %v1088, %v1077
  %vm1091 = vcmp.lt.s32.totalorder %v33, 0
  %v1092 = vsub.s32 0, %v33
  %v1093 = vsel %vm1091, %v1092, %v33
  %v1094 = vshrl.u32 %v1093, 3
  %v1095 = vand.u32 %v1093, 7
  %v1096 = vsub.s32 0, %v1095
  %v1097 = vsel %vm1091, %v1096, %v1095
  %vm1098 = vcmp.ne.s32.totalorder %v1097, 0
  %vm1099 = vcmp.lt.s32.totalorder %v1097, 0
  %vm1100 = vmand %vm1099, %vm1098
  %v1101 = vadd.s32 %v1097, 8
  %v1102 = vsel %vm1100, %v1101, %v1097
  %v1103 = vadd.s32 %v1102, 4294967295
  %vm1104 = vcmp.ge.s32.totalorder %v1103, 0
  %vm1105 = vcmp.lt.s32.totalorder %v1103, 8
  %vm1106 = vmand %vm1104, %vm1105
  %v1107 = vsel %vm1106, 1, 0
  %vm1108 = vcmp.eq.s32.totalorder %v1107, 1
  %1111 = vrot.lane.b32.xlu0 %v1089, 113
  %v1112 = vpop.permute.xlu0 %1111
  %1113 = vrot.lane.b32.xlu0 %v1090, 113
  %v1114 = vpop.permute.xlu0 %1113
  %v1117 = vsel %vm1108, %v1112, 0.0
  %v1118 = vsel %vm1108, %v1114, 0.0
  %v1119 = vadd.s32 %v1102, 1
  %vm1120 = vcmp.ge.s32.totalorder %v1119, 0
  %vm1121 = vcmp.lt.s32.totalorder %v1119, 8
  %vm1122 = vmand %vm1120, %vm1121
  %v1123 = vsel %vm1122, 1, 0
  %vm1124 = vcmp.eq.s32.totalorder %v1123, 1
  %1125 = vrot.lane.b32.xlu0 %v1089, 127
  %v1126 = vpop.permute.xlu0 %1125
  %1127 = vrot.lane.b32.xlu0 %v1090, 127
  %v1128 = vpop.permute.xlu0 %1127
  %v1131 = vsel %vm1124, %v1126, 0.0
  %v1132 = vsel %vm1124, %v1128, 0.0
  %s1133 = scalar_lea.vmem %s1, 96
  %v1134 = vld [vmem:[%s1133] sm:$0xf]
  %v1135 = vld [vmem:[%s1133 + $0x4] sm:$0xf]
  %v1136 = vpack.c.bf16 %v1118, %v1117
  %v1137 = vpack.c.bf16 %v1077, %v1076
  %v1138 = vpack.c.bf16 %v1132, %v1131
  %s1139 = scalar_lea.vmem %s3, 192
  %v1140 = vld [vmem:[%s1139] sm:$0xff]
  %v1141 = vld [vmem:[%s1139 + $0x8] sm:$0xff]
  %1143 = vset.pattern.permute.xlu0 0
  %1144 = vperm.xlu0 %1143, %v1140
  %v1145 = vpop.permute.xlu0 %1144
  %1148 = vset.pattern.permute.xlu0 0
  %1149 = vperm.xlu0 %1148, %v1141
  %v1150 = vpop.permute.xlu0 %1149
  %v1154 = vunpack.c.l.b16 %v1134
  %v1155 = vunpack.c.l.b16 %v1135
  %v1156 = vpack.c.b16 %v1155, %v1154
  %v1158 = vsel %vm887, %v1156, 0
  %1160 = vmatpush.bf16.msra.mxu0 0
  %1161 = vmatpush.bf16.msra.mxu0 0
  %1162 = vmatpush.bf16.msra.mxu0 0
  %1163 = vmatpush.bf16.msra.mxu0 0
  %1164 = vmatpush.bf16.msra.mxu0 0
  %1165 = vmatpush.bf16.msra.mxu0 %v1138
  %1166 = vmatpush.bf16.msra.mxu0 %v1137
  %1167 = vmatpush.bf16.msra.mxu0 %v1136
  %1168 = vmatmul.bf16.gmra.mxu0 %v1158
  %v1169 = vpop.f32.mrf.mxu0
  %v1170 = vadd.f32 %v1145, %v1169
  %v1171 = vpop.f32.mrf.mxu0
  %v1172 = vadd.f32 %v1150, %v1171
  %1173 = vdwg.mxu0
  %1174 = vrot.lane.b32.xlu0 %v910, 32
  %v1175 = vpop.permute.xlu0 %1174
  %v1176 = vsel %vm628, %v1175, %v910
  %1177 = vrot.lane.b32.xlu0 %v911, 32
  %v1178 = vpop.permute.xlu0 %1177
  %v1179 = vsel %vm628, %v1178, %v911
  %1180 = vrot.lane.b32.xlu0 %v1176, 32
  %v1181 = vpop.permute.xlu0 %1180
  %1182 = vrot.lane.b32.xlu0 %v1179, 32
  %v1183 = vpop.permute.xlu0 %1182
  %v1184 = vsel %vm628, %v1181, %v910
  %v1185 = vsel %vm628, %v1183, %v911
  %1188 = vrot.lane.b32.xlu0 %v1184, 127
  %v1189 = vpop.permute.xlu0 %1188
  %1190 = vrot.lane.b32.xlu0 %v1185, 127
  %v1191 = vpop.permute.xlu0 %1190
  %v1194 = vsel %vm663, %v1189, 0.0
  %v1195 = vsel %vm663, %v1191, 0.0
  %v1196 = vmax.f32 %v910, %v1194
  %v1197 = vmax.f32 %v911, %v1195
  %v1199 = vsel %vm1021, %v1196, 0
  %v1202 = vsel %vm1021, %v1197, 0
  %1204 = vmatpush.msra.mxu0 0.0
  %1205 = vmatpush.msra.mxu0 0.0
  %1206 = vmatpush.msra.mxu0 0.0
  %1207 = vmatpush.msra.mxu0 0.0
  %1208 = vmatpush.msra.mxu0 0.0
  %1209 = vmatpush.msra.mxu0 0.0
  %1210 = vmatpush.msra.mxu0 0.0
  %1211 = vmatpush.msra.mxu0 0.0
  %1212 = vmatpush.msra.mxu0 0.0
  %1213 = vmatpush.msra.mxu0 0.0
  %1214 = vmatpush.msra.mxu0 0.0
  %1215 = vmatpush.msra.mxu0 0.0
  %1216 = vmatpush.msra.mxu0 %v1007
  %1217 = vmatpush.msra.mxu0 %v1006
  %1218 = vmatpush.msra.mxu0 %v1005
  %1219 = vmatpush.msra.mxu0 %v1004
  %1220 = vmatmul.f32.gmra.mxu0 %v1199
  %v1221 = vpop.f32.mrf.mxu0
  %v1222 = vadd.f32 0.0, %v1221
  %1223 = vmatmul.f32.gmra.mxu0 %v1202
  %v1224 = vpop.f32.mrf.mxu0
  %v1225 = vadd.f32 0.0, %v1224
  %1226 = vdwg.mxu0
  %v1227 = vadd.f32 %v1170, %v1222
  %v1228 = vadd.f32 %v1172, %v1225
  %s1229 = scalar_lea.vmem %s2, 192
  %v1230 = vld [vmem:[%s1229] sm:$0xff]
  %v1231 = vld [vmem:[%s1229 + $0x8] sm:$0xff]
  %1233 = vset.pattern.permute.xlu0 0
  %1234 = vperm.xlu0 %1233, %v1230
  %v1235 = vpop.permute.xlu0 %1234
  %1238 = vset.pattern.permute.xlu0 0
  %1239 = vperm.xlu0 %1238, %v1231
  %v1240 = vpop.permute.xlu0 %1239
  %v1242 = vmul.f32 %v1227, %v1235
  %v1243 = vmul.f32 %v1228, %v1240
  %1244 = vset.pattern.permute.xlu0 1
  %1245 = vperm.xlu0 %1244, %v1230
  %v1246 = vpop.permute.xlu0 %1245
  %1248 = vset.pattern.permute.xlu0 1
  %1249 = vperm.xlu0 %1248, %v1231
  %v1250 = vpop.permute.xlu0 %1249
  %v1252 = vadd.f32 %v1242, %v1246
  %v1253 = vadd.f32 %v1243, %v1250
  %v1254 = vmax.f32 %v1252, 0.0
  %v1255 = vmax.f32 %v1253, 0.0
  %1256 = vrot.lane.b32.xlu0 %v1254, 16
  %v1257 = vpop.permute.xlu0 %1256
  %v1258 = vsel %vm1078, %v1257, %v1254
  %1259 = vrot.lane.b32.xlu0 %v1255, 16
  %v1260 = vpop.permute.xlu0 %1259
  %v1261 = vsel %vm1078, %v1260, %v1255
  %1262 = vrot.lane.b32.xlu0 %v1258, 16
  %v1263 = vpop.permute.xlu0 %1262
  %1264 = vrot.lane.b32.xlu0 %v1261, 16
  %v1265 = vpop.permute.xlu0 %1264
  %v1266 = vsel %vm1078, %v1263, %v1254
  %v1267 = vsel %vm1078, %v1265, %v1255
  %1270 = vrot.lane.b32.xlu0 %v1266, 113
  %v1271 = vpop.permute.xlu0 %1270
  %1272 = vrot.lane.b32.xlu0 %v1267, 113
  %v1273 = vpop.permute.xlu0 %1272
  %v1276 = vsel %vm1108, %v1271, 0.0
  %v1277 = vsel %vm1108, %v1273, 0.0
  %1278 = vrot.lane.b32.xlu0 %v1266, 127
  %v1279 = vpop.permute.xlu0 %1278
  %1280 = vrot.lane.b32.xlu0 %v1267, 127
  %v1281 = vpop.permute.xlu0 %1280
  %v1284 = vsel %vm1124, %v1279, 0.0
  %v1285 = vsel %vm1124, %v1281, 0.0
  %s1286 = scalar_lea.vmem %s1, 104
  %v1287 = vld [vmem:[%s1286] sm:$0xf]
  %v1288 = vld [vmem:[%s1286 + $0x4] sm:$0xf]
  %v1289 = vpack.c.bf16 %v1277, %v1276
  %v1290 = vpack.c.bf16 %v1255, %v1254
  %v1291 = vpack.c.bf16 %v1285, %v1284
  %s1292 = scalar_lea.vmem %s3, 208
  %v1293 = vld [vmem:[%s1292] sm:$0xff]
  %v1294 = vld [vmem:[%s1292 + $0x8] sm:$0xff]
  %1296 = vset.pattern.permute.xlu0 0
  %1297 = vperm.xlu0 %1296, %v1293
  %v1298 = vpop.permute.xlu0 %1297
  %1301 = vset.pattern.permute.xlu0 0
  %1302 = vperm.xlu0 %1301, %v1294
  %v1303 = vpop.permute.xlu0 %1302
  %v1307 = vunpack.c.l.b16 %v1287
  %v1308 = vunpack.c.l.b16 %v1288
  %v1309 = vpack.c.b16 %v1308, %v1307
  %v1311 = vsel %vm887, %v1309, 0
  %1313 = vmatpush.bf16.msra.mxu0 0
  %1314 = vmatpush.bf16.msra.mxu0 0
  %1315 = vmatpush.bf16.msra.mxu0 0
  %1316 = vmatpush.bf16.msra.mxu0 0
  %1317 = vmatpush.bf16.msra.mxu0 0
  %1318 = vmatpush.bf16.msra.mxu0 %v1291
  %1319 = vmatpush.bf16.msra.mxu0 %v1290
  %1320 = vmatpush.bf16.msra.mxu0 %v1289
  %1321 = vmatmul.bf16.gmra.mxu0 %v1311
  %v1322 = vpop.f32.mrf.mxu0
  %v1323 = vadd.f32 %v1298, %v1322
  %v1324 = vpop.f32.mrf.mxu0
  %v1325 = vadd.f32 %v1303, %v1324
  %1326 = vdwg.mxu0
  %s1327 = scalar_lea.vmem %s2, 208
  %v1328 = vld [vmem:[%s1327] sm:$0xff]
  %v1329 = vld [vmem:[%s1327 + $0x8] sm:$0xff]
  %1331 = vset.pattern.permute.xlu0 0
  %1332 = vperm.xlu0 %1331, %v1328
  %v1333 = vpop.permute.xlu0 %1332
  %1336 = vset.pattern.permute.xlu0 0
  %1337 = vperm.xlu0 %1336, %v1329
  %v1338 = vpop.permute.xlu0 %1337
  %v1340 = vmul.f32 %v1323, %v1333
  %v1341 = vmul.f32 %v1325, %v1338
  %1342 = vset.pattern.permute.xlu0 1
  %1343 = vperm.xlu0 %1342, %v1328
  %v1344 = vpop.permute.xlu0 %1343
  %1346 = vset.pattern.permute.xlu0 1
  %1347 = vperm.xlu0 %1346, %v1329
  %v1348 = vpop.permute.xlu0 %1347
  %v1350 = vadd.f32 %v1340, %v1344
  %v1351 = vadd.f32 %v1341, %v1348
  %v1352 = vmax.f32 %v1350, 0.0
  %v1353 = vmax.f32 %v1351, 0.0
  %1354 = vrot.lane.b32.xlu0 %v1352, 16
  %v1355 = vpop.permute.xlu0 %1354
  %v1356 = vsel %vm1078, %v1355, %v1352
  %1357 = vrot.lane.b32.xlu0 %v1353, 16
  %v1358 = vpop.permute.xlu0 %1357
  %v1359 = vsel %vm1078, %v1358, %v1353
  %1360 = vrot.lane.b32.xlu0 %v1356, 16
  %v1361 = vpop.permute.xlu0 %1360
  %1362 = vrot.lane.b32.xlu0 %v1359, 16
  %v1363 = vpop.permute.xlu0 %1362
  %v1364 = vsel %vm1078, %v1361, %v1352
  %v1365 = vsel %vm1078, %v1363, %v1353
  %1368 = vrot.lane.b32.xlu0 %v1364, 113
  %v1369 = vpop.permute.xlu0 %1368
  %1370 = vrot.lane.b32.xlu0 %v1365, 113
  %v1371 = vpop.permute.xlu0 %1370
  %v1374 = vsel %vm1108, %v1369, 0.0
  %v1375 = vsel %vm1108, %v1371, 0.0
  %1376 = vrot.lane.b32.xlu0 %v1364, 127
  %v1377 = vpop.permute.xlu0 %1376
  %1378 = vrot.lane.b32.xlu0 %v1365, 127
  %v1379 = vpop.permute.xlu0 %1378
  %v1382 = vsel %vm1124, %v1377, 0.0
  %v1383 = vsel %vm1124, %v1379, 0.0
  %s1384 = scalar_lea.vmem %s1, 112
  %v1385 = vld [vmem:[%s1384] sm:$0xf]
  %v1386 = vld [vmem:[%s1384 + $0x4] sm:$0xf]
  %v1387 = vpack.c.bf16 %v1375, %v1374
  %v1388 = vpack.c.bf16 %v1353, %v1352
  %v1389 = vpack.c.bf16 %v1383, %v1382
  %s1390 = scalar_lea.vmem %s3, 224
  %v1391 = vld [vmem:[%s1390] sm:$0xff]
  %v1392 = vld [vmem:[%s1390 + $0x8] sm:$0xff]
  %1394 = vset.pattern.permute.xlu0 0
  %1395 = vperm.xlu0 %1394, %v1391
  %v1396 = vpop.permute.xlu0 %1395
  %1399 = vset.pattern.permute.xlu0 0
  %1400 = vperm.xlu0 %1399, %v1392
  %v1401 = vpop.permute.xlu0 %1400
  %v1405 = vunpack.c.l.b16 %v1385
  %v1406 = vunpack.c.l.b16 %v1386
  %v1407 = vpack.c.b16 %v1406, %v1405
  %v1409 = vsel %vm887, %v1407, 0
  %1411 = vmatpush.bf16.msra.mxu0 0
  %1412 = vmatpush.bf16.msra.mxu0 0
  %1413 = vmatpush.bf16.msra.mxu0 0
  %1414 = vmatpush.bf16.msra.mxu0 0
  %1415 = vmatpush.bf16.msra.mxu0 0
  %1416 = vmatpush.bf16.msra.mxu0 %v1389
  %1417 = vmatpush.bf16.msra.mxu0 %v1388
  %1418 = vmatpush.bf16.msra.mxu0 %v1387
  %1419 = vmatmul.bf16.gmra.mxu0 %v1409
  %v1420 = vpop.f32.mrf.mxu0
  %v1421 = vadd.f32 %v1396, %v1420
  %v1422 = vpop.f32.mrf.mxu0
  %v1423 = vadd.f32 %v1401, %v1422
  %1424 = vdwg.mxu0
  %v1425 = vadd.f32 %v1421, %v1227
  %v1426 = vadd.f32 %v1423, %v1228
  %s1427 = scalar_lea.vmem %s2, 224
  %v1428 = vld [vmem:[%s1427] sm:$0xff]
  %v1429 = vld [vmem:[%s1427 + $0x8] sm:$0xff]
  %1431 = vset.pattern.permute.xlu0 0
  %1432 = vperm.xlu0 %1431, %v1428
  %v1433 = vpop.permute.xlu0 %1432
  %1436 = vset.pattern.permute.xlu0 0
  %1437 = vperm.xlu0 %1436, %v1429
  %v1438 = vpop.permute.xlu0 %1437
  %v1440 = vmul.f32 %v1425, %v1433
  %v1441 = vmul.f32 %v1426, %v1438
  %1442 = vset.pattern.permute.xlu0 1
  %1443 = vperm.xlu0 %1442, %v1428
  %v1444 = vpop.permute.xlu0 %1443
  %1446 = vset.pattern.permute.xlu0 1
  %1447 = vperm.xlu0 %1446, %v1429
  %v1448 = vpop.permute.xlu0 %1447
  %v1450 = vadd.f32 %v1440, %v1444
  %v1451 = vadd.f32 %v1441, %v1448
  %v1452 = vmax.f32 %v1450, 0.0
  %v1453 = vmax.f32 %v1451, 0.0
  %1454 = vrot.lane.b32.xlu0 %v1452, 16
  %v1455 = vpop.permute.xlu0 %1454
  %v1456 = vsel %vm1078, %v1455, %v1452
  %1457 = vrot.lane.b32.xlu0 %v1453, 16
  %v1458 = vpop.permute.xlu0 %1457
  %v1459 = vsel %vm1078, %v1458, %v1453
  %1460 = vrot.lane.b32.xlu0 %v1456, 16
  %v1461 = vpop.permute.xlu0 %1460
  %1462 = vrot.lane.b32.xlu0 %v1459, 16
  %v1463 = vpop.permute.xlu0 %1462
  %v1464 = vsel %vm1078, %v1461, %v1452
  %v1465 = vsel %vm1078, %v1463, %v1453
  %1468 = vrot.lane.b32.xlu0 %v1464, 127
  %v1469 = vpop.permute.xlu0 %1468
  %1470 = vrot.lane.b32.xlu0 %v1465, 127
  %v1471 = vpop.permute.xlu0 %1470
  %v1474 = vsel %vm1124, %v1469, 0.0
  %v1475 = vsel %vm1124, %v1471, 0.0
  %v1476 = vadd.s32 %v1102, 2
  %vm1477 = vcmp.ge.s32.totalorder %v1476, 0
  %vm1478 = vcmp.lt.s32.totalorder %v1476, 8
  %vm1479 = vmand %vm1477, %vm1478
  %v1480 = vsel %vm1479, 1, 0
  %vm1481 = vcmp.eq.s32.totalorder %v1480, 1
  %1482 = vrot.lane.b32.xlu0 %v1464, 126
  %v1483 = vpop.permute.xlu0 %1482
  %1484 = vrot.lane.b32.xlu0 %v1465, 126
  %v1485 = vpop.permute.xlu0 %1484
  %v1488 = vsel %vm1481, %v1483, 0.0
  %v1489 = vsel %vm1481, %v1485, 0.0
  %s1490 = scalar_lea.vmem %s1, 120
  %v1491 = vld [vmem:[%s1490] sm:$0xf]
  %v1492 = vld [vmem:[%s1490 + $0x4] sm:$0xf]
  %v1493 = vpack.c.bf16 %v1453, %v1452
  %v1494 = vpack.c.bf16 %v1475, %v1474
  %v1495 = vpack.c.bf16 %v1489, %v1488
  %v1498 = vunpack.c.l.b16 %v1491
  %v1499 = vunpack.c.l.b16 %v1492
  %v1500 = vpack.c.b16 %v1499, %v1498
  %v1502 = vsel %vm887, %v1500, 0
  %1504 = vmatpush.bf16.msra.mxu0 0
  %1505 = vmatpush.bf16.msra.mxu0 0
  %1506 = vmatpush.bf16.msra.mxu0 0
  %1507 = vmatpush.bf16.msra.mxu0 0
  %1508 = vmatpush.bf16.msra.mxu0 0
  %1509 = vmatpush.bf16.msra.mxu0 %v1495
  %1510 = vmatpush.bf16.msra.mxu0 %v1494
  %1511 = vmatpush.bf16.msra.mxu0 %v1493
  %1512 = vmatmul.bf16.gmra.mxu0 %v1502
  %v1513 = vpop.f32.mrf.mxu0
  %v1514 = vadd.f32 0.0, %v1513
  %v1515 = vpop.f32.mrf.mxu0
  %v1516 = vadd.f32 0.0, %v1515
  %1517 = vdwg.mxu0
  %s1518 = scalar_lea.vmem %s4, 384
  %v1519 = vld [vmem:[%s1518] sm:$0xff]
  %v1520 = vld [vmem:[%s1518 + $0x8] sm:$0xff]
  %s1521 = scalar_lea.vmem %s3, 240
  %v1522 = vld [vmem:[%s1521] sm:$0xff]
  %v1523 = vld [vmem:[%s1521 + $0x8] sm:$0xff]
  %1525 = vset.pattern.permute.xlu0 0
  %1526 = vperm.xlu0 %1525, %v1522
  %v1527 = vpop.permute.xlu0 %1526
  %1530 = vset.pattern.permute.xlu0 0
  %1531 = vperm.xlu0 %1530, %v1523
  %v1532 = vpop.permute.xlu0 %1531
  %vm1534 = vcmask 130048
  %v1536 = vsel %vm1534, %v1514, 0
  %v1539 = vsel %vm1534, %v1516, 0
  %1541 = vmatpush.msra.mxu0 0.0
  %1542 = vmatpush.msra.mxu0 0.0
  %1543 = vmatpush.msra.mxu0 0.0
  %1544 = vmatpush.msra.mxu0 0.0
  %1545 = vmatpush.msra.mxu0 0.0
  %1546 = vmatpush.msra.mxu0 0.0
  %1547 = vmatpush.msra.mxu0 0.0
  %1548 = vmatpush.msra.mxu0 0.0
  %1549 = vmatpush.msra.mxu0 0.0
  %1550 = vmatpush.msra.mxu0 0.0
  %1551 = vmatpush.msra.mxu0 0.0
  %1552 = vmatpush.msra.mxu0 0.0
  %1553 = vmatpush.msra.mxu0 0.0
  %1554 = vmatpush.msra.mxu0 0.0
  %1555 = vmatpush.msra.mxu0 %v1520
  %1556 = vmatpush.msra.mxu0 %v1519
  %1557 = vmatmul.f32.gmra.mxu0 %v1536
  %v1558 = vpop.f32.mrf.mxu0
  %v1559 = vadd.f32 %v1527, %v1558
  %1560 = vmatmul.f32.gmra.mxu0 %v1539
  %v1561 = vpop.f32.mrf.mxu0
  %v1562 = vadd.f32 %v1532, %v1561
  %1563 = vdwg.mxu0
  %s1564 = scalar_lea.vmem %s2, 240
  %v1565 = vld [vmem:[%s1564] sm:$0xff]
  %v1566 = vld [vmem:[%s1564 + $0x8] sm:$0xff]
  %1568 = vset.pattern.permute.xlu0 0
  %1569 = vperm.xlu0 %1568, %v1565
  %v1570 = vpop.permute.xlu0 %1569
  %1573 = vset.pattern.permute.xlu0 0
  %1574 = vperm.xlu0 %1573, %v1566
  %v1575 = vpop.permute.xlu0 %1574
  %v1577 = vmul.f32 %v1559, %v1570
  %v1578 = vmul.f32 %v1562, %v1575
  %1579 = vset.pattern.permute.xlu0 1
  %1580 = vperm.xlu0 %1579, %v1565
  %v1581 = vpop.permute.xlu0 %1580
  %1583 = vset.pattern.permute.xlu0 1
  %1584 = vperm.xlu0 %1583, %v1566
  %v1585 = vpop.permute.xlu0 %1584
  %v1587 = vadd.f32 %v1577, %v1581
  %v1588 = vadd.f32 %v1578, %v1585
  %v1589 = vmax.f32 %v1587, 0.0
  %v1590 = vmax.f32 %v1588, 0.0
  %vm1591 = vcmask 1047616
  %1592 = vrot.lane.b32.xlu0 %v1589, 8
  %v1593 = vpop.permute.xlu0 %1592
  %v1594 = vsel %vm1591, %v1593, %v1589
  %1595 = vrot.lane.b32.xlu0 %v1590, 8
  %v1596 = vpop.permute.xlu0 %1595
  %v1597 = vsel %vm1591, %v1596, %v1590
  %1598 = vrot.lane.b32.xlu0 %v1594, 8
  %v1599 = vpop.permute.xlu0 %1598
  %1600 = vrot.lane.b32.xlu0 %v1597, 8
  %v1601 = vpop.permute.xlu0 %1600
  %v1602 = vsel %vm1591, %v1599, %v1589
  %v1603 = vsel %vm1591, %v1601, %v1590
  %vm1604 = vcmp.lt.s32.totalorder %v33, 0
  %v1605 = vsub.s32 0, %v33
  %v1606 = vsel %vm1604, %v1605, %v33
  %v1607 = vshrl.u32 %v1606, 2
  %v1608 = vand.u32 %v1606, 3
  %v1609 = vsub.s32 0, %v1608
  %v1610 = vsel %vm1604, %v1609, %v1608
  %vm1611 = vcmp.ne.s32.totalorder %v1610, 0
  %vm1612 = vcmp.lt.s32.totalorder %v1610, 0
  %vm1613 = vmand %vm1612, %vm1611
  %v1614 = vadd.s32 %v1610, 4
  %v1615 = vsel %vm1613, %v1614, %v1610
  %v1616 = vadd.s32 %v1615, 4294967295
  %vm1617 = vcmp.ge.s32.totalorder %v1616, 0
  %vm1618 = vcmp.lt.s32.totalorder %v1616, 4
  %vm1619 = vmand %vm1617, %vm1618
  %v1620 = vsel %vm1619, 1, 0
  %vm1621 = vcmp.eq.s32.totalorder %v1620, 1
  %1624 = vrot.lane.b32.xlu0 %v1602, 121
  %v1625 = vpop.permute.xlu0 %1624
  %1626 = vrot.lane.b32.xlu0 %v1603, 121
  %v1627 = vpop.permute.xlu0 %1626
  %v1630 = vsel %vm1621, %v1625, 0.0
  %v1631 = vsel %vm1621, %v1627, 0.0
  %v1632 = vadd.s32 %v1615, 1
  %vm1633 = vcmp.ge.s32.totalorder %v1632, 0
  %vm1634 = vcmp.lt.s32.totalorder %v1632, 4
  %vm1635 = vmand %vm1633, %vm1634
  %v1636 = vsel %vm1635, 1, 0
  %vm1637 = vcmp.eq.s32.totalorder %v1636, 1
  %1638 = vrot.lane.b32.xlu0 %v1602, 127
  %v1639 = vpop.permute.xlu0 %1638
  %1640 = vrot.lane.b32.xlu0 %v1603, 127
  %v1641 = vpop.permute.xlu0 %1640
  %v1644 = vsel %vm1637, %v1639, 0.0
  %v1645 = vsel %vm1637, %v1641, 0.0
  %s1646 = scalar_lea.vmem %s1, 128
  %v1647 = vld [vmem:[%s1646] sm:$0xf]
  %v1648 = vld [vmem:[%s1646 + $0x4] sm:$0xf]
  %v1649 = vpack.c.bf16 %v1631, %v1630
  %v1650 = vpack.c.bf16 %v1590, %v1589
  %v1651 = vpack.c.bf16 %v1645, %v1644
  %s1652 = scalar_lea.vmem %s3, 256
  %v1653 = vld [vmem:[%s1652] sm:$0xff]
  %v1654 = vld [vmem:[%s1652 + $0x8] sm:$0xff]
  %1656 = vset.pattern.permute.xlu0 0
  %1657 = vperm.xlu0 %1656, %v1653
  %v1658 = vpop.permute.xlu0 %1657
  %1661 = vset.pattern.permute.xlu0 0
  %1662 = vperm.xlu0 %1661, %v1654
  %v1663 = vpop.permute.xlu0 %1662
  %v1667 = vunpack.c.l.b16 %v1647
  %v1668 = vunpack.c.l.b16 %v1648
  %v1669 = vpack.c.b16 %v1668, %v1667
  %v1671 = vsel %vm887, %v1669, 0
  %1673 = vmatpush.bf16.msra.mxu0 0
  %1674 = vmatpush.bf16.msra.mxu0 0
  %1675 = vmatpush.bf16.msra.mxu0 0
  %1676 = vmatpush.bf16.msra.mxu0 0
  %1677 = vmatpush.bf16.msra.mxu0 0
  %1678 = vmatpush.bf16.msra.mxu0 %v1651
  %1679 = vmatpush.bf16.msra.mxu0 %v1650
  %1680 = vmatpush.bf16.msra.mxu0 %v1649
  %1681 = vmatmul.bf16.gmra.mxu0 %v1671
  %v1682 = vpop.f32.mrf.mxu0
  %v1683 = vadd.f32 %v1658, %v1682
  %v1684 = vpop.f32.mrf.mxu0
  %v1685 = vadd.f32 %v1663, %v1684
  %1686 = vdwg.mxu0
  %1687 = vrot.lane.b32.xlu0 %v1425, 16
  %v1688 = vpop.permute.xlu0 %1687
  %v1689 = vsel %vm1078, %v1688, %v1425
  %1690 = vrot.lane.b32.xlu0 %v1426, 16
  %v1691 = vpop.permute.xlu0 %1690
  %v1692 = vsel %vm1078, %v1691, %v1426
  %1693 = vrot.lane.b32.xlu0 %v1689, 16
  %v1694 = vpop.permute.xlu0 %1693
  %1695 = vrot.lane.b32.xlu0 %v1692, 16
  %v1696 = vpop.permute.xlu0 %1695
  %v1697 = vsel %vm1078, %v1694, %v1425
  %v1698 = vsel %vm1078, %v1696, %v1426
  %1701 = vrot.lane.b32.xlu0 %v1697, 127
  %v1702 = vpop.permute.xlu0 %1701
  %1703 = vrot.lane.b32.xlu0 %v1698, 127
  %v1704 = vpop.permute.xlu0 %1703
  %v1707 = vsel %vm1124, %v1702, 0.0
  %v1708 = vsel %vm1124, %v1704, 0.0
  %v1709 = vmax.f32 %v1425, %v1707
  %v1710 = vmax.f32 %v1426, %v1708
  %v1712 = vsel %vm1534, %v1709, 0
  %v1715 = vsel %vm1534, %v1710, 0
  %1717 = vmatpush.msra.mxu0 0.0
  %1718 = vmatpush.msra.mxu0 0.0
  %1719 = vmatpush.msra.mxu0 0.0
  %1720 = vmatpush.msra.mxu0 0.0
  %1721 = vmatpush.msra.mxu0 0.0
  %1722 = vmatpush.msra.mxu0 0.0
  %1723 = vmatpush.msra.mxu0 0.0
  %1724 = vmatpush.msra.mxu0 0.0
  %1725 = vmatpush.msra.mxu0 0.0
  %1726 = vmatpush.msra.mxu0 0.0
  %1727 = vmatpush.msra.mxu0 0.0
  %1728 = vmatpush.msra.mxu0 0.0
  %1729 = vmatpush.msra.mxu0 0.0
  %1730 = vmatpush.msra.mxu0 0.0
  %1731 = vmatpush.msra.mxu0 %v1520
  %1732 = vmatpush.msra.mxu0 %v1519
  %1733 = vmatmul.f32.gmra.mxu0 %v1712
  %v1734 = vpop.f32.mrf.mxu0
  %v1735 = vadd.f32 0.0, %v1734
  %1736 = vmatmul.f32.gmra.mxu0 %v1715
  %v1737 = vpop.f32.mrf.mxu0
  %v1738 = vadd.f32 0.0, %v1737
  %1739 = vdwg.mxu0
  %v1740 = vadd.f32 %v1683, %v1735
  %v1741 = vadd.f32 %v1685, %v1738
  %s1742 = scalar_lea.vmem %s2, 256
  %v1743 = vld [vmem:[%s1742] sm:$0xff]
  %v1744 = vld [vmem:[%s1742 + $0x8] sm:$0xff]
  %1746 = vset.pattern.permute.xlu0 0
  %1747 = vperm.xlu0 %1746, %v1743
  %v1748 = vpop.permute.xlu0 %1747
  %1751 = vset.pattern.permute.xlu0 0
  %1752 = vperm.xlu0 %1751, %v1744
  %v1753 = vpop.permute.xlu0 %1752
  %v1755 = vmul.f32 %v1740, %v1748
  %v1756 = vmul.f32 %v1741, %v1753
  %1757 = vset.pattern.permute.xlu0 1
  %1758 = vperm.xlu0 %1757, %v1743
  %v1759 = vpop.permute.xlu0 %1758
  %1761 = vset.pattern.permute.xlu0 1
  %1762 = vperm.xlu0 %1761, %v1744
  %v1763 = vpop.permute.xlu0 %1762
  %v1765 = vadd.f32 %v1755, %v1759
  %v1766 = vadd.f32 %v1756, %v1763
  %v1767 = vmax.f32 %v1765, 0.0
  %v1768 = vmax.f32 %v1766, 0.0
  %s1769 = scalar_lea.vmem %s1, 136
  %v1770 = vld [vmem:[%s1769] sm:$0xf]
  %v1771 = vpack.c.bf16 %v1768, %v1767
  %v1773 = vsel %vm1534, %v1770, 0
  %1775 = vmatpush.bf16.msra.mxu0 0
  %1776 = vmatpush.bf16.msra.mxu0 0
  %1777 = vmatpush.bf16.msra.mxu0 0
  %1778 = vmatpush.bf16.msra.mxu0 0
  %1779 = vmatpush.bf16.msra.mxu0 0
  %1780 = vmatpush.bf16.msra.mxu0 0
  %1781 = vmatpush.bf16.msra.mxu0 0
  %1782 = vmatpush.bf16.msra.mxu0 %v1771
  %1783 = vmatmul.bf16.gmra.mxu0 %v1773
  %v1784 = vpop.f32.mrf.mxu0
  %v1785 = vadd.f32 0.0, %v1784
  %v1786 = vpop.f32.mrf.mxu0
  %1787 = vdwg.mxu0
  %vm1788 = vcmask 28672
  %v1789 = vsel %vm1788, %v1785, 0.0
  %1790 = vadd.xlane.f32.xlu0 %v1789
  %v1791 = vpop.xlane.xlu0 %1790
  %v1792 = vrcp.pop 4.0
  %v1793 = vmul.f32 4.0, %v1792
  %v1794 = vsub.f32 1.0, %v1793
  %v1795 = vmul.f32 %v1792, %v1794
  %v1796 = vadd.f32 %v1792, %v1795
  %vm1797 = vweird.f32 %v1792
  %v1798 = vsel %vm1797, %v1792, %v1796
  %v1799 = vmul.f32 %v1791, %v1798
  %1801 = vrot.lane.b32.xlu0 %v1785, 124
  %v1802 = vpop.permute.xlu0 %1801
  %v1804 = vsel %vm1788, %v1802, 0.0
  %1805 = vadd.xlane.f32.xlu0 %v1804
  %v1806 = vpop.xlane.xlu0 %1805
  %v1807 = vmul.f32 %v1806, %v1798
  %vm1808 = vcmask 7168
  %v1809 = vsel %vm1808, %v1799, %v1807
  %s1810 = scalar_lea.vmem %s3, 272
  %v1811 = vld [vmem:[%s1810] sm:$0xff]
  %1813 = vset.pattern.permute.xlu0 0
  %1814 = vperm.xlu0 %1813, %v1811
  %v1815 = vpop.permute.xlu0 %1814
  %v1817 = vadd.f32 %v1809, %v1815
  %vm1818 = vcmask 12288
  %1819 = vst.msk [vmem:[%s5] sm:$0x1f] %vm1818, %v1817
  // Predicated region
  $region22: #{tpu_custom_call.1} parent=0 // pred_check
    _
  $region23: #{tpu_custom_call.1} parent=0 // pred_check_branch
    %1821 = sbr.rel (0) target = $region25
  $region24: #{tpu_custom_call.1} parent=0 // pred_region
    _
  $region25: #{tpu_custom_call.1} parent=0 // pred_fallthru
    _
  // Predicated region
  $region26: #{tpu_custom_call.1} parent=0 // pred_check
    _
  $region27: #{tpu_custom_call.1} parent=0 // pred_check_branch
    %1823 = sbr.rel (0) target = $region29
  $region28: #{tpu_custom_call.1} parent=0 // pred_region
    _
  $region29: #{tpu_custom_call.1} parent=0 // pred_fallthru
    _

</llo_original>
